<compile_context>
chip_gen: v7x
topology: tpu7x:2x2x1
jax: 0.10.0
libtpu: 0.0.40
codegen_flags: <defaults>
</compile_context>

<pallas_src>
import numpy as np
import jax
import jax.numpy as jnp
from jax import lax
from jax.experimental import pallas as pl
from jax.experimental.pallas import tpu as pltpu  # noqa: F401  (TPU backend)

# --- small demo hyper-params (module defaults scaled down) ---
VOCAB = 128
N_EMBD = 32
N_HEAD = 4
HEAD = N_EMBD // N_HEAD
BLOCK_SIZE = 8          # sequence length T in this demo
N_LAYER = 2
BATCH = 2
EPS = 1e-5


def _layernorm(x, g, b):
    mu = jnp.mean(x, axis=-1, keepdims=True)
    var = jnp.mean((x - mu) ** 2, axis=-1, keepdims=True)
    return (x - mu) * lax.rsqrt(var + EPS) * g + b


# ---------------- fused Pallas kernel (whole forward pass) ----------------

def gpt_fused_kernel(tok_ref, pos_ref,
                     ln1g_ref, ln1b_ref, wqkv_ref, wproj_ref, bproj_ref,
                     ln2g_ref, ln2b_ref, w1_ref, b1_ref, w2_ref, b2_ref,
                     lnfg_ref, lnfb_ref, wlm_ref, blm_ref,
                     o_ref):
    B, T, C = tok_ref.shape
    H, D = N_HEAD, HEAD
    BT = B * T

    # token + position embedding add (gather itself is XLA glue in the wrapper),
    # then fold the batch into the sublane axis: (B, T, C) -> (B*T, C).
    x = (tok_ref[...] + pos_ref[...]).reshape(BT, C)

    # causal additive mask: computed ONCE, reused by every layer / head / batch.
    row = lax.broadcasted_iota(jnp.int32, (T, T), 0)
    col = lax.broadcasted_iota(jnp.int32, (T, T), 1)
    mask_bias = jnp.where(row >= col, 0.0, -1e30)          # (T, T) float32

    for l in range(N_LAYER):                                # static unroll
        # ---- multi-head causal self-attention on ln1(x) ----
        xn = _layernorm(x, ln1g_ref[l], ln1b_ref[l])
        # single fused QKV projection (scale already folded into the q weights)
        qkv = jnp.dot(xn, wqkv_ref[l],
                      preferred_element_type=jnp.float32).reshape(B, T, 3 * C)

        # pack heads onto a leading group axis: (H*B, T, D), group = h*B + b
        qg = jnp.concatenate(
            [qkv[..., h * D:(h + 1) * D] for h in range(H)], axis=0)
        kg = jnp.concatenate(
            [qkv[..., C + h * D:C + (h + 1) * D] for h in range(H)], axis=0)
        vg = jnp.concatenate(
            [qkv[..., 2 * C + h * D:2 * C + (h + 1) * D] for h in range(H)], axis=0)

        s = jnp.einsum('gqd,gkd->gqk', qg, kg,
                       preferred_element_type=jnp.float32)  # (H*B, T, T)
        s = s + mask_bias[None]
        s = s - jnp.max(s, axis=-1, keepdims=True)
        p = jnp.exp(s)
        p = p * pl.reciprocal(jnp.sum(p, axis=-1, keepdims=True), approx=True)
        og = jnp.einsum('gqk,gkd->gqd', p, vg,
                        preferred_element_type=jnp.float32)  # (H*B, T, D)

        # heads back onto the feature (lane) axis, torch.cat(head_outputs, -1)
        att = jnp.concatenate([og[h * B:(h + 1) * B] for h in range(H)],
                              axis=-1).reshape(BT, C)
        x = x + jnp.dot(att, wproj_ref[l],
                        preferred_element_type=jnp.float32) + bproj_ref[l]

        # ---- feed-forward on ln2(x) ----
        xn2 = _layernorm(x, ln2g_ref[l], ln2b_ref[l])
        h1 = jnp.dot(xn2, w1_ref[l],
                     preferred_element_type=jnp.float32) + b1_ref[l]
        h1 = jnp.maximum(h1, 0.0)                            # ReLU
        x = x + jnp.dot(h1, w2_ref[l],
                        preferred_element_type=jnp.float32) + b2_ref[l]

    # ---- final layernorm + lm_head (V = 128 -> lane-dense output) ----
    xn = _layernorm(x, lnfg_ref[...], lnfb_ref[...])
    logits = jnp.dot(xn, wlm_ref[...],
                     preferred_element_type=jnp.float32) + blm_ref[...]
    o_ref[...] = logits.reshape(B, T, -1)


# ---------------- wrapper ----------------

def _stack_layer_params(params):
    """Stack per-layer weights along a leading layer axis; fuse QKV and fold
    the attention scale into the q columns."""
    scale = HEAD ** -0.5
    stk = lambda name: jnp.stack([lp[name] for lp in params["layers"]])
    wqkv = jnp.stack([
        jnp.concatenate([lp["wq"] * scale, lp["wk"], lp["wv"]], axis=1)
        for lp in params["layers"]])
    return (stk("ln1_g"), stk("ln1_b"), wqkv, stk("wproj"), stk("bproj"),
            stk("ln2_g"), stk("ln2_b"), stk("w1"), stk("b1"),
            stk("w2"), stk("b2"))


@jax.jit
def gpt_forward(idx, params):
    B, T = idx.shape
    tok = params["tok_emb"][idx]          # (B, T, C) embedding gather (XLA glue)
    pos = params["pos_emb"][:T]           # (T, C)
    layer_args = _stack_layer_params(params)
    V = params["w_lm"].shape[-1]
    logits = pl.pallas_call(
        gpt_fused_kernel,
        out_shape=jax.ShapeDtypeStruct((B, T, V), jnp.float32),
    )(tok, pos, *layer_args,
      params["lnf_g"], params["lnf_b"], params["w_lm"], params["b_lm"])
    return logits                          # (B, T, vocab); loss path: targets=None


# ---------------- deterministic parameter init ----------------

def init_params(key):
    def normal(key, shape):
        return 0.02 * jax.random.normal(key, shape, dtype=jnp.float32)

    keys = jax.random.split(key, 3 + N_LAYER)
    params = {
        "tok_emb": normal(keys[0], (VOCAB, N_EMBD)),
        "pos_emb": normal(keys[1], (BLOCK_SIZE, N_EMBD)),
        "lnf_g": jnp.ones((1, N_EMBD), jnp.float32),
        "lnf_b": jnp.zeros((1, N_EMBD), jnp.float32),
        "w_lm": normal(keys[2], (N_EMBD, VOCAB)),
        "b_lm": jnp.zeros((1, VOCAB), jnp.float32),
        "layers": [],
    }
    for l in range(N_LAYER):
        lk = jax.random.split(keys[3 + l], 6)
        params["layers"].append({
            "ln1_g": jnp.ones((1, N_EMBD), jnp.float32),
            "ln1_b": jnp.zeros((1, N_EMBD), jnp.float32),
            "wq": normal(lk[0], (N_EMBD, N_EMBD)),
            "wk": normal(lk[1], (N_EMBD, N_EMBD)),
            "wv": normal(lk[2], (N_EMBD, N_EMBD)),
            "wproj": normal(lk[3], (N_EMBD, N_EMBD)),
            "bproj": jnp.zeros((1, N_EMBD), jnp.float32),
            "ln2_g": jnp.ones((1, N_EMBD), jnp.float32),
            "ln2_b": jnp.zeros((1, N_EMBD), jnp.float32),
            "w1": normal(lk[4], (N_EMBD, 4 * N_EMBD)),
            "b1": jnp.zeros((1, 4 * N_EMBD), jnp.float32),
            "w2": normal(lk[5], (4 * N_EMBD, N_EMBD)),
            "b2": jnp.zeros((1, N_EMBD), jnp.float32),
        })
    return params


# ---------------- pure-JAX reference for verification ----------------

def ref_forward(idx, params):
    B, T = idx.shape
    x = params["tok_emb"][idx] + params["pos_emb"][:T][None, :, :]
    mask = jnp.tril(jnp.ones((T, T), dtype=bool))
    for lp in params["layers"]:
        xn = _layernorm(x, lp["ln1_g"], lp["ln1_b"])
        q, k, v = xn @ lp["wq"], xn @ lp["wk"], xn @ lp["wv"]
        outs = []
        for h in range(N_HEAD):
            sl = slice(h * HEAD, (h + 1) * HEAD)
            qh, kh, vh = q[..., sl], k[..., sl], v[..., sl]
            wei = (qh @ jnp.swapaxes(kh, -1, -2)) * (HEAD ** -0.5)
            wei = jnp.where(mask, wei, -jnp.inf)
            wei = jax.nn.softmax(wei, axis=-1)
            outs.append(wei @ vh)
        att = jnp.concatenate(outs, axis=-1)
        x = x + att @ lp["wproj"] + lp["bproj"]
        xn2 = _layernorm(x, lp["ln2_g"], lp["ln2_b"])
        h1 = jnp.maximum(xn2 @ lp["w1"] + lp["b1"], 0.0)
        x = x + h1 @ lp["w2"] + lp["b2"]
    xn = _layernorm(x, params["lnf_g"], params["lnf_b"])
    return xn @ params["w_lm"] + params["b_lm"]


if __name__ == "__main__":
    key = jax.random.PRNGKey(0)
    pkey, ikey = jax.random.split(key)
    params = init_params(pkey)
    idx = jax.random.randint(ikey, (BATCH, BLOCK_SIZE), 0, VOCAB, dtype=jnp.int32)

    logits = gpt_forward(idx, params)
    logits = jax.block_until_ready(logits)

    ref = jax.block_until_ready(ref_forward(idx, params))
    # tolerance accounts for the EUP approximate reciprocal in the softmax
    np.testing.assert_allclose(np.asarray(logits), np.asarray(ref),
                               rtol=2e-3, atol=2e-3)
    assert logits.shape == (BATCH, BLOCK_SIZE, VOCAB)
    print("KERNEL_OK")
</pallas_src>

<mosaic_0001>
module attributes {stable_mosaic.version = 11 : i64} {
  func.func @gpt_fused_kernel(%arg0: memref<2x8x32xf32, #tpu.memory_space<vmem>>, %arg1: memref<8x32xf32, #tpu.memory_space<vmem>>, %arg2: memref<2x1x32xf32, #tpu.memory_space<vmem>>, %arg3: memref<2x1x32xf32, #tpu.memory_space<vmem>>, %arg4: memref<2x32x96xf32, #tpu.memory_space<vmem>>, %arg5: memref<2x32x32xf32, #tpu.memory_space<vmem>>, %arg6: memref<2x1x32xf32, #tpu.memory_space<vmem>>, %arg7: memref<2x1x32xf32, #tpu.memory_space<vmem>>, %arg8: memref<2x1x32xf32, #tpu.memory_space<vmem>>, %arg9: memref<2x32x128xf32, #tpu.memory_space<vmem>>, %arg10: memref<2x1x128xf32, #tpu.memory_space<vmem>>, %arg11: memref<2x128x32xf32, #tpu.memory_space<vmem>>, %arg12: memref<2x1x32xf32, #tpu.memory_space<vmem>>, %arg13: memref<1x32xf32, #tpu.memory_space<vmem>>, %arg14: memref<1x32xf32, #tpu.memory_space<vmem>>, %arg15: memref<32x128xf32, #tpu.memory_space<vmem>>, %arg16: memref<1x128xf32, #tpu.memory_space<vmem>>, %arg17: memref<2x8x128xf32, #tpu.memory_space<vmem>>) attributes {dimension_semantics = [], scalar_prefetch = 0 : i64, scratch_operands = 0 : i64, tpu.core_type = #tpu.core_type<tc>} {
    %c0 = arith.constant 0 : index
    %c0_0 = arith.constant 0 : index
    %c0_1 = arith.constant 0 : index
    %0 = vector.load %arg0[%c0, %c0_0, %c0_1] : memref<2x8x32xf32, #tpu.memory_space<vmem>>, vector<2x8x32xf32>
    %c0_2 = arith.constant 0 : index
    %c0_3 = arith.constant 0 : index
    %1 = vector.load %arg1[%c0_2, %c0_3] : memref<8x32xf32, #tpu.memory_space<vmem>>, vector<8x32xf32>
    %2 = vector.shape_cast %1 : vector<8x32xf32> to vector<1x8x32xf32>
    %3 = vector.broadcast %2 : vector<1x8x32xf32> to vector<2x8x32xf32>
    %4 = arith.addf %0, %3 : vector<2x8x32xf32>
    %5 = vector.shape_cast %4 : vector<2x8x32xf32> to vector<16x32xf32>
    %6 = tpu.iota {dimensions = array<i32: 0>} : vector<8x8xi32>
    %7 = tpu.iota {dimensions = array<i32: 1>} : vector<8x8xi32>
    %8 = arith.cmpi sge, %6, %7 : vector<8x8xi32>
    %cst = arith.constant 0.000000e+00 : f32
    %cst_4 = arith.constant -1.000000e+30 : f32
    %9 = vector.broadcast %cst : f32 to vector<8x8xf32>
    %10 = vector.broadcast %cst_4 : f32 to vector<8x8xf32>
    %11 = arith.select %8, %9, %10 : vector<8x8xi1>, vector<8x8xf32>
    %c0_5 = arith.constant 0 : index
    %c0_6 = arith.constant 0 : index
    %c0_7 = arith.constant 0 : index
    %12 = vector.load %arg2[%c0_5, %c0_6, %c0_7] : memref<2x1x32xf32, #tpu.memory_space<vmem>>, vector<1x1x32xf32>
    %13 = vector.shape_cast %12 : vector<1x1x32xf32> to vector<1x32xf32>
    %c0_8 = arith.constant 0 : index
    %c0_9 = arith.constant 0 : index
    %c0_10 = arith.constant 0 : index
    %14 = vector.load %arg3[%c0_8, %c0_9, %c0_10] : memref<2x1x32xf32, #tpu.memory_space<vmem>>, vector<1x1x32xf32>
    %15 = vector.shape_cast %14 : vector<1x1x32xf32> to vector<1x32xf32>
    %cst_11 = arith.constant dense<0.000000e+00> : vector<16xf32>
    %16 = vector.multi_reduction <add>, %5, %cst_11 [1] : vector<16x32xf32> to vector<16xf32>
    %17 = vector.shape_cast %16 : vector<16xf32> to vector<16x1xf32>
    %cst_12 = arith.constant 3.200000e+01 : f32
    %18 = vector.broadcast %cst_12 : f32 to vector<16x1xf32>
    %19 = arith.divf %17, %18 : vector<16x1xf32>
    %20 = vector.broadcast %19 : vector<16x1xf32> to vector<16x32xf32>
    %21 = arith.subf %5, %20 : vector<16x32xf32>
    %22 = arith.mulf %21, %21 : vector<16x32xf32>
    %cst_13 = arith.constant dense<0.000000e+00> : vector<16xf32>
    %23 = vector.multi_reduction <add>, %22, %cst_13 [1] : vector<16x32xf32> to vector<16xf32>
    %24 = vector.shape_cast %23 : vector<16xf32> to vector<16x1xf32>
    %cst_14 = arith.constant 3.200000e+01 : f32
    %25 = vector.broadcast %cst_14 : f32 to vector<16x1xf32>
    %26 = arith.divf %24, %25 : vector<16x1xf32>
    %27 = vector.broadcast %19 : vector<16x1xf32> to vector<16x32xf32>
    %28 = arith.subf %5, %27 : vector<16x32xf32>
    %cst_15 = arith.constant 9.99999974E-6 : f32
    %29 = vector.broadcast %cst_15 : f32 to vector<16x1xf32>
    %30 = arith.addf %26, %29 : vector<16x1xf32>
    %31 = math.rsqrt %30 : vector<16x1xf32>
    %32 = vector.broadcast %31 : vector<16x1xf32> to vector<16x32xf32>
    %33 = arith.mulf %28, %32 : vector<16x32xf32>
    %34 = vector.broadcast %13 : vector<1x32xf32> to vector<16x32xf32>
    %35 = arith.mulf %33, %34 : vector<16x32xf32>
    %36 = vector.broadcast %15 : vector<1x32xf32> to vector<16x32xf32>
    %37 = arith.addf %35, %36 : vector<16x32xf32>
    %c0_16 = arith.constant 0 : index
    %c0_17 = arith.constant 0 : index
    %c0_18 = arith.constant 0 : index
    %38 = vector.load %arg4[%c0_16, %c0_17, %c0_18] : memref<2x32x96xf32, #tpu.memory_space<vmem>>, vector<1x32x96xf32>
    %39 = vector.shape_cast %38 : vector<1x32x96xf32> to vector<32x96xf32>
    %cst_19 = arith.constant dense<0.000000e+00> : vector<16x96xf32>
    %40 = tpu.matmul %37, %39, %cst_19 {dimension_numbers = #tpu.dot_dimension_numbers<[1], [0], [0], [1], [0, 0, 1, 1], [], []>} : vector<16x32xf32>, vector<32x96xf32>, vector<16x96xf32> -> vector<16x96xf32>
    %41 = vector.shape_cast %40 : vector<16x96xf32> to vector<2x8x96xf32>
    %42 = vector.extract_strided_slice %41 {offsets = [0, 0, 0], sizes = [2, 8, 8], strides = [1, 1, 1]} : vector<2x8x96xf32> to vector<2x8x8xf32>
    %43 = vector.extract_strided_slice %41 {offsets = [0, 0, 8], sizes = [2, 8, 8], strides = [1, 1, 1]} : vector<2x8x96xf32> to vector<2x8x8xf32>
    %44 = vector.extract_strided_slice %41 {offsets = [0, 0, 16], sizes = [2, 8, 8], strides = [1, 1, 1]} : vector<2x8x96xf32> to vector<2x8x8xf32>
    %45 = vector.extract_strided_slice %41 {offsets = [0, 0, 24], sizes = [2, 8, 8], strides = [1, 1, 1]} : vector<2x8x96xf32> to vector<2x8x8xf32>
    %46 = tpu.concatenate %42, %43, %44, %45 in 0 : vector<2x8x8xf32>, vector<2x8x8xf32>, vector<2x8x8xf32>, vector<2x8x8xf32> -> vector<8x8x8xf32>
    %47 = vector.extract_strided_slice %41 {offsets = [0, 0, 32], sizes = [2, 8, 8], strides = [1, 1, 1]} : vector<2x8x96xf32> to vector<2x8x8xf32>
    %48 = vector.extract_strided_slice %41 {offsets = [0, 0, 40], sizes = [2, 8, 8], strides = [1, 1, 1]} : vector<2x8x96xf32> to vector<2x8x8xf32>
    %49 = vector.extract_strided_slice %41 {offsets = [0, 0, 48], sizes = [2, 8, 8], strides = [1, 1, 1]} : vector<2x8x96xf32> to vector<2x8x8xf32>
    %50 = vector.extract_strided_slice %41 {offsets = [0, 0, 56], sizes = [2, 8, 8], strides = [1, 1, 1]} : vector<2x8x96xf32> to vector<2x8x8xf32>
    %51 = tpu.concatenate %47, %48, %49, %50 in 0 : vector<2x8x8xf32>, vector<2x8x8xf32>, vector<2x8x8xf32>, vector<2x8x8xf32> -> vector<8x8x8xf32>
    %52 = vector.extract_strided_slice %41 {offsets = [0, 0, 64], sizes = [2, 8, 8], strides = [1, 1, 1]} : vector<2x8x96xf32> to vector<2x8x8xf32>
    %53 = vector.extract_strided_slice %41 {offsets = [0, 0, 72], sizes = [2, 8, 8], strides = [1, 1, 1]} : vector<2x8x96xf32> to vector<2x8x8xf32>
    %54 = vector.extract_strided_slice %41 {offsets = [0, 0, 80], sizes = [2, 8, 8], strides = [1, 1, 1]} : vector<2x8x96xf32> to vector<2x8x8xf32>
    %55 = vector.extract_strided_slice %41 {offsets = [0, 0, 88], sizes = [2, 8, 8], strides = [1, 1, 1]} : vector<2x8x96xf32> to vector<2x8x8xf32>
    %56 = tpu.concatenate %52, %53, %54, %55 in 0 : vector<2x8x8xf32>, vector<2x8x8xf32>, vector<2x8x8xf32>, vector<2x8x8xf32> -> vector<8x8x8xf32>
    "tpu.trace_start"() <{level = 10 : i32, message = "gqd,gkd->gqk"}> : () -> ()
    %cst_20 = arith.constant dense<0.000000e+00> : vector<8x8x8xf32>
    %57 = tpu.matmul %46, %51, %cst_20 {dimension_numbers = #tpu.dot_dimension_numbers<[2], [2], [1], [1], [0, 0, 0, 1, 1, 1], [0], [0]>} : vector<8x8x8xf32>, vector<8x8x8xf32>, vector<8x8x8xf32> -> vector<8x8x8xf32>
    "tpu.trace_stop"() : () -> ()
    %58 = vector.shape_cast %11 : vector<8x8xf32> to vector<1x8x8xf32>
    %59 = vector.broadcast %58 : vector<1x8x8xf32> to vector<8x8x8xf32>
    %60 = arith.addf %57, %59 : vector<8x8x8xf32>
    %cst_21 = arith.constant dense<0xFF800000> : vector<8x8xf32>
    %61 = vector.multi_reduction <maximumf>, %60, %cst_21 [2] : vector<8x8x8xf32> to vector<8x8xf32>
    %62 = vector.shape_cast %61 : vector<8x8xf32> to vector<8x8x1xf32>
    %63 = vector.broadcast %62 : vector<8x8x1xf32> to vector<8x8x8xf32>
    %64 = arith.subf %60, %63 : vector<8x8x8xf32>
    %65 = math.exp %64 : vector<8x8x8xf32>
    %cst_22 = arith.constant dense<0.000000e+00> : vector<8x8xf32>
    %66 = vector.multi_reduction <add>, %65, %cst_22 [2] : vector<8x8x8xf32> to vector<8x8xf32>
    %67 = vector.shape_cast %66 : vector<8x8xf32> to vector<8x8x1xf32>
    %68 = tpu.reciprocal %67 {approx = true} : vector<8x8x1xf32> -> vector<8x8x1xf32>
    %69 = vector.broadcast %68 : vector<8x8x1xf32> to vector<8x8x8xf32>
    %70 = arith.mulf %65, %69 : vector<8x8x8xf32>
    "tpu.trace_start"() <{level = 10 : i32, message = "gqk,gkd->gqd"}> : () -> ()
    %cst_23 = arith.constant dense<0.000000e+00> : vector<8x8x8xf32>
    %71 = tpu.matmul %70, %56, %cst_23 {dimension_numbers = #tpu.dot_dimension_numbers<[2], [1], [1], [2], [0, 0, 0, 1, 1, 2], [0], [0]>} : vector<8x8x8xf32>, vector<8x8x8xf32>, vector<8x8x8xf32> -> vector<8x8x8xf32>
    "tpu.trace_stop"() : () -> ()
    %72 = vector.extract_strided_slice %71 {offsets = [0, 0, 0], sizes = [2, 8, 8], strides = [1, 1, 1]} : vector<8x8x8xf32> to vector<2x8x8xf32>
    %73 = vector.extract_strided_slice %71 {offsets = [2, 0, 0], sizes = [2, 8, 8], strides = [1, 1, 1]} : vector<8x8x8xf32> to vector<2x8x8xf32>
    %74 = vector.extract_strided_slice %71 {offsets = [4, 0, 0], sizes = [2, 8, 8], strides = [1, 1, 1]} : vector<8x8x8xf32> to vector<2x8x8xf32>
    %75 = vector.extract_strided_slice %71 {offsets = [6, 0, 0], sizes = [2, 8, 8], strides = [1, 1, 1]} : vector<8x8x8xf32> to vector<2x8x8xf32>
    %76 = tpu.concatenate %72, %73, %74, %75 in 2 : vector<2x8x8xf32>, vector<2x8x8xf32>, vector<2x8x8xf32>, vector<2x8x8xf32> -> vector<2x8x32xf32>
    %77 = vector.shape_cast %76 : vector<2x8x32xf32> to vector<16x32xf32>
    %c0_24 = arith.constant 0 : index
    %c0_25 = arith.constant 0 : index
    %c0_26 = arith.constant 0 : index
    %78 = vector.load %arg5[%c0_24, %c0_25, %c0_26] : memref<2x32x32xf32, #tpu.memory_space<vmem>>, vector<1x32x32xf32>
    %79 = vector.shape_cast %78 : vector<1x32x32xf32> to vector<32x32xf32>
    %cst_27 = arith.constant dense<0.000000e+00> : vector<16x32xf32>
    %80 = tpu.matmul %77, %79, %cst_27 {dimension_numbers = #tpu.dot_dimension_numbers<[1], [0], [0], [1], [0, 0, 1, 1], [], []>} : vector<16x32xf32>, vector<32x32xf32>, vector<16x32xf32> -> vector<16x32xf32>
    %81 = arith.addf %5, %80 : vector<16x32xf32>
    %c0_28 = arith.constant 0 : index
    %c0_29 = arith.constant 0 : index
    %c0_30 = arith.constant 0 : index
    %82 = vector.load %arg6[%c0_28, %c0_29, %c0_30] : memref<2x1x32xf32, #tpu.memory_space<vmem>>, vector<1x1x32xf32>
    %83 = vector.shape_cast %82 : vector<1x1x32xf32> to vector<1x32xf32>
    %84 = vector.broadcast %83 : vector<1x32xf32> to vector<16x32xf32>
    %85 = arith.addf %81, %84 : vector<16x32xf32>
    %c0_31 = arith.constant 0 : index
    %c0_32 = arith.constant 0 : index
    %c0_33 = arith.constant 0 : index
    %86 = vector.load %arg7[%c0_31, %c0_32, %c0_33] : memref<2x1x32xf32, #tpu.memory_space<vmem>>, vector<1x1x32xf32>
    %87 = vector.shape_cast %86 : vector<1x1x32xf32> to vector<1x32xf32>
    %c0_34 = arith.constant 0 : index
    %c0_35 = arith.constant 0 : index
    %c0_36 = arith.constant 0 : index
    %88 = vector.load %arg8[%c0_34, %c0_35, %c0_36] : memref<2x1x32xf32, #tpu.memory_space<vmem>>, vector<1x1x32xf32>
    %89 = vector.shape_cast %88 : vector<1x1x32xf32> to vector<1x32xf32>
    %cst_37 = arith.constant dense<0.000000e+00> : vector<16xf32>
    %90 = vector.multi_reduction <add>, %85, %cst_37 [1] : vector<16x32xf32> to vector<16xf32>
    %91 = vector.shape_cast %90 : vector<16xf32> to vector<16x1xf32>
    %cst_38 = arith.constant 3.200000e+01 : f32
    %92 = vector.broadcast %cst_38 : f32 to vector<16x1xf32>
    %93 = arith.divf %91, %92 : vector<16x1xf32>
    %94 = vector.broadcast %93 : vector<16x1xf32> to vector<16x32xf32>
    %95 = arith.subf %85, %94 : vector<16x32xf32>
    %96 = arith.mulf %95, %95 : vector<16x32xf32>
    %cst_39 = arith.constant dense<0.000000e+00> : vector<16xf32>
    %97 = vector.multi_reduction <add>, %96, %cst_39 [1] : vector<16x32xf32> to vector<16xf32>
    %98 = vector.shape_cast %97 : vector<16xf32> to vector<16x1xf32>
    %cst_40 = arith.constant 3.200000e+01 : f32
    %99 = vector.broadcast %cst_40 : f32 to vector<16x1xf32>
    %100 = arith.divf %98, %99 : vector<16x1xf32>
    %101 = vector.broadcast %93 : vector<16x1xf32> to vector<16x32xf32>
    %102 = arith.subf %85, %101 : vector<16x32xf32>
    %cst_41 = arith.constant 9.99999974E-6 : f32
    %103 = vector.broadcast %cst_41 : f32 to vector<16x1xf32>
    %104 = arith.addf %100, %103 : vector<16x1xf32>
    %105 = math.rsqrt %104 : vector<16x1xf32>
    %106 = vector.broadcast %105 : vector<16x1xf32> to vector<16x32xf32>
    %107 = arith.mulf %102, %106 : vector<16x32xf32>
    %108 = vector.broadcast %87 : vector<1x32xf32> to vector<16x32xf32>
    %109 = arith.mulf %107, %108 : vector<16x32xf32>
    %110 = vector.broadcast %89 : vector<1x32xf32> to vector<16x32xf32>
    %111 = arith.addf %109, %110 : vector<16x32xf32>
    %c0_42 = arith.constant 0 : index
    %c0_43 = arith.constant 0 : index
    %c0_44 = arith.constant 0 : index
    %112 = vector.load %arg9[%c0_42, %c0_43, %c0_44] : memref<2x32x128xf32, #tpu.memory_space<vmem>>, vector<1x32x128xf32>
    %113 = vector.shape_cast %112 : vector<1x32x128xf32> to vector<32x128xf32>
    %cst_45 = arith.constant dense<0.000000e+00> : vector<16x128xf32>
    %114 = tpu.matmul %111, %113, %cst_45 {dimension_numbers = #tpu.dot_dimension_numbers<[1], [0], [0], [1], [0, 0, 1, 1], [], []>} : vector<16x32xf32>, vector<32x128xf32>, vector<16x128xf32> -> vector<16x128xf32>
    %c0_46 = arith.constant 0 : index
    %c0_47 = arith.constant 0 : index
    %c0_48 = arith.constant 0 : index
    %115 = vector.load %arg10[%c0_46, %c0_47, %c0_48] : memref<2x1x128xf32, #tpu.memory_space<vmem>>, vector<1x1x128xf32>
    %116 = vector.shape_cast %115 : vector<1x1x128xf32> to vector<1x128xf32>
    %117 = vector.broadcast %116 : vector<1x128xf32> to vector<16x128xf32>
    %118 = arith.addf %114, %117 : vector<16x128xf32>
    %cst_49 = arith.constant 0.000000e+00 : f32
    %119 = vector.broadcast %cst_49 : f32 to vector<16x128xf32>
    %120 = arith.maximumf %118, %119 : vector<16x128xf32>
    %c0_50 = arith.constant 0 : index
    %c0_51 = arith.constant 0 : index
    %c0_52 = arith.constant 0 : index
    %121 = vector.load %arg11[%c0_50, %c0_51, %c0_52] : memref<2x128x32xf32, #tpu.memory_space<vmem>>, vector<1x128x32xf32>
    %122 = vector.shape_cast %121 : vector<1x128x32xf32> to vector<128x32xf32>
    %cst_53 = arith.constant dense<0.000000e+00> : vector<16x32xf32>
    %123 = tpu.matmul %120, %122, %cst_53 {dimension_numbers = #tpu.dot_dimension_numbers<[1], [0], [0], [1], [0, 0, 1, 1], [], []>} : vector<16x128xf32>, vector<128x32xf32>, vector<16x32xf32> -> vector<16x32xf32>
    %124 = arith.addf %85, %123 : vector<16x32xf32>
    %c0_54 = arith.constant 0 : index
    %c0_55 = arith.constant 0 : index
    %c0_56 = arith.constant 0 : index
    %125 = vector.load %arg12[%c0_54, %c0_55, %c0_56] : memref<2x1x32xf32, #tpu.memory_space<vmem>>, vector<1x1x32xf32>
    %126 = vector.shape_cast %125 : vector<1x1x32xf32> to vector<1x32xf32>
    %127 = vector.broadcast %126 : vector<1x32xf32> to vector<16x32xf32>
    %128 = arith.addf %124, %127 : vector<16x32xf32>
    %c1 = arith.constant 1 : index
    %c0_57 = arith.constant 0 : index
    %c0_58 = arith.constant 0 : index
    %129 = vector.load %arg2[%c1, %c0_57, %c0_58] : memref<2x1x32xf32, #tpu.memory_space<vmem>>, vector<1x1x32xf32>
    %130 = vector.shape_cast %129 : vector<1x1x32xf32> to vector<1x32xf32>
    %c1_59 = arith.constant 1 : index
    %c0_60 = arith.constant 0 : index
    %c0_61 = arith.constant 0 : index
    %131 = vector.load %arg3[%c1_59, %c0_60, %c0_61] : memref<2x1x32xf32, #tpu.memory_space<vmem>>, vector<1x1x32xf32>
    %132 = vector.shape_cast %131 : vector<1x1x32xf32> to vector<1x32xf32>
    %cst_62 = arith.constant dense<0.000000e+00> : vector<16xf32>
    %133 = vector.multi_reduction <add>, %128, %cst_62 [1] : vector<16x32xf32> to vector<16xf32>
    %134 = vector.shape_cast %133 : vector<16xf32> to vector<16x1xf32>
    %cst_63 = arith.constant 3.200000e+01 : f32
    %135 = vector.broadcast %cst_63 : f32 to vector<16x1xf32>
    %136 = arith.divf %134, %135 : vector<16x1xf32>
    %137 = vector.broadcast %136 : vector<16x1xf32> to vector<16x32xf32>
    %138 = arith.subf %128, %137 : vector<16x32xf32>
    %139 = arith.mulf %138, %138 : vector<16x32xf32>
    %cst_64 = arith.constant dense<0.000000e+00> : vector<16xf32>
    %140 = vector.multi_reduction <add>, %139, %cst_64 [1] : vector<16x32xf32> to vector<16xf32>
    %141 = vector.shape_cast %140 : vector<16xf32> to vector<16x1xf32>
    %cst_65 = arith.constant 3.200000e+01 : f32
    %142 = vector.broadcast %cst_65 : f32 to vector<16x1xf32>
    %143 = arith.divf %141, %142 : vector<16x1xf32>
    %144 = vector.broadcast %136 : vector<16x1xf32> to vector<16x32xf32>
    %145 = arith.subf %128, %144 : vector<16x32xf32>
    %cst_66 = arith.constant 9.99999974E-6 : f32
    %146 = vector.broadcast %cst_66 : f32 to vector<16x1xf32>
    %147 = arith.addf %143, %146 : vector<16x1xf32>
    %148 = math.rsqrt %147 : vector<16x1xf32>
    %149 = vector.broadcast %148 : vector<16x1xf32> to vector<16x32xf32>
    %150 = arith.mulf %145, %149 : vector<16x32xf32>
    %151 = vector.broadcast %130 : vector<1x32xf32> to vector<16x32xf32>
    %152 = arith.mulf %150, %151 : vector<16x32xf32>
    %153 = vector.broadcast %132 : vector<1x32xf32> to vector<16x32xf32>
    %154 = arith.addf %152, %153 : vector<16x32xf32>
    %c1_67 = arith.constant 1 : index
    %c0_68 = arith.constant 0 : index
    %c0_69 = arith.constant 0 : index
    %155 = vector.load %arg4[%c1_67, %c0_68, %c0_69] : memref<2x32x96xf32, #tpu.memory_space<vmem>>, vector<1x32x96xf32>
    %156 = vector.shape_cast %155 : vector<1x32x96xf32> to vector<32x96xf32>
    %cst_70 = arith.constant dense<0.000000e+00> : vector<16x96xf32>
    %157 = tpu.matmul %154, %156, %cst_70 {dimension_numbers = #tpu.dot_dimension_numbers<[1], [0], [0], [1], [0, 0, 1, 1], [], []>} : vector<16x32xf32>, vector<32x96xf32>, vector<16x96xf32> -> vector<16x96xf32>
    %158 = vector.shape_cast %157 : vector<16x96xf32> to vector<2x8x96xf32>
    %159 = vector.extract_strided_slice %158 {offsets = [0, 0, 0], sizes = [2, 8, 8], strides = [1, 1, 1]} : vector<2x8x96xf32> to vector<2x8x8xf32>
    %160 = vector.extract_strided_slice %158 {offsets = [0, 0, 8], sizes = [2, 8, 8], strides = [1, 1, 1]} : vector<2x8x96xf32> to vector<2x8x8xf32>
    %161 = vector.extract_strided_slice %158 {offsets = [0, 0, 16], sizes = [2, 8, 8], strides = [1, 1, 1]} : vector<2x8x96xf32> to vector<2x8x8xf32>
    %162 = vector.extract_strided_slice %158 {offsets = [0, 0, 24], sizes = [2, 8, 8], strides = [1, 1, 1]} : vector<2x8x96xf32> to vector<2x8x8xf32>
    %163 = tpu.concatenate %159, %160, %161, %162 in 0 : vector<2x8x8xf32>, vector<2x8x8xf32>, vector<2x8x8xf32>, vector<2x8x8xf32> -> vector<8x8x8xf32>
    %164 = vector.extract_strided_slice %158 {offsets = [0, 0, 32], sizes = [2, 8, 8], strides = [1, 1, 1]} : vector<2x8x96xf32> to vector<2x8x8xf32>
    %165 = vector.extract_strided_slice %158 {offsets = [0, 0, 40], sizes = [2, 8, 8], strides = [1, 1, 1]} : vector<2x8x96xf32> to vector<2x8x8xf32>
    %166 = vector.extract_strided_slice %158 {offsets = [0, 0, 48], sizes = [2, 8, 8], strides = [1, 1, 1]} : vector<2x8x96xf32> to vector<2x8x8xf32>
    %167 = vector.extract_strided_slice %158 {offsets = [0, 0, 56], sizes = [2, 8, 8], strides = [1, 1, 1]} : vector<2x8x96xf32> to vector<2x8x8xf32>
    %168 = tpu.concatenate %164, %165, %166, %167 in 0 : vector<2x8x8xf32>, vector<2x8x8xf32>, vector<2x8x8xf32>, vector<2x8x8xf32> -> vector<8x8x8xf32>
    %169 = vector.extract_strided_slice %158 {offsets = [0, 0, 64], sizes = [2, 8, 8], strides = [1, 1, 1]} : vector<2x8x96xf32> to vector<2x8x8xf32>
    %170 = vector.extract_strided_slice %158 {offsets = [0, 0, 72], sizes = [2, 8, 8], strides = [1, 1, 1]} : vector<2x8x96xf32> to vector<2x8x8xf32>
    %171 = vector.extract_strided_slice %158 {offsets = [0, 0, 80], sizes = [2, 8, 8], strides = [1, 1, 1]} : vector<2x8x96xf32> to vector<2x8x8xf32>
    %172 = vector.extract_strided_slice %158 {offsets = [0, 0, 88], sizes = [2, 8, 8], strides = [1, 1, 1]} : vector<2x8x96xf32> to vector<2x8x8xf32>
    %173 = tpu.concatenate %169, %170, %171, %172 in 0 : vector<2x8x8xf32>, vector<2x8x8xf32>, vector<2x8x8xf32>, vector<2x8x8xf32> -> vector<8x8x8xf32>
    "tpu.trace_start"() <{level = 10 : i32, message = "gqd,gkd->gqk"}> : () -> ()
    %cst_71 = arith.constant dense<0.000000e+00> : vector<8x8x8xf32>
    %174 = tpu.matmul %163, %168, %cst_71 {dimension_numbers = #tpu.dot_dimension_numbers<[2], [2], [1], [1], [0, 0, 0, 1, 1, 1], [0], [0]>} : vector<8x8x8xf32>, vector<8x8x8xf32>, vector<8x8x8xf32> -> vector<8x8x8xf32>
    "tpu.trace_stop"() : () -> ()
    %175 = vector.shape_cast %11 : vector<8x8xf32> to vector<1x8x8xf32>
    %176 = vector.broadcast %175 : vector<1x8x8xf32> to vector<8x8x8xf32>
    %177 = arith.addf %174, %176 : vector<8x8x8xf32>
    %cst_72 = arith.constant dense<0xFF800000> : vector<8x8xf32>
    %178 = vector.multi_reduction <maximumf>, %177, %cst_72 [2] : vector<8x8x8xf32> to vector<8x8xf32>
    %179 = vector.shape_cast %178 : vector<8x8xf32> to vector<8x8x1xf32>
    %180 = vector.broadcast %179 : vector<8x8x1xf32> to vector<8x8x8xf32>
    %181 = arith.subf %177, %180 : vector<8x8x8xf32>
    %182 = math.exp %181 : vector<8x8x8xf32>
    %cst_73 = arith.constant dense<0.000000e+00> : vector<8x8xf32>
    %183 = vector.multi_reduction <add>, %182, %cst_73 [2] : vector<8x8x8xf32> to vector<8x8xf32>
    %184 = vector.shape_cast %183 : vector<8x8xf32> to vector<8x8x1xf32>
    %185 = tpu.reciprocal %184 {approx = true} : vector<8x8x1xf32> -> vector<8x8x1xf32>
    %186 = vector.broadcast %185 : vector<8x8x1xf32> to vector<8x8x8xf32>
    %187 = arith.mulf %182, %186 : vector<8x8x8xf32>
    "tpu.trace_start"() <{level = 10 : i32, message = "gqk,gkd->gqd"}> : () -> ()
    %cst_74 = arith.constant dense<0.000000e+00> : vector<8x8x8xf32>
    %188 = tpu.matmul %187, %173, %cst_74 {dimension_numbers = #tpu.dot_dimension_numbers<[2], [1], [1], [2], [0, 0, 0, 1, 1, 2], [0], [0]>} : vector<8x8x8xf32>, vector<8x8x8xf32>, vector<8x8x8xf32> -> vector<8x8x8xf32>
    "tpu.trace_stop"() : () -> ()
    %189 = vector.extract_strided_slice %188 {offsets = [0, 0, 0], sizes = [2, 8, 8], strides = [1, 1, 1]} : vector<8x8x8xf32> to vector<2x8x8xf32>
    %190 = vector.extract_strided_slice %188 {offsets = [2, 0, 0], sizes = [2, 8, 8], strides = [1, 1, 1]} : vector<8x8x8xf32> to vector<2x8x8xf32>
    %191 = vector.extract_strided_slice %188 {offsets = [4, 0, 0], sizes = [2, 8, 8], strides = [1, 1, 1]} : vector<8x8x8xf32> to vector<2x8x8xf32>
    %192 = vector.extract_strided_slice %188 {offsets = [6, 0, 0], sizes = [2, 8, 8], strides = [1, 1, 1]} : vector<8x8x8xf32> to vector<2x8x8xf32>
    %193 = tpu.concatenate %189, %190, %191, %192 in 2 : vector<2x8x8xf32>, vector<2x8x8xf32>, vector<2x8x8xf32>, vector<2x8x8xf32> -> vector<2x8x32xf32>
    %194 = vector.shape_cast %193 : vector<2x8x32xf32> to vector<16x32xf32>
    %c1_75 = arith.constant 1 : index
    %c0_76 = arith.constant 0 : index
    %c0_77 = arith.constant 0 : index
    %195 = vector.load %arg5[%c1_75, %c0_76, %c0_77] : memref<2x32x32xf32, #tpu.memory_space<vmem>>, vector<1x32x32xf32>
    %196 = vector.shape_cast %195 : vector<1x32x32xf32> to vector<32x32xf32>
    %cst_78 = arith.constant dense<0.000000e+00> : vector<16x32xf32>
    %197 = tpu.matmul %194, %196, %cst_78 {dimension_numbers = #tpu.dot_dimension_numbers<[1], [0], [0], [1], [0, 0, 1, 1], [], []>} : vector<16x32xf32>, vector<32x32xf32>, vector<16x32xf32> -> vector<16x32xf32>
    %198 = arith.addf %128, %197 : vector<16x32xf32>
    %c1_79 = arith.constant 1 : index
    %c0_80 = arith.constant 0 : index
    %c0_81 = arith.constant 0 : index
    %199 = vector.load %arg6[%c1_79, %c0_80, %c0_81] : memref<2x1x32xf32, #tpu.memory_space<vmem>>, vector<1x1x32xf32>
    %200 = vector.shape_cast %199 : vector<1x1x32xf32> to vector<1x32xf32>
    %201 = vector.broadcast %200 : vector<1x32xf32> to vector<16x32xf32>
    %202 = arith.addf %198, %201 : vector<16x32xf32>
    %c1_82 = arith.constant 1 : index
    %c0_83 = arith.constant 0 : index
    %c0_84 = arith.constant 0 : index
    %203 = vector.load %arg7[%c1_82, %c0_83, %c0_84] : memref<2x1x32xf32, #tpu.memory_space<vmem>>, vector<1x1x32xf32>
    %204 = vector.shape_cast %203 : vector<1x1x32xf32> to vector<1x32xf32>
    %c1_85 = arith.constant 1 : index
    %c0_86 = arith.constant 0 : index
    %c0_87 = arith.constant 0 : index
    %205 = vector.load %arg8[%c1_85, %c0_86, %c0_87] : memref<2x1x32xf32, #tpu.memory_space<vmem>>, vector<1x1x32xf32>
    %206 = vector.shape_cast %205 : vector<1x1x32xf32> to vector<1x32xf32>
    %cst_88 = arith.constant dense<0.000000e+00> : vector<16xf32>
    %207 = vector.multi_reduction <add>, %202, %cst_88 [1] : vector<16x32xf32> to vector<16xf32>
    %208 = vector.shape_cast %207 : vector<16xf32> to vector<16x1xf32>
    %cst_89 = arith.constant 3.200000e+01 : f32
    %209 = vector.broadcast %cst_89 : f32 to vector<16x1xf32>
    %210 = arith.divf %208, %209 : vector<16x1xf32>
    %211 = vector.broadcast %210 : vector<16x1xf32> to vector<16x32xf32>
    %212 = arith.subf %202, %211 : vector<16x32xf32>
    %213 = arith.mulf %212, %212 : vector<16x32xf32>
    %cst_90 = arith.constant dense<0.000000e+00> : vector<16xf32>
    %214 = vector.multi_reduction <add>, %213, %cst_90 [1] : vector<16x32xf32> to vector<16xf32>
    %215 = vector.shape_cast %214 : vector<16xf32> to vector<16x1xf32>
    %cst_91 = arith.constant 3.200000e+01 : f32
    %216 = vector.broadcast %cst_91 : f32 to vector<16x1xf32>
    %217 = arith.divf %215, %216 : vector<16x1xf32>
    %218 = vector.broadcast %210 : vector<16x1xf32> to vector<16x32xf32>
    %219 = arith.subf %202, %218 : vector<16x32xf32>
    %cst_92 = arith.constant 9.99999974E-6 : f32
    %220 = vector.broadcast %cst_92 : f32 to vector<16x1xf32>
    %221 = arith.addf %217, %220 : vector<16x1xf32>
    %222 = math.rsqrt %221 : vector<16x1xf32>
    %223 = vector.broadcast %222 : vector<16x1xf32> to vector<16x32xf32>
    %224 = arith.mulf %219, %223 : vector<16x32xf32>
    %225 = vector.broadcast %204 : vector<1x32xf32> to vector<16x32xf32>
    %226 = arith.mulf %224, %225 : vector<16x32xf32>
    %227 = vector.broadcast %206 : vector<1x32xf32> to vector<16x32xf32>
    %228 = arith.addf %226, %227 : vector<16x32xf32>
    %c1_93 = arith.constant 1 : index
    %c0_94 = arith.constant 0 : index
    %c0_95 = arith.constant 0 : index
    %229 = vector.load %arg9[%c1_93, %c0_94, %c0_95] : memref<2x32x128xf32, #tpu.memory_space<vmem>>, vector<1x32x128xf32>
    %230 = vector.shape_cast %229 : vector<1x32x128xf32> to vector<32x128xf32>
    %cst_96 = arith.constant dense<0.000000e+00> : vector<16x128xf32>
    %231 = tpu.matmul %228, %230, %cst_96 {dimension_numbers = #tpu.dot_dimension_numbers<[1], [0], [0], [1], [0, 0, 1, 1], [], []>} : vector<16x32xf32>, vector<32x128xf32>, vector<16x128xf32> -> vector<16x128xf32>
    %c1_97 = arith.constant 1 : index
    %c0_98 = arith.constant 0 : index
    %c0_99 = arith.constant 0 : index
    %232 = vector.load %arg10[%c1_97, %c0_98, %c0_99] : memref<2x1x128xf32, #tpu.memory_space<vmem>>, vector<1x1x128xf32>
    %233 = vector.shape_cast %232 : vector<1x1x128xf32> to vector<1x128xf32>
    %234 = vector.broadcast %233 : vector<1x128xf32> to vector<16x128xf32>
    %235 = arith.addf %231, %234 : vector<16x128xf32>
    %cst_100 = arith.constant 0.000000e+00 : f32
    %236 = vector.broadcast %cst_100 : f32 to vector<16x128xf32>
    %237 = arith.maximumf %235, %236 : vector<16x128xf32>
    %c1_101 = arith.constant 1 : index
    %c0_102 = arith.constant 0 : index
    %c0_103 = arith.constant 0 : index
    %238 = vector.load %arg11[%c1_101, %c0_102, %c0_103] : memref<2x128x32xf32, #tpu.memory_space<vmem>>, vector<1x128x32xf32>
    %239 = vector.shape_cast %238 : vector<1x128x32xf32> to vector<128x32xf32>
    %cst_104 = arith.constant dense<0.000000e+00> : vector<16x32xf32>
    %240 = tpu.matmul %237, %239, %cst_104 {dimension_numbers = #tpu.dot_dimension_numbers<[1], [0], [0], [1], [0, 0, 1, 1], [], []>} : vector<16x128xf32>, vector<128x32xf32>, vector<16x32xf32> -> vector<16x32xf32>
    %241 = arith.addf %202, %240 : vector<16x32xf32>
    %c1_105 = arith.constant 1 : index
    %c0_106 = arith.constant 0 : index
    %c0_107 = arith.constant 0 : index
    %242 = vector.load %arg12[%c1_105, %c0_106, %c0_107] : memref<2x1x32xf32, #tpu.memory_space<vmem>>, vector<1x1x32xf32>
    %243 = vector.shape_cast %242 : vector<1x1x32xf32> to vector<1x32xf32>
    %244 = vector.broadcast %243 : vector<1x32xf32> to vector<16x32xf32>
    %245 = arith.addf %241, %244 : vector<16x32xf32>
    %c0_108 = arith.constant 0 : index
    %c0_109 = arith.constant 0 : index
    %246 = vector.load %arg13[%c0_108, %c0_109] : memref<1x32xf32, #tpu.memory_space<vmem>>, vector<1x32xf32>
    %c0_110 = arith.constant 0 : index
    %c0_111 = arith.constant 0 : index
    %247 = vector.load %arg14[%c0_110, %c0_111] : memref<1x32xf32, #tpu.memory_space<vmem>>, vector<1x32xf32>
    %cst_112 = arith.constant dense<0.000000e+00> : vector<16xf32>
    %248 = vector.multi_reduction <add>, %245, %cst_112 [1] : vector<16x32xf32> to vector<16xf32>
    %249 = vector.shape_cast %248 : vector<16xf32> to vector<16x1xf32>
    %cst_113 = arith.constant 3.200000e+01 : f32
    %250 = vector.broadcast %cst_113 : f32 to vector<16x1xf32>
    %251 = arith.divf %249, %250 : vector<16x1xf32>
    %252 = vector.broadcast %251 : vector<16x1xf32> to vector<16x32xf32>
    %253 = arith.subf %245, %252 : vector<16x32xf32>
    %254 = arith.mulf %253, %253 : vector<16x32xf32>
    %cst_114 = arith.constant dense<0.000000e+00> : vector<16xf32>
    %255 = vector.multi_reduction <add>, %254, %cst_114 [1] : vector<16x32xf32> to vector<16xf32>
    %256 = vector.shape_cast %255 : vector<16xf32> to vector<16x1xf32>
    %cst_115 = arith.constant 3.200000e+01 : f32
    %257 = vector.broadcast %cst_115 : f32 to vector<16x1xf32>
    %258 = arith.divf %256, %257 : vector<16x1xf32>
    %259 = vector.broadcast %251 : vector<16x1xf32> to vector<16x32xf32>
    %260 = arith.subf %245, %259 : vector<16x32xf32>
    %cst_116 = arith.constant 9.99999974E-6 : f32
    %261 = vector.broadcast %cst_116 : f32 to vector<16x1xf32>
    %262 = arith.addf %258, %261 : vector<16x1xf32>
    %263 = math.rsqrt %262 : vector<16x1xf32>
    %264 = vector.broadcast %263 : vector<16x1xf32> to vector<16x32xf32>
    %265 = arith.mulf %260, %264 : vector<16x32xf32>
    %266 = vector.broadcast %246 : vector<1x32xf32> to vector<16x32xf32>
    %267 = arith.mulf %265, %266 : vector<16x32xf32>
    %268 = vector.broadcast %247 : vector<1x32xf32> to vector<16x32xf32>
    %269 = arith.addf %267, %268 : vector<16x32xf32>
    %c0_117 = arith.constant 0 : index
    %c0_118 = arith.constant 0 : index
    %270 = vector.load %arg15[%c0_117, %c0_118] : memref<32x128xf32, #tpu.memory_space<vmem>>, vector<32x128xf32>
    %cst_119 = arith.constant dense<0.000000e+00> : vector<16x128xf32>
    %271 = tpu.matmul %269, %270, %cst_119 {dimension_numbers = #tpu.dot_dimension_numbers<[1], [0], [0], [1], [0, 0, 1, 1], [], []>} : vector<16x32xf32>, vector<32x128xf32>, vector<16x128xf32> -> vector<16x128xf32>
    %c0_120 = arith.constant 0 : index
    %c0_121 = arith.constant 0 : index
    %272 = vector.load %arg16[%c0_120, %c0_121] : memref<1x128xf32, #tpu.memory_space<vmem>>, vector<1x128xf32>
    %273 = vector.broadcast %272 : vector<1x128xf32> to vector<16x128xf32>
    %274 = arith.addf %271, %273 : vector<16x128xf32>
    %275 = vector.shape_cast %274 : vector<16x128xf32> to vector<2x8x128xf32>
    %c0_122 = arith.constant 0 : index
    %c0_123 = arith.constant 0 : index
    %c0_124 = arith.constant 0 : index
    %276 = vector.load %arg17[%c0_122, %c0_123, %c0_124] : memref<2x8x128xf32, #tpu.memory_space<vmem>>, vector<2x8x128xf32>
    tpu.vector_store %arg17[%c0_122, %c0_123, %c0_124], %275 {strides = array<i32>} : memref<2x8x128xf32, #tpu.memory_space<vmem>>, vector<2x8x128xf32>,
    return
  }
}

</mosaic_0001>

<llo_original>
// kernel: gpt_forward.1
$region0: #{gpt_forward.1}
  #allocation0 [shape = 'u32[]', space=smem, size = 0x4, offset = 0x4, fixed_abs, tag = 'smem constant byte address 0x4 - core index']
  #allocation1 [shape = 'u32[144,128]{1,0:T(1,128)}', space=vmem, size = 0x12000, scoped, tag = 'internal scratch']
  %s0 = inlined_call_operand.vmem [shape: f32[2,8,32], index: 0, kind: input, shape index: {}]
  %s1 = inlined_call_operand.vmem [shape: f32[8,32], index: 1, kind: input, shape index: {}]
  %s2 = inlined_call_operand.vmem [shape: f32[2,1,32], index: 2, kind: input, shape index: {}]
  %s3 = inlined_call_operand.vmem [shape: f32[2,1,32], index: 3, kind: input, shape index: {}]
  %s4 = inlined_call_operand.vmem [shape: f32[2,32,96], index: 4, kind: input, shape index: {}]
  %s5 = inlined_call_operand.vmem [shape: f32[2,32,32], index: 5, kind: input, shape index: {}]
  %s6 = inlined_call_operand.vmem [shape: f32[2,1,32], index: 6, kind: input, shape index: {}]
  %s7 = inlined_call_operand.vmem [shape: f32[2,1,32], index: 7, kind: input, shape index: {}]
  %s8 = inlined_call_operand.vmem [shape: f32[2,1,32], index: 8, kind: input, shape index: {}]
  %s9 = inlined_call_operand.vmem [shape: f32[2,32,128], index: 9, kind: input, shape index: {}]
  %s10 = inlined_call_operand.vmem [shape: f32[2,1,128], index: 10, kind: input, shape index: {}]
  %s11 = inlined_call_operand.vmem [shape: f32[2,128,32], index: 11, kind: input, shape index: {}]
  %s12 = inlined_call_operand.vmem [shape: f32[2,1,32], index: 12, kind: input, shape index: {}]
  %s13 = inlined_call_operand.vmem [shape: f32[1,32], index: 13, kind: input, shape index: {}]
  %s14 = inlined_call_operand.vmem [shape: f32[1,32], index: 14, kind: input, shape index: {}]
  %s15 = inlined_call_operand.vmem [shape: f32[32,128], index: 15, kind: input, shape index: {}]
  %s16 = inlined_call_operand.vmem [shape: f32[1,128], index: 16, kind: input, shape index: {}]
  %s17 = inlined_call_operand.hbm [shape: f32[2,8,128], index: 17, kind: output, shape index: {}]
  %s18 = sld [smem:[#allocation0]]
  $region78: #{gpt_forward.1} parent=0
    _
  %s20 = ssub.s32 1, %s18
  %s21 = scalar_select 0, %s20, %s18
  $region1: #{gpt_forward.1} parent=0
    #allocation2 [shape = 'u8[8192]{0}', space=vmem, size = 0x2000, scoped, tag = 'output window, operand 0, single buffered']
    #allocation3 [shape = 's32[1]{0}', space=sflag, size = 0x4, scoped, tag = 'scoped memory for gpt_forward.1']
    %22 = vsyncpa [#allocation3], 0
    // Predicated region
    $region2: #{gpt_forward.1} parent=1 // pred_check
      _
    $region3: #{gpt_forward.1} parent=1 // pred_check_branch
      %24 = sbr.rel (0) target = $region5
    $region4: #{gpt_forward.1} parent=1 // pred_region
      _
    $region5: #{gpt_forward.1} parent=1 // pred_fallthru
      _
    // Predicated region
    $region6: #{gpt_forward.1} parent=1 // pred_check
      _
    $region7: #{gpt_forward.1} parent=1 // pred_check_branch
      %26 = sbr.rel (0) target = $region9
    $region8: #{gpt_forward.1} parent=1 // pred_region
      _
    $region9: #{gpt_forward.1} parent=1 // pred_fallthru
      _
    // Predicated region
    $region10: #{gpt_forward.1} parent=1 // pred_check
      _
    $region11: #{gpt_forward.1} parent=1 // pred_check_branch
      %28 = sbr.rel (0) target = $region13
    $region12: #{gpt_forward.1} parent=1 // pred_region
      _
    $region13: #{gpt_forward.1} parent=1 // pred_fallthru
      _
    // Predicated region
    $region14: #{gpt_forward.1} parent=1 // pred_check
      _
    $region15: #{gpt_forward.1} parent=1 // pred_check_branch
      %30 = sbr.rel (0) target = $region17
    $region16: #{gpt_forward.1} parent=1 // pred_region
      _
    $region17: #{gpt_forward.1} parent=1 // pred_fallthru
      _
    // Predicated region
    $region18: #{gpt_forward.1} parent=1 // pred_check
      _
    $region19: #{gpt_forward.1} parent=1 // pred_check_branch
      %32 = sbr.rel (0) target = $region21
    $region20: #{gpt_forward.1} parent=1 // pred_region
      _
    $region21: #{gpt_forward.1} parent=1 // pred_fallthru
      _
    // Predicated region
    $region22: #{gpt_forward.1} parent=1 // pred_check
      _
    $region23: #{gpt_forward.1} parent=1 // pred_check_branch
      %34 = sbr.rel (0) target = $region25
    $region24: #{gpt_forward.1} parent=1 // pred_region
      _
    $region25: #{gpt_forward.1} parent=1 // pred_fallthru
      _
    // Predicated region
    $region26: #{gpt_forward.1} parent=1 // pred_check
      _
    $region27: #{gpt_forward.1} parent=1 // pred_check_branch
      %36 = sbr.rel (0) target = $region29
    $region28: #{gpt_forward.1} parent=1 // pred_region
      _
    $region29: #{gpt_forward.1} parent=1 // pred_fallthru
      _
    // Predicated region
    $region30: #{gpt_forward.1} parent=1 // pred_check
      _
    $region31: #{gpt_forward.1} parent=1 // pred_check_branch
      %38 = sbr.rel (0) target = $region33
    $region32: #{gpt_forward.1} parent=1 // pred_region
      _
    $region33: #{gpt_forward.1} parent=1 // pred_fallthru
      _
    // Predicated region
    $region34: #{gpt_forward.1} parent=1 // pred_check
      _
    $region35: #{gpt_forward.1} parent=1 // pred_check_branch
      %40 = sbr.rel (0) target = $region37
    $region36: #{gpt_forward.1} parent=1 // pred_region
      _
    $region37: #{gpt_forward.1} parent=1 // pred_fallthru
      _
    // Predicated region
    $region38: #{gpt_forward.1} parent=1 // pred_check
      _
    $region39: #{gpt_forward.1} parent=1 // pred_check_branch
      %42 = sbr.rel (0) target = $region41
    $region40: #{gpt_forward.1} parent=1 // pred_region
      _
    $region41: #{gpt_forward.1} parent=1 // pred_fallthru
      _
    // Predicated region
    $region42: #{gpt_forward.1} parent=1 // pred_check
      _
    $region43: #{gpt_forward.1} parent=1 // pred_check_branch
      %44 = sbr.rel (0) target = $region45
    $region44: #{gpt_forward.1} parent=1 // pred_region
      _
    $region45: #{gpt_forward.1} parent=1 // pred_fallthru
      _
    // Predicated region
    $region46: #{gpt_forward.1} parent=1 // pred_check
      _
    $region47: #{gpt_forward.1} parent=1 // pred_check_branch
      %46 = sbr.rel (0) target = $region49
    $region48: #{gpt_forward.1} parent=1 // pred_region
      _
    $region49: #{gpt_forward.1} parent=1 // pred_fallthru
      _
    // Predicated region
    $region50: #{gpt_forward.1} parent=1 // pred_check
      _
    $region51: #{gpt_forward.1} parent=1 // pred_check_branch
      %48 = sbr.rel (0) target = $region53
    $region52: #{gpt_forward.1} parent=1 // pred_region
      _
    $region53: #{gpt_forward.1} parent=1 // pred_fallthru
      _
    // Predicated region
    $region54: #{gpt_forward.1} parent=1 // pred_check
      _
    $region55: #{gpt_forward.1} parent=1 // pred_check_branch
      %50 = sbr.rel (0) target = $region57
    $region56: #{gpt_forward.1} parent=1 // pred_region
      _
    $region57: #{gpt_forward.1} parent=1 // pred_fallthru
      _
    // Predicated region
    $region58: #{gpt_forward.1} parent=1 // pred_check
      _
    $region59: #{gpt_forward.1} parent=1 // pred_check_branch
      %52 = sbr.rel (0) target = $region61
    $region60: #{gpt_forward.1} parent=1 // pred_region
      _
    $region61: #{gpt_forward.1} parent=1 // pred_fallthru
      _
    // Predicated region
    $region62: #{gpt_forward.1} parent=1 // pred_check
      _
    $region63: #{gpt_forward.1} parent=1 // pred_check_branch
      %54 = sbr.rel (0) target = $region65
    $region64: #{gpt_forward.1} parent=1 // pred_region
      _
    $region65: #{gpt_forward.1} parent=1 // pred_fallthru
      _
    // Predicated region
    $region66: #{gpt_forward.1} parent=1 // pred_check
      _
    $region67: #{gpt_forward.1} parent=1 // pred_check_branch
      %56 = sbr.rel (0) target = $region69
    $region68: #{gpt_forward.1} parent=1 // pred_region
      _
    $region69: #{gpt_forward.1} parent=1 // pred_fallthru
      _
    %v57 = vld [vmem:[%s0] sm:$0xff]
    %v58 = vld [vmem:[%s0 + $0x8] sm:$0xff]
    %v59 = vld [vmem:[%s1] sm:$0xff]
    %v60 = vadd.f32 %v57, %v59
    %v61 = vadd.f32 %v58, %v59
    %v62 = vlaneseq
    %v63 = vshrl.u32 %v62, 7
    %v64 = vlaneseq
    %v65 = vand.u32 %v64, 127
    %vm66 = vcmp.ge.s32.totalorder %v63, %v65
    %v67 = vsel %vm66, 0.0, -1e+30
    %v68 = vld [vmem:[%s2] sm:$0x1]
    %v69 = vld [vmem:[%s3] sm:$0x1]
    %vm70 = vcmask 261120
    %v71 = vsel %vm70, %v60, 0.0
    %72 = vadd.xlane.f32.xlu0 %v71
    %v73 = vpop.xlane.xlu0 %72
    %v74 = vsel %vm70, %v61, 0.0
    %75 = vadd.xlane.f32.xlu0 %v74
    %v76 = vpop.xlane.xlu0 %75
    %v77 = vrcp.pop 32.0
    %v78 = vmul.f32 %v73, %v77
    %v79 = vmul.f32 %v76, %v77
    %v80 = vsub.f32 %v60, %v78
    %v81 = vsub.f32 %v61, %v79
    %v82 = vmul.f32 %v80, %v80
    %v83 = vmul.f32 %v81, %v81
    %v84 = vsel %vm70, %v82, 0.0
    %85 = vadd.xlane.f32.xlu0 %v84
    %v86 = vpop.xlane.xlu0 %85
    %v87 = vsel %vm70, %v83, 0.0
    %88 = vadd.xlane.f32.xlu0 %v87
    %v89 = vpop.xlane.xlu0 %88
    %v90 = vmul.f32 %v86, %v77
    %v91 = vmul.f32 %v89, %v77
    %v92 = vadd.f32 %v90, 1e-05
    %v93 = vadd.f32 %v91, 1e-05
    %v94 = vrsqrt.pop %v92
    %v95 = vrsqrt.pop %v93
    %v96 = vmul.f32 %v80, %v94
    %v97 = vmul.f32 %v81, %v95
    %v99 = vlaneseq
    %v100 = vshrl.u32 %v99, 7
    %v101 = vsub.s32 0, %v100
    %v102 = vrot.slane %v68, %v101
    %v104 = vmul.f32 %v96, %v102
    %v105 = vmul.f32 %v97, %v102
    %v107 = vlaneseq
    %v108 = vshrl.u32 %v107, 7
    %v109 = vsub.s32 0, %v108
    %v110 = vrot.slane %v69, %v109
    %v112 = vadd.f32 %v104, %v110
    %v113 = vadd.f32 %v105, %v110
    %v114 = vld [vmem:[%s4] sm:$0xff]
    %v115 = vld [vmem:[%s4 + $0x8] sm:$0xff]
    %v116 = vld [vmem:[%s4 + $0x10] sm:$0xff]
    %v117 = vld [vmem:[%s4 + $0x18] sm:$0xff]
    %v119 = vsel %vm70, %v112, 0
    %v122 = vsel %vm70, %v113, 0
    %124 = vmatprep.subr.mxu0 0.0
    %125 = vmatpush1.msra.mxu0 %v114
    %126 = vmatprep.subr.mxu0 0.0
    %127 = vmatpush1.msra.mxu0 %v115
    %128 = vmatprep.subr.mxu0 0.0
    %129 = vmatpush1.msra.mxu0 %v116
    %130 = vmatprep.subr.mxu0 0.0
    %131 = vmatpush1.msra.mxu0 %v117
    %132 = vmatprep.subr.mxu0 0.0
    %133 = vmatpush1.msra.mxu0 0.0
    %134 = vmatprep.subr.mxu0 0.0
    %135 = vmatpush1.msra.mxu0 0.0
    %136 = vmatprep.subr.mxu0 0.0
    %137 = vmatpush1.msra.mxu0 0.0
    %138 = vmatprep.subr.mxu0 0.0
    %139 = vmatpush1.msra.mxu0 0.0
    %140 = vmatprep.subr.mxu0 0.0
    %141 = vmatpush1.msra.mxu0 0.0
    %142 = vmatprep.subr.mxu0 0.0
    %143 = vmatpush1.msra.mxu0 0.0
    %144 = vmatprep.subr.mxu0 0.0
    %145 = vmatpush1.msra.mxu0 0.0
    %146 = vmatprep.subr.mxu0 0.0
    %147 = vmatpush1.msra.mxu0 0.0
    %148 = vmatprep.subr.mxu0 0.0
    %149 = vmatpush1.msra.mxu0 0.0
    %150 = vmatprep.subr.mxu0 0.0
    %151 = vmatpush1.msra.mxu0 0.0
    %152 = vmatprep.subr.mxu0 0.0
    %153 = vmatpush1.msra.mxu0 0.0
    %154 = vmatprep.subr.mxu0 0.0
    %155 = vmatpush1.msra.mxu0 0.0
    %156 = vmatprep.subr.mxu0 0.0
    %157 = vmatpush1.msra.mxu0 0.0
    %158 = vmatprep.subr.mxu0 0.0
    %159 = vmatpush1.msra.mxu0 0.0
    %160 = vmatprep.subr.mxu0 0.0
    %161 = vmatpush1.msra.mxu0 0.0
    %162 = vmatprep.subr.mxu0 0.0
    %163 = vmatpush1.msra.mxu0 0.0
    %164 = vmatprep.subr.mxu0 0.0
    %165 = vmatpush1.msra.mxu0 0.0
    %166 = vmatprep.subr.mxu0 0.0
    %167 = vmatpush1.msra.mxu0 0.0
    %168 = vmatprep.subr.mxu0 0.0
    %169 = vmatpush1.msra.mxu0 0.0
    %170 = vmatprep.subr.mxu0 0.0
    %171 = vmatpush1.msra.mxu0 0.0
    %172 = vmatprep.subr.mxu0 0.0
    %173 = vmatpush1.msra.mxu0 0.0
    %174 = vmatprep.subr.mxu0 0.0
    %175 = vmatpush1.msra.mxu0 0.0
    %176 = vmatprep.subr.mxu0 0.0
    %177 = vmatpush1.msra.mxu0 0.0
    %178 = vmatprep.subr.mxu0 0.0
    %179 = vmatpush1.msra.mxu0 0.0
    %180 = vmatprep.subr.mxu0 0.0
    %181 = vmatpush1.msra.mxu0 0.0
    %182 = vmatprep.subr.mxu0 0.0
    %183 = vmatpush1.msra.mxu0 0.0
    %184 = vmatprep.subr.mxu0 0.0
    %185 = vmatpush1.msra.mxu0 0.0
    %186 = vmatprep.subr.mxu0 0.0
    %187 = vmatpush1.msra.mxu0 0.0
    %188 = vmatprep.mubr.f32.mxu0 0.0
    %189 = vmatmul.mubr.f32.gmra.mrb[0].mxu0 %v119
    %v190 = vpop.f32.mrb[0].mxu0
    %v191 = vadd.f32 0.0, %v190
    %v192 = vpop.f32.mrb[0].mxu0
    %193 = vmatprep.mubr.f32.mxu0 0.0
    %194 = vmatmul.mubr.f32.gmra.mrb[0].mxu0 %v122
    %v195 = vpop.f32.mrb[0].mxu0
    %v196 = vadd.f32 0.0, %v195
    %v197 = vpop.f32.mrb[0].mxu0
    %198 = vdwg.mxu0
    %201 = vrot.lane.b32.xlu0 %v191, 120
    %v202 = vpop.permute.xlu0 %201
    %203 = vrot.lane.b32.xlu0 %v196, 120
    %v204 = vpop.permute.xlu0 %203
    %205 = vrot.lane.b32.xlu0 %v191, 112
    %v206 = vpop.permute.xlu0 %205
    %207 = vrot.lane.b32.xlu0 %v196, 112
    %v208 = vpop.permute.xlu0 %207
    %209 = vrot.lane.b32.xlu0 %v191, 104
    %v210 = vpop.permute.xlu0 %209
    %211 = vrot.lane.b32.xlu0 %v196, 104
    %v212 = vpop.permute.xlu0 %211
    %213 = vrot.lane.b32.xlu0 %v191, 96
    %v214 = vpop.permute.xlu0 %213
    %vm215 = vcmask 64512
    %v216 = vsel %vm215, %v191, 0
    %v218 = vsel %vm215, %v214, 0
    %220 = vmatprep.subr.mxu0 0.0
    %221 = vmatpush1.xpose.msra.mxu0 %v218
    %222 = vmatprep.subr.mxu0 0.0
    %223 = vmatpush1.xpose.msra.mxu0 0.0
    %224 = vmatprep.subr.mxu0 0.0
    %225 = vmatpush1.xpose.msra.mxu0 0.0
    %226 = vmatprep.subr.mxu0 0.0
    %227 = vmatpush1.xpose.msra.mxu0 0.0
    %228 = vmatprep.subr.mxu0 0.0
    %229 = vmatpush1.xpose.msra.mxu0 0.0
    %230 = vmatprep.subr.mxu0 0.0
    %231 = vmatpush1.xpose.msra.mxu0 0.0
    %232 = vmatprep.subr.mxu0 0.0
    %233 = vmatpush1.xpose.msra.mxu0 0.0
    %234 = vmatprep.subr.mxu0 0.0
    %235 = vmatpush1.xpose.msra.mxu0 0.0
    %236 = vmatprep.subr.mxu0 0.0
    %237 = vmatpush1.xpose.msra.mxu0 0.0
    %238 = vmatprep.subr.mxu0 0.0
    %239 = vmatpush1.xpose.msra.mxu0 0.0
    %240 = vmatprep.subr.mxu0 0.0
    %241 = vmatpush1.xpose.msra.mxu0 0.0
    %242 = vmatprep.subr.mxu0 0.0
    %243 = vmatpush1.xpose.msra.mxu0 0.0
    %244 = vmatprep.subr.mxu0 0.0
    %245 = vmatpush1.xpose.msra.mxu0 0.0
    %246 = vmatprep.subr.mxu0 0.0
    %247 = vmatpush1.xpose.msra.mxu0 0.0
    %248 = vmatprep.subr.mxu0 0.0
    %249 = vmatpush1.xpose.msra.mxu0 0.0
    %250 = vmatprep.subr.mxu0 0.0
    %251 = vmatpush1.xpose.msra.mxu0 0.0
    %252 = vmatprep.subr.mxu0 0.0
    %253 = vmatpush1.xpose.msra.mxu0 0.0
    %254 = vmatprep.subr.mxu0 0.0
    %255 = vmatpush1.xpose.msra.mxu0 0.0
    %256 = vmatprep.subr.mxu0 0.0
    %257 = vmatpush1.xpose.msra.mxu0 0.0
    %258 = vmatprep.subr.mxu0 0.0
    %259 = vmatpush1.xpose.msra.mxu0 0.0
    %260 = vmatprep.subr.mxu0 0.0
    %261 = vmatpush1.xpose.msra.mxu0 0.0
    %262 = vmatprep.subr.mxu0 0.0
    %263 = vmatpush1.xpose.msra.mxu0 0.0
    %264 = vmatprep.subr.mxu0 0.0
    %265 = vmatpush1.xpose.msra.mxu0 0.0
    %266 = vmatprep.subr.mxu0 0.0
    %267 = vmatpush1.xpose.msra.mxu0 0.0
    %268 = vmatprep.subr.mxu0 0.0
    %269 = vmatpush1.xpose.msra.mxu0 0.0
    %270 = vmatprep.subr.mxu0 0.0
    %271 = vmatpush1.xpose.msra.mxu0 0.0
    %272 = vmatprep.subr.mxu0 0.0
    %273 = vmatpush1.xpose.msra.mxu0 0.0
    %274 = vmatprep.subr.mxu0 0.0
    %275 = vmatpush1.xpose.msra.mxu0 0.0
    %276 = vmatprep.subr.mxu0 0.0
    %277 = vmatpush1.xpose.msra.mxu0 0.0
    %278 = vmatprep.subr.mxu0 0.0
    %279 = vmatpush1.xpose.msra.mxu0 0.0
    %280 = vmatprep.subr.mxu0 0.0
    %281 = vmatpush1.xpose.msra.mxu0 0.0
    %282 = vmatprep.subr.mxu0 0.0
    %283 = vmatpush1.xpose.msra.mxu0 0.0
    %284 = vmatprep.mubr.f32.mxu0 0.0
    %285 = vmatmul.mubr.f32.gmra.mrb[0].mxu0 %v216
    %v286 = vpop.f32.mrb[0].mxu0
    %v287 = vadd.f32 %v67, %v286
    %v288 = vpop.f32.mrb[0].mxu0
    %289 = vdwg.mxu0
    %290 = vrot.lane.b32.xlu0 %v196, 96
    %v291 = vpop.permute.xlu0 %290
    %v292 = vsel %vm215, %v196, 0
    %v294 = vsel %vm215, %v291, 0
    %296 = vmatprep.subr.mxu0 0.0
    %297 = vmatpush1.xpose.msra.mxu0 %v294
    %298 = vmatprep.subr.mxu0 0.0
    %299 = vmatpush1.xpose.msra.mxu0 0.0
    %300 = vmatprep.subr.mxu0 0.0
    %301 = vmatpush1.xpose.msra.mxu0 0.0
    %302 = vmatprep.subr.mxu0 0.0
    %303 = vmatpush1.xpose.msra.mxu0 0.0
    %304 = vmatprep.subr.mxu0 0.0
    %305 = vmatpush1.xpose.msra.mxu0 0.0
    %306 = vmatprep.subr.mxu0 0.0
    %307 = vmatpush1.xpose.msra.mxu0 0.0
    %308 = vmatprep.subr.mxu0 0.0
    %309 = vmatpush1.xpose.msra.mxu0 0.0
    %310 = vmatprep.subr.mxu0 0.0
    %311 = vmatpush1.xpose.msra.mxu0 0.0
    %312 = vmatprep.subr.mxu0 0.0
    %313 = vmatpush1.xpose.msra.mxu0 0.0
    %314 = vmatprep.subr.mxu0 0.0
    %315 = vmatpush1.xpose.msra.mxu0 0.0
    %316 = vmatprep.subr.mxu0 0.0
    %317 = vmatpush1.xpose.msra.mxu0 0.0
    %318 = vmatprep.subr.mxu0 0.0
    %319 = vmatpush1.xpose.msra.mxu0 0.0
    %320 = vmatprep.subr.mxu0 0.0
    %321 = vmatpush1.xpose.msra.mxu0 0.0
    %322 = vmatprep.subr.mxu0 0.0
    %323 = vmatpush1.xpose.msra.mxu0 0.0
    %324 = vmatprep.subr.mxu0 0.0
    %325 = vmatpush1.xpose.msra.mxu0 0.0
    %326 = vmatprep.subr.mxu0 0.0
    %327 = vmatpush1.xpose.msra.mxu0 0.0
    %328 = vmatprep.subr.mxu0 0.0
    %329 = vmatpush1.xpose.msra.mxu0 0.0
    %330 = vmatprep.subr.mxu0 0.0
    %331 = vmatpush1.xpose.msra.mxu0 0.0
    %332 = vmatprep.subr.mxu0 0.0
    %333 = vmatpush1.xpose.msra.mxu0 0.0
    %334 = vmatprep.subr.mxu0 0.0
    %335 = vmatpush1.xpose.msra.mxu0 0.0
    %336 = vmatprep.subr.mxu0 0.0
    %337 = vmatpush1.xpose.msra.mxu0 0.0
    %338 = vmatprep.subr.mxu0 0.0
    %339 = vmatpush1.xpose.msra.mxu0 0.0
    %340 = vmatprep.subr.mxu0 0.0
    %341 = vmatpush1.xpose.msra.mxu0 0.0
    %342 = vmatprep.subr.mxu0 0.0
    %343 = vmatpush1.xpose.msra.mxu0 0.0
    %344 = vmatprep.subr.mxu0 0.0
    %345 = vmatpush1.xpose.msra.mxu0 0.0
    %346 = vmatprep.subr.mxu0 0.0
    %347 = vmatpush1.xpose.msra.mxu0 0.0
    %348 = vmatprep.subr.mxu0 0.0
    %349 = vmatpush1.xpose.msra.mxu0 0.0
    %350 = vmatprep.subr.mxu0 0.0
    %351 = vmatpush1.xpose.msra.mxu0 0.0
    %352 = vmatprep.subr.mxu0 0.0
    %353 = vmatpush1.xpose.msra.mxu0 0.0
    %354 = vmatprep.subr.mxu0 0.0
    %355 = vmatpush1.xpose.msra.mxu0 0.0
    %356 = vmatprep.subr.mxu0 0.0
    %357 = vmatpush1.xpose.msra.mxu0 0.0
    %358 = vmatprep.subr.mxu0 0.0
    %359 = vmatpush1.xpose.msra.mxu0 0.0
    %360 = vmatprep.mubr.f32.mxu0 0.0
    %361 = vmatmul.mubr.f32.gmra.mrb[0].mxu0 %v292
    %v362 = vpop.f32.mrb[0].mxu0
    %v363 = vadd.f32 %v67, %v362
    %v364 = vpop.f32.mrb[0].mxu0
    %365 = vdwg.mxu0
    %366 = vrot.lane.b32.xlu0 %v202, 96
    %v367 = vpop.permute.xlu0 %366
    %v368 = vsel %vm215, %v202, 0
    %v370 = vsel %vm215, %v367, 0
    %372 = vmatprep.subr.mxu0 0.0
    %373 = vmatpush1.xpose.msra.mxu0 %v370
    %374 = vmatprep.subr.mxu0 0.0
    %375 = vmatpush1.xpose.msra.mxu0 0.0
    %376 = vmatprep.subr.mxu0 0.0
    %377 = vmatpush1.xpose.msra.mxu0 0.0
    %378 = vmatprep.subr.mxu0 0.0
    %379 = vmatpush1.xpose.msra.mxu0 0.0
    %380 = vmatprep.subr.mxu0 0.0
    %381 = vmatpush1.xpose.msra.mxu0 0.0
    %382 = vmatprep.subr.mxu0 0.0
    %383 = vmatpush1.xpose.msra.mxu0 0.0
    %384 = vmatprep.subr.mxu0 0.0
    %385 = vmatpush1.xpose.msra.mxu0 0.0
    %386 = vmatprep.subr.mxu0 0.0
    %387 = vmatpush1.xpose.msra.mxu0 0.0
    %388 = vmatprep.subr.mxu0 0.0
    %389 = vmatpush1.xpose.msra.mxu0 0.0
    %390 = vmatprep.subr.mxu0 0.0
    %391 = vmatpush1.xpose.msra.mxu0 0.0
    %392 = vmatprep.subr.mxu0 0.0
    %393 = vmatpush1.xpose.msra.mxu0 0.0
    %394 = vmatprep.subr.mxu0 0.0
    %395 = vmatpush1.xpose.msra.mxu0 0.0
    %396 = vmatprep.subr.mxu0 0.0
    %397 = vmatpush1.xpose.msra.mxu0 0.0
    %398 = vmatprep.subr.mxu0 0.0
    %399 = vmatpush1.xpose.msra.mxu0 0.0
    %400 = vmatprep.subr.mxu0 0.0
    %401 = vmatpush1.xpose.msra.mxu0 0.0
    %402 = vmatprep.subr.mxu0 0.0
    %403 = vmatpush1.xpose.msra.mxu0 0.0
    %404 = vmatprep.subr.mxu0 0.0
    %405 = vmatpush1.xpose.msra.mxu0 0.0
    %406 = vmatprep.subr.mxu0 0.0
    %407 = vmatpush1.xpose.msra.mxu0 0.0
    %408 = vmatprep.subr.mxu0 0.0
    %409 = vmatpush1.xpose.msra.mxu0 0.0
    %410 = vmatprep.subr.mxu0 0.0
    %411 = vmatpush1.xpose.msra.mxu0 0.0
    %412 = vmatprep.subr.mxu0 0.0
    %413 = vmatpush1.xpose.msra.mxu0 0.0
    %414 = vmatprep.subr.mxu0 0.0
    %415 = vmatpush1.xpose.msra.mxu0 0.0
    %416 = vmatprep.subr.mxu0 0.0
    %417 = vmatpush1.xpose.msra.mxu0 0.0
    %418 = vmatprep.subr.mxu0 0.0
    %419 = vmatpush1.xpose.msra.mxu0 0.0
    %420 = vmatprep.subr.mxu0 0.0
    %421 = vmatpush1.xpose.msra.mxu0 0.0
    %422 = vmatprep.subr.mxu0 0.0
    %423 = vmatpush1.xpose.msra.mxu0 0.0
    %424 = vmatprep.subr.mxu0 0.0
    %425 = vmatpush1.xpose.msra.mxu0 0.0
    %426 = vmatprep.subr.mxu0 0.0
    %427 = vmatpush1.xpose.msra.mxu0 0.0
    %428 = vmatprep.subr.mxu0 0.0
    %429 = vmatpush1.xpose.msra.mxu0 0.0
    %430 = vmatprep.subr.mxu0 0.0
    %431 = vmatpush1.xpose.msra.mxu0 0.0
    %432 = vmatprep.subr.mxu0 0.0
    %433 = vmatpush1.xpose.msra.mxu0 0.0
    %434 = vmatprep.subr.mxu0 0.0
    %435 = vmatpush1.xpose.msra.mxu0 0.0
    %436 = vmatprep.mubr.f32.mxu0 0.0
    %437 = vmatmul.mubr.f32.gmra.mrb[0].mxu0 %v368
    %v438 = vpop.f32.mrb[0].mxu0
    %v439 = vadd.f32 %v67, %v438
    %v440 = vpop.f32.mrb[0].mxu0
    %441 = vdwg.mxu0
    %442 = vrot.lane.b32.xlu0 %v204, 96
    %v443 = vpop.permute.xlu0 %442
    %v444 = vsel %vm215, %v204, 0
    %v446 = vsel %vm215, %v443, 0
    %448 = vmatprep.subr.mxu0 0.0
    %449 = vmatpush1.xpose.msra.mxu0 %v446
    %450 = vmatprep.subr.mxu0 0.0
    %451 = vmatpush1.xpose.msra.mxu0 0.0
    %452 = vmatprep.subr.mxu0 0.0
    %453 = vmatpush1.xpose.msra.mxu0 0.0
    %454 = vmatprep.subr.mxu0 0.0
    %455 = vmatpush1.xpose.msra.mxu0 0.0
    %456 = vmatprep.subr.mxu0 0.0
    %457 = vmatpush1.xpose.msra.mxu0 0.0
    %458 = vmatprep.subr.mxu0 0.0
    %459 = vmatpush1.xpose.msra.mxu0 0.0
    %460 = vmatprep.subr.mxu0 0.0
    %461 = vmatpush1.xpose.msra.mxu0 0.0
    %462 = vmatprep.subr.mxu0 0.0
    %463 = vmatpush1.xpose.msra.mxu0 0.0
    %464 = vmatprep.subr.mxu0 0.0
    %465 = vmatpush1.xpose.msra.mxu0 0.0
    %466 = vmatprep.subr.mxu0 0.0
    %467 = vmatpush1.xpose.msra.mxu0 0.0
    %468 = vmatprep.subr.mxu0 0.0
    %469 = vmatpush1.xpose.msra.mxu0 0.0
    %470 = vmatprep.subr.mxu0 0.0
    %471 = vmatpush1.xpose.msra.mxu0 0.0
    %472 = vmatprep.subr.mxu0 0.0
    %473 = vmatpush1.xpose.msra.mxu0 0.0
    %474 = vmatprep.subr.mxu0 0.0
    %475 = vmatpush1.xpose.msra.mxu0 0.0
    %476 = vmatprep.subr.mxu0 0.0
    %477 = vmatpush1.xpose.msra.mxu0 0.0
    %478 = vmatprep.subr.mxu0 0.0
    %479 = vmatpush1.xpose.msra.mxu0 0.0
    %480 = vmatprep.subr.mxu0 0.0
    %481 = vmatpush1.xpose.msra.mxu0 0.0
    %482 = vmatprep.subr.mxu0 0.0
    %483 = vmatpush1.xpose.msra.mxu0 0.0
    %484 = vmatprep.subr.mxu0 0.0
    %485 = vmatpush1.xpose.msra.mxu0 0.0
    %486 = vmatprep.subr.mxu0 0.0
    %487 = vmatpush1.xpose.msra.mxu0 0.0
    %488 = vmatprep.subr.mxu0 0.0
    %489 = vmatpush1.xpose.msra.mxu0 0.0
    %490 = vmatprep.subr.mxu0 0.0
    %491 = vmatpush1.xpose.msra.mxu0 0.0
    %492 = vmatprep.subr.mxu0 0.0
    %493 = vmatpush1.xpose.msra.mxu0 0.0
    %494 = vmatprep.subr.mxu0 0.0
    %495 = vmatpush1.xpose.msra.mxu0 0.0
    %496 = vmatprep.subr.mxu0 0.0
    %497 = vmatpush1.xpose.msra.mxu0 0.0
    %498 = vmatprep.subr.mxu0 0.0
    %499 = vmatpush1.xpose.msra.mxu0 0.0
    %500 = vmatprep.subr.mxu0 0.0
    %501 = vmatpush1.xpose.msra.mxu0 0.0
    %502 = vmatprep.subr.mxu0 0.0
    %503 = vmatpush1.xpose.msra.mxu0 0.0
    %504 = vmatprep.subr.mxu0 0.0
    %505 = vmatpush1.xpose.msra.mxu0 0.0
    %506 = vmatprep.subr.mxu0 0.0
    %507 = vmatpush1.xpose.msra.mxu0 0.0
    %508 = vmatprep.subr.mxu0 0.0
    %509 = vmatpush1.xpose.msra.mxu0 0.0
    %510 = vmatprep.subr.mxu0 0.0
    %511 = vmatpush1.xpose.msra.mxu0 0.0
    %512 = vmatprep.mubr.f32.mxu0 0.0
    %513 = vmatmul.mubr.f32.gmra.mrb[0].mxu0 %v444
    %v514 = vpop.f32.mrb[0].mxu0
    %v515 = vadd.f32 %v67, %v514
    %v516 = vpop.f32.mrb[0].mxu0
    %517 = vdwg.mxu0
    %518 = vrot.lane.b32.xlu0 %v206, 96
    %v519 = vpop.permute.xlu0 %518
    %v520 = vsel %vm215, %v206, 0
    %v522 = vsel %vm215, %v519, 0
    %524 = vmatprep.subr.mxu0 0.0
    %525 = vmatpush1.xpose.msra.mxu0 %v522
    %526 = vmatprep.subr.mxu0 0.0
    %527 = vmatpush1.xpose.msra.mxu0 0.0
    %528 = vmatprep.subr.mxu0 0.0
    %529 = vmatpush1.xpose.msra.mxu0 0.0
    %530 = vmatprep.subr.mxu0 0.0
    %531 = vmatpush1.xpose.msra.mxu0 0.0
    %532 = vmatprep.subr.mxu0 0.0
    %533 = vmatpush1.xpose.msra.mxu0 0.0
    %534 = vmatprep.subr.mxu0 0.0
    %535 = vmatpush1.xpose.msra.mxu0 0.0
    %536 = vmatprep.subr.mxu0 0.0
    %537 = vmatpush1.xpose.msra.mxu0 0.0
    %538 = vmatprep.subr.mxu0 0.0
    %539 = vmatpush1.xpose.msra.mxu0 0.0
    %540 = vmatprep.subr.mxu0 0.0
    %541 = vmatpush1.xpose.msra.mxu0 0.0
    %542 = vmatprep.subr.mxu0 0.0
    %543 = vmatpush1.xpose.msra.mxu0 0.0
    %544 = vmatprep.subr.mxu0 0.0
    %545 = vmatpush1.xpose.msra.mxu0 0.0
    %546 = vmatprep.subr.mxu0 0.0
    %547 = vmatpush1.xpose.msra.mxu0 0.0
    %548 = vmatprep.subr.mxu0 0.0
    %549 = vmatpush1.xpose.msra.mxu0 0.0
    %550 = vmatprep.subr.mxu0 0.0
    %551 = vmatpush1.xpose.msra.mxu0 0.0
    %552 = vmatprep.subr.mxu0 0.0
    %553 = vmatpush1.xpose.msra.mxu0 0.0
    %554 = vmatprep.subr.mxu0 0.0
    %555 = vmatpush1.xpose.msra.mxu0 0.0
    %556 = vmatprep.subr.mxu0 0.0
    %557 = vmatpush1.xpose.msra.mxu0 0.0
    %558 = vmatprep.subr.mxu0 0.0
    %559 = vmatpush1.xpose.msra.mxu0 0.0
    %560 = vmatprep.subr.mxu0 0.0
    %561 = vmatpush1.xpose.msra.mxu0 0.0
    %562 = vmatprep.subr.mxu0 0.0
    %563 = vmatpush1.xpose.msra.mxu0 0.0
    %564 = vmatprep.subr.mxu0 0.0
    %565 = vmatpush1.xpose.msra.mxu0 0.0
    %566 = vmatprep.subr.mxu0 0.0
    %567 = vmatpush1.xpose.msra.mxu0 0.0
    %568 = vmatprep.subr.mxu0 0.0
    %569 = vmatpush1.xpose.msra.mxu0 0.0
    %570 = vmatprep.subr.mxu0 0.0
    %571 = vmatpush1.xpose.msra.mxu0 0.0
    %572 = vmatprep.subr.mxu0 0.0
    %573 = vmatpush1.xpose.msra.mxu0 0.0
    %574 = vmatprep.subr.mxu0 0.0
    %575 = vmatpush1.xpose.msra.mxu0 0.0
    %576 = vmatprep.subr.mxu0 0.0
    %577 = vmatpush1.xpose.msra.mxu0 0.0
    %578 = vmatprep.subr.mxu0 0.0
    %579 = vmatpush1.xpose.msra.mxu0 0.0
    %580 = vmatprep.subr.mxu0 0.0
    %581 = vmatpush1.xpose.msra.mxu0 0.0
    %582 = vmatprep.subr.mxu0 0.0
    %583 = vmatpush1.xpose.msra.mxu0 0.0
    %584 = vmatprep.subr.mxu0 0.0
    %585 = vmatpush1.xpose.msra.mxu0 0.0
    %586 = vmatprep.subr.mxu0 0.0
    %587 = vmatpush1.xpose.msra.mxu0 0.0
    %588 = vmatprep.mubr.f32.mxu0 0.0
    %589 = vmatmul.mubr.f32.gmra.mrb[0].mxu0 %v520
    %v590 = vpop.f32.mrb[0].mxu0
    %v591 = vadd.f32 %v67, %v590
    %v592 = vpop.f32.mrb[0].mxu0
    %593 = vdwg.mxu0
    %594 = vrot.lane.b32.xlu0 %v208, 96
    %v595 = vpop.permute.xlu0 %594
    %v596 = vsel %vm215, %v208, 0
    %v598 = vsel %vm215, %v595, 0
    %600 = vmatprep.subr.mxu0 0.0
    %601 = vmatpush1.xpose.msra.mxu0 %v598
    %602 = vmatprep.subr.mxu0 0.0
    %603 = vmatpush1.xpose.msra.mxu0 0.0
    %604 = vmatprep.subr.mxu0 0.0
    %605 = vmatpush1.xpose.msra.mxu0 0.0
    %606 = vmatprep.subr.mxu0 0.0
    %607 = vmatpush1.xpose.msra.mxu0 0.0
    %608 = vmatprep.subr.mxu0 0.0
    %609 = vmatpush1.xpose.msra.mxu0 0.0
    %610 = vmatprep.subr.mxu0 0.0
    %611 = vmatpush1.xpose.msra.mxu0 0.0
    %612 = vmatprep.subr.mxu0 0.0
    %613 = vmatpush1.xpose.msra.mxu0 0.0
    %614 = vmatprep.subr.mxu0 0.0
    %615 = vmatpush1.xpose.msra.mxu0 0.0
    %616 = vmatprep.subr.mxu0 0.0
    %617 = vmatpush1.xpose.msra.mxu0 0.0
    %618 = vmatprep.subr.mxu0 0.0
    %619 = vmatpush1.xpose.msra.mxu0 0.0
    %620 = vmatprep.subr.mxu0 0.0
    %621 = vmatpush1.xpose.msra.mxu0 0.0
    %622 = vmatprep.subr.mxu0 0.0
    %623 = vmatpush1.xpose.msra.mxu0 0.0
    %624 = vmatprep.subr.mxu0 0.0
    %625 = vmatpush1.xpose.msra.mxu0 0.0
    %626 = vmatprep.subr.mxu0 0.0
    %627 = vmatpush1.xpose.msra.mxu0 0.0
    %628 = vmatprep.subr.mxu0 0.0
    %629 = vmatpush1.xpose.msra.mxu0 0.0
    %630 = vmatprep.subr.mxu0 0.0
    %631 = vmatpush1.xpose.msra.mxu0 0.0
    %632 = vmatprep.subr.mxu0 0.0
    %633 = vmatpush1.xpose.msra.mxu0 0.0
    %634 = vmatprep.subr.mxu0 0.0
    %635 = vmatpush1.xpose.msra.mxu0 0.0
    %636 = vmatprep.subr.mxu0 0.0
    %637 = vmatpush1.xpose.msra.mxu0 0.0
    %638 = vmatprep.subr.mxu0 0.0
    %639 = vmatpush1.xpose.msra.mxu0 0.0
    %640 = vmatprep.subr.mxu0 0.0
    %641 = vmatpush1.xpose.msra.mxu0 0.0
    %642 = vmatprep.subr.mxu0 0.0
    %643 = vmatpush1.xpose.msra.mxu0 0.0
    %644 = vmatprep.subr.mxu0 0.0
    %645 = vmatpush1.xpose.msra.mxu0 0.0
    %646 = vmatprep.subr.mxu0 0.0
    %647 = vmatpush1.xpose.msra.mxu0 0.0
    %648 = vmatprep.subr.mxu0 0.0
    %649 = vmatpush1.xpose.msra.mxu0 0.0
    %650 = vmatprep.subr.mxu0 0.0
    %651 = vmatpush1.xpose.msra.mxu0 0.0
    %652 = vmatprep.subr.mxu0 0.0
    %653 = vmatpush1.xpose.msra.mxu0 0.0
    %654 = vmatprep.subr.mxu0 0.0
    %655 = vmatpush1.xpose.msra.mxu0 0.0
    %656 = vmatprep.subr.mxu0 0.0
    %657 = vmatpush1.xpose.msra.mxu0 0.0
    %658 = vmatprep.subr.mxu0 0.0
    %659 = vmatpush1.xpose.msra.mxu0 0.0
    %660 = vmatprep.subr.mxu0 0.0
    %661 = vmatpush1.xpose.msra.mxu0 0.0
    %662 = vmatprep.subr.mxu0 0.0
    %663 = vmatpush1.xpose.msra.mxu0 0.0
    %664 = vmatprep.mubr.f32.mxu0 0.0
    %665 = vmatmul.mubr.f32.gmra.mrb[0].mxu0 %v596
    %v666 = vpop.f32.mrb[0].mxu0
    %v667 = vadd.f32 %v67, %v666
    %v668 = vpop.f32.mrb[0].mxu0
    %669 = vdwg.mxu0
    %670 = vrot.lane.b32.xlu0 %v210, 96
    %v671 = vpop.permute.xlu0 %670
    %v672 = vsel %vm215, %v210, 0
    %v674 = vsel %vm215, %v671, 0
    %676 = vmatprep.subr.mxu0 0.0
    %677 = vmatpush1.xpose.msra.mxu0 %v674
    %678 = vmatprep.subr.mxu0 0.0
    %679 = vmatpush1.xpose.msra.mxu0 0.0
    %680 = vmatprep.subr.mxu0 0.0
    %681 = vmatpush1.xpose.msra.mxu0 0.0
    %682 = vmatprep.subr.mxu0 0.0
    %683 = vmatpush1.xpose.msra.mxu0 0.0
    %684 = vmatprep.subr.mxu0 0.0
    %685 = vmatpush1.xpose.msra.mxu0 0.0
    %686 = vmatprep.subr.mxu0 0.0
    %687 = vmatpush1.xpose.msra.mxu0 0.0
    %688 = vmatprep.subr.mxu0 0.0
    %689 = vmatpush1.xpose.msra.mxu0 0.0
    %690 = vmatprep.subr.mxu0 0.0
    %691 = vmatpush1.xpose.msra.mxu0 0.0
    %692 = vmatprep.subr.mxu0 0.0
    %693 = vmatpush1.xpose.msra.mxu0 0.0
    %694 = vmatprep.subr.mxu0 0.0
    %695 = vmatpush1.xpose.msra.mxu0 0.0
    %696 = vmatprep.subr.mxu0 0.0
    %697 = vmatpush1.xpose.msra.mxu0 0.0
    %698 = vmatprep.subr.mxu0 0.0
    %699 = vmatpush1.xpose.msra.mxu0 0.0
    %700 = vmatprep.subr.mxu0 0.0
    %701 = vmatpush1.xpose.msra.mxu0 0.0
    %702 = vmatprep.subr.mxu0 0.0
    %703 = vmatpush1.xpose.msra.mxu0 0.0
    %704 = vmatprep.subr.mxu0 0.0
    %705 = vmatpush1.xpose.msra.mxu0 0.0
    %706 = vmatprep.subr.mxu0 0.0
    %707 = vmatpush1.xpose.msra.mxu0 0.0
    %708 = vmatprep.subr.mxu0 0.0
    %709 = vmatpush1.xpose.msra.mxu0 0.0
    %710 = vmatprep.subr.mxu0 0.0
    %711 = vmatpush1.xpose.msra.mxu0 0.0
    %712 = vmatprep.subr.mxu0 0.0
    %713 = vmatpush1.xpose.msra.mxu0 0.0
    %714 = vmatprep.subr.mxu0 0.0
    %715 = vmatpush1.xpose.msra.mxu0 0.0
    %716 = vmatprep.subr.mxu0 0.0
    %717 = vmatpush1.xpose.msra.mxu0 0.0
    %718 = vmatprep.subr.mxu0 0.0
    %719 = vmatpush1.xpose.msra.mxu0 0.0
    %720 = vmatprep.subr.mxu0 0.0
    %721 = vmatpush1.xpose.msra.mxu0 0.0
    %722 = vmatprep.subr.mxu0 0.0
    %723 = vmatpush1.xpose.msra.mxu0 0.0
    %724 = vmatprep.subr.mxu0 0.0
    %725 = vmatpush1.xpose.msra.mxu0 0.0
    %726 = vmatprep.subr.mxu0 0.0
    %727 = vmatpush1.xpose.msra.mxu0 0.0
    %728 = vmatprep.subr.mxu0 0.0
    %729 = vmatpush1.xpose.msra.mxu0 0.0
    %730 = vmatprep.subr.mxu0 0.0
    %731 = vmatpush1.xpose.msra.mxu0 0.0
    %732 = vmatprep.subr.mxu0 0.0
    %733 = vmatpush1.xpose.msra.mxu0 0.0
    %734 = vmatprep.subr.mxu0 0.0
    %735 = vmatpush1.xpose.msra.mxu0 0.0
    %736 = vmatprep.subr.mxu0 0.0
    %737 = vmatpush1.xpose.msra.mxu0 0.0
    %738 = vmatprep.subr.mxu0 0.0
    %739 = vmatpush1.xpose.msra.mxu0 0.0
    %740 = vmatprep.mubr.f32.mxu0 0.0
    %741 = vmatmul.mubr.f32.gmra.mrb[0].mxu0 %v672
    %v742 = vpop.f32.mrb[0].mxu0
    %v743 = vadd.f32 %v67, %v742
    %v744 = vpop.f32.mrb[0].mxu0
    %745 = vdwg.mxu0
    %746 = vrot.lane.b32.xlu0 %v212, 96
    %v747 = vpop.permute.xlu0 %746
    %v748 = vsel %vm215, %v212, 0
    %v750 = vsel %vm215, %v747, 0
    %752 = vmatprep.subr.mxu0 0.0
    %753 = vmatpush1.xpose.msra.mxu0 %v750
    %754 = vmatprep.subr.mxu0 0.0
    %755 = vmatpush1.xpose.msra.mxu0 0.0
    %756 = vmatprep.subr.mxu0 0.0
    %757 = vmatpush1.xpose.msra.mxu0 0.0
    %758 = vmatprep.subr.mxu0 0.0
    %759 = vmatpush1.xpose.msra.mxu0 0.0
    %760 = vmatprep.subr.mxu0 0.0
    %761 = vmatpush1.xpose.msra.mxu0 0.0
    %762 = vmatprep.subr.mxu0 0.0
    %763 = vmatpush1.xpose.msra.mxu0 0.0
    %764 = vmatprep.subr.mxu0 0.0
    %765 = vmatpush1.xpose.msra.mxu0 0.0
    %766 = vmatprep.subr.mxu0 0.0
    %767 = vmatpush1.xpose.msra.mxu0 0.0
    %768 = vmatprep.subr.mxu0 0.0
    %769 = vmatpush1.xpose.msra.mxu0 0.0
    %770 = vmatprep.subr.mxu0 0.0
    %771 = vmatpush1.xpose.msra.mxu0 0.0
    %772 = vmatprep.subr.mxu0 0.0
    %773 = vmatpush1.xpose.msra.mxu0 0.0
    %774 = vmatprep.subr.mxu0 0.0
    %775 = vmatpush1.xpose.msra.mxu0 0.0
    %776 = vmatprep.subr.mxu0 0.0
    %777 = vmatpush1.xpose.msra.mxu0 0.0
    %778 = vmatprep.subr.mxu0 0.0
    %779 = vmatpush1.xpose.msra.mxu0 0.0
    %780 = vmatprep.subr.mxu0 0.0
    %781 = vmatpush1.xpose.msra.mxu0 0.0
    %782 = vmatprep.subr.mxu0 0.0
    %783 = vmatpush1.xpose.msra.mxu0 0.0
    %784 = vmatprep.subr.mxu0 0.0
    %785 = vmatpush1.xpose.msra.mxu0 0.0
    %786 = vmatprep.subr.mxu0 0.0
    %787 = vmatpush1.xpose.msra.mxu0 0.0
    %788 = vmatprep.subr.mxu0 0.0
    %789 = vmatpush1.xpose.msra.mxu0 0.0
    %790 = vmatprep.subr.mxu0 0.0
    %791 = vmatpush1.xpose.msra.mxu0 0.0
    %792 = vmatprep.subr.mxu0 0.0
    %793 = vmatpush1.xpose.msra.mxu0 0.0
    %794 = vmatprep.subr.mxu0 0.0
    %795 = vmatpush1.xpose.msra.mxu0 0.0
    %796 = vmatprep.subr.mxu0 0.0
    %797 = vmatpush1.xpose.msra.mxu0 0.0
    %798 = vmatprep.subr.mxu0 0.0
    %799 = vmatpush1.xpose.msra.mxu0 0.0
    %800 = vmatprep.subr.mxu0 0.0
    %801 = vmatpush1.xpose.msra.mxu0 0.0
    %802 = vmatprep.subr.mxu0 0.0
    %803 = vmatpush1.xpose.msra.mxu0 0.0
    %804 = vmatprep.subr.mxu0 0.0
    %805 = vmatpush1.xpose.msra.mxu0 0.0
    %806 = vmatprep.subr.mxu0 0.0
    %807 = vmatpush1.xpose.msra.mxu0 0.0
    %808 = vmatprep.subr.mxu0 0.0
    %809 = vmatpush1.xpose.msra.mxu0 0.0
    %810 = vmatprep.subr.mxu0 0.0
    %811 = vmatpush1.xpose.msra.mxu0 0.0
    %812 = vmatprep.subr.mxu0 0.0
    %813 = vmatpush1.xpose.msra.mxu0 0.0
    %814 = vmatprep.subr.mxu0 0.0
    %815 = vmatpush1.xpose.msra.mxu0 0.0
    %816 = vmatprep.mubr.f32.mxu0 0.0
    %817 = vmatmul.mubr.f32.gmra.mrb[0].mxu0 %v748
    %v818 = vpop.f32.mrb[0].mxu0
    %v819 = vadd.f32 %v67, %v818
    %v820 = vpop.f32.mrb[0].mxu0
    %821 = vdwg.mxu0
    %v822 = vsel %vm215, %v287, -inf
    %823 = vmax.xlane.f32.xlu0 %v822
    %v824 = vpop.xlane.xlu0 %823
    %v825 = vsel %vm215, %v363, -inf
    %826 = vmax.xlane.f32.xlu0 %v825
    %v827 = vpop.xlane.xlu0 %826
    %v828 = vsel %vm215, %v439, -inf
    %829 = vmax.xlane.f32.xlu0 %v828
    %v830 = vpop.xlane.xlu0 %829
    %v831 = vsel %vm215, %v515, -inf
    %832 = vmax.xlane.f32.xlu0 %v831
    %v833 = vpop.xlane.xlu0 %832
    %v834 = vsel %vm215, %v591, -inf
    %835 = vmax.xlane.f32.xlu0 %v834
    %v836 = vpop.xlane.xlu0 %835
    %v837 = vsel %vm215, %v667, -inf
    %838 = vmax.xlane.f32.xlu0 %v837
    %v839 = vpop.xlane.xlu0 %838
    %v840 = vsel %vm215, %v743, -inf
    %841 = vmax.xlane.f32.xlu0 %v840
    %v842 = vpop.xlane.xlu0 %841
    %v843 = vsel %vm215, %v819, -inf
    %844 = vmax.xlane.f32.xlu0 %v843
    %v845 = vpop.xlane.xlu0 %844
    %v846 = vsub.f32 %v287, %v824
    %v847 = vsub.f32 %v363, %v827
    %v848 = vsub.f32 %v439, %v830
    %v849 = vsub.f32 %v515, %v833
    %v850 = vsub.f32 %v591, %v836
    %v851 = vsub.f32 %v667, %v839
    %v852 = vsub.f32 %v743, %v842
    %v853 = vsub.f32 %v819, %v845
    %v854 = vmul.f32 %v846, 1.442695
    %v855 = vpow.pop %v854
    %v856 = vmul.f32 %v847, 1.442695
    %v857 = vpow.pop %v856
    %v858 = vmul.f32 %v848, 1.442695
    %v859 = vpow.pop %v858
    %v860 = vmul.f32 %v849, 1.442695
    %v861 = vpow.pop %v860
    %v862 = vmul.f32 %v850, 1.442695
    %v863 = vpow.pop %v862
    %v864 = vmul.f32 %v851, 1.442695
    %v865 = vpow.pop %v864
    %v866 = vmul.f32 %v852, 1.442695
    %v867 = vpow.pop %v866
    %v868 = vmul.f32 %v853, 1.442695
    %v869 = vpow.pop %v868
    %v870 = vsel %vm215, %v855, 0.0
    %871 = vadd.xlane.f32.xlu0 %v870
    %v872 = vpop.xlane.xlu0 %871
    %v873 = vsel %vm215, %v857, 0.0
    %874 = vadd.xlane.f32.xlu0 %v873
    %v875 = vpop.xlane.xlu0 %874
    %v876 = vsel %vm215, %v859, 0.0
    %877 = vadd.xlane.f32.xlu0 %v876
    %v878 = vpop.xlane.xlu0 %877
    %v879 = vsel %vm215, %v861, 0.0
    %880 = vadd.xlane.f32.xlu0 %v879
    %v881 = vpop.xlane.xlu0 %880
    %v882 = vsel %vm215, %v863, 0.0
    %883 = vadd.xlane.f32.xlu0 %v882
    %v884 = vpop.xlane.xlu0 %883
    %v885 = vsel %vm215, %v865, 0.0
    %886 = vadd.xlane.f32.xlu0 %v885
    %v887 = vpop.xlane.xlu0 %886
    %v888 = vsel %vm215, %v867, 0.0
    %889 = vadd.xlane.f32.xlu0 %v888
    %v890 = vpop.xlane.xlu0 %889
    %v891 = vsel %vm215, %v869, 0.0
    %892 = vadd.xlane.f32.xlu0 %v891
    %v893 = vpop.xlane.xlu0 %892
    %v894 = vrcp.pop %v872
    %v895 = vrcp.pop %v875
    %v896 = vrcp.pop %v878
    %v897 = vrcp.pop %v881
    %v898 = vrcp.pop %v884
    %v899 = vrcp.pop %v887
    %v900 = vrcp.pop %v890
    %v901 = vrcp.pop %v893
    %v902 = vmul.f32 %v855, %v894
    %v903 = vmul.f32 %v857, %v895
    %v904 = vmul.f32 %v859, %v896
    %v905 = vmul.f32 %v861, %v897
    %v906 = vmul.f32 %v863, %v898
    %v907 = vmul.f32 %v865, %v899
    %v908 = vmul.f32 %v867, %v900
    %v909 = vmul.f32 %v869, %v901
    %910 = vrot.lane.b32.xlu0 %v191, 64
    %v911 = vpop.permute.xlu0 %910
    %v914 = vsel %vm215, %v902, 0
    %916 = vmatprep.subr.mxu0 0.0
    %917 = vmatpush1.msra.mxu0 %v911
    %918 = vmatprep.subr.mxu0 0.0
    %919 = vmatpush1.msra.mxu0 0.0
    %920 = vmatprep.subr.mxu0 0.0
    %921 = vmatpush1.msra.mxu0 0.0
    %922 = vmatprep.subr.mxu0 0.0
    %923 = vmatpush1.msra.mxu0 0.0
    %924 = vmatprep.subr.mxu0 0.0
    %925 = vmatpush1.msra.mxu0 0.0
    %926 = vmatprep.subr.mxu0 0.0
    %927 = vmatpush1.msra.mxu0 0.0
    %928 = vmatprep.subr.mxu0 0.0
    %929 = vmatpush1.msra.mxu0 0.0
    %930 = vmatprep.subr.mxu0 0.0
    %931 = vmatpush1.msra.mxu0 0.0
    %932 = vmatprep.subr.mxu0 0.0
    %933 = vmatpush1.msra.mxu0 0.0
    %934 = vmatprep.subr.mxu0 0.0
    %935 = vmatpush1.msra.mxu0 0.0
    %936 = vmatprep.subr.mxu0 0.0
    %937 = vmatpush1.msra.mxu0 0.0
    %938 = vmatprep.subr.mxu0 0.0
    %939 = vmatpush1.msra.mxu0 0.0
    %940 = vmatprep.subr.mxu0 0.0
    %941 = vmatpush1.msra.mxu0 0.0
    %942 = vmatprep.subr.mxu0 0.0
    %943 = vmatpush1.msra.mxu0 0.0
    %944 = vmatprep.subr.mxu0 0.0
    %945 = vmatpush1.msra.mxu0 0.0
    %946 = vmatprep.subr.mxu0 0.0
    %947 = vmatpush1.msra.mxu0 0.0
    %948 = vmatprep.subr.mxu0 0.0
    %949 = vmatpush1.msra.mxu0 0.0
    %950 = vmatprep.subr.mxu0 0.0
    %951 = vmatpush1.msra.mxu0 0.0
    %952 = vmatprep.subr.mxu0 0.0
    %953 = vmatpush1.msra.mxu0 0.0
    %954 = vmatprep.subr.mxu0 0.0
    %955 = vmatpush1.msra.mxu0 0.0
    %956 = vmatprep.subr.mxu0 0.0
    %957 = vmatpush1.msra.mxu0 0.0
    %958 = vmatprep.subr.mxu0 0.0
    %959 = vmatpush1.msra.mxu0 0.0
    %960 = vmatprep.subr.mxu0 0.0
    %961 = vmatpush1.msra.mxu0 0.0
    %962 = vmatprep.subr.mxu0 0.0
    %963 = vmatpush1.msra.mxu0 0.0
    %964 = vmatprep.subr.mxu0 0.0
    %965 = vmatpush1.msra.mxu0 0.0
    %966 = vmatprep.subr.mxu0 0.0
    %967 = vmatpush1.msra.mxu0 0.0
    %968 = vmatprep.subr.mxu0 0.0
    %969 = vmatpush1.msra.mxu0 0.0
    %970 = vmatprep.subr.mxu0 0.0
    %971 = vmatpush1.msra.mxu0 0.0
    %972 = vmatprep.subr.mxu0 0.0
    %973 = vmatpush1.msra.mxu0 0.0
    %974 = vmatprep.subr.mxu0 0.0
    %975 = vmatpush1.msra.mxu0 0.0
    %976 = vmatprep.subr.mxu0 0.0
    %977 = vmatpush1.msra.mxu0 0.0
    %978 = vmatprep.subr.mxu0 0.0
    %979 = vmatpush1.msra.mxu0 0.0
    %980 = vmatprep.mubr.f32.mxu0 0.0
    %981 = vmatmul.mubr.f32.gmra.mrb[0].mxu0 %v914
    %v982 = vpop.f32.mrb[0].mxu0
    %v983 = vadd.f32 0.0, %v982
    %v984 = vpop.f32.mrb[0].mxu0
    %985 = vdwg.mxu0
    %986 = vrot.lane.b32.xlu0 %v196, 64
    %v987 = vpop.permute.xlu0 %986
    %v990 = vsel %vm215, %v903, 0
    %992 = vmatprep.subr.mxu0 0.0
    %993 = vmatpush1.msra.mxu0 %v987
    %994 = vmatprep.subr.mxu0 0.0
    %995 = vmatpush1.msra.mxu0 0.0
    %996 = vmatprep.subr.mxu0 0.0
    %997 = vmatpush1.msra.mxu0 0.0
    %998 = vmatprep.subr.mxu0 0.0
    %999 = vmatpush1.msra.mxu0 0.0
    %1000 = vmatprep.subr.mxu0 0.0
    %1001 = vmatpush1.msra.mxu0 0.0
    %1002 = vmatprep.subr.mxu0 0.0
    %1003 = vmatpush1.msra.mxu0 0.0
    %1004 = vmatprep.subr.mxu0 0.0
    %1005 = vmatpush1.msra.mxu0 0.0
    %1006 = vmatprep.subr.mxu0 0.0
    %1007 = vmatpush1.msra.mxu0 0.0
    %1008 = vmatprep.subr.mxu0 0.0
    %1009 = vmatpush1.msra.mxu0 0.0
    %1010 = vmatprep.subr.mxu0 0.0
    %1011 = vmatpush1.msra.mxu0 0.0
    %1012 = vmatprep.subr.mxu0 0.0
    %1013 = vmatpush1.msra.mxu0 0.0
    %1014 = vmatprep.subr.mxu0 0.0
    %1015 = vmatpush1.msra.mxu0 0.0
    %1016 = vmatprep.subr.mxu0 0.0
    %1017 = vmatpush1.msra.mxu0 0.0
    %1018 = vmatprep.subr.mxu0 0.0
    %1019 = vmatpush1.msra.mxu0 0.0
    %1020 = vmatprep.subr.mxu0 0.0
    %1021 = vmatpush1.msra.mxu0 0.0
    %1022 = vmatprep.subr.mxu0 0.0
    %1023 = vmatpush1.msra.mxu0 0.0
    %1024 = vmatprep.subr.mxu0 0.0
    %1025 = vmatpush1.msra.mxu0 0.0
    %1026 = vmatprep.subr.mxu0 0.0
    %1027 = vmatpush1.msra.mxu0 0.0
    %1028 = vmatprep.subr.mxu0 0.0
    %1029 = vmatpush1.msra.mxu0 0.0
    %1030 = vmatprep.subr.mxu0 0.0
    %1031 = vmatpush1.msra.mxu0 0.0
    %1032 = vmatprep.subr.mxu0 0.0
    %1033 = vmatpush1.msra.mxu0 0.0
    %1034 = vmatprep.subr.mxu0 0.0
    %1035 = vmatpush1.msra.mxu0 0.0
    %1036 = vmatprep.subr.mxu0 0.0
    %1037 = vmatpush1.msra.mxu0 0.0
    %1038 = vmatprep.subr.mxu0 0.0
    %1039 = vmatpush1.msra.mxu0 0.0
    %1040 = vmatprep.subr.mxu0 0.0
    %1041 = vmatpush1.msra.mxu0 0.0
    %1042 = vmatprep.subr.mxu0 0.0
    %1043 = vmatpush1.msra.mxu0 0.0
    %1044 = vmatprep.subr.mxu0 0.0
    %1045 = vmatpush1.msra.mxu0 0.0
    %1046 = vmatprep.subr.mxu0 0.0
    %1047 = vmatpush1.msra.mxu0 0.0
    %1048 = vmatprep.subr.mxu0 0.0
    %1049 = vmatpush1.msra.mxu0 0.0
    %1050 = vmatprep.subr.mxu0 0.0
    %1051 = vmatpush1.msra.mxu0 0.0
    %1052 = vmatprep.subr.mxu0 0.0
    %1053 = vmatpush1.msra.mxu0 0.0
    %1054 = vmatprep.subr.mxu0 0.0
    %1055 = vmatpush1.msra.mxu0 0.0
    %1056 = vmatprep.mubr.f32.mxu0 0.0
    %1057 = vmatmul.mubr.f32.gmra.mrb[0].mxu0 %v990
    %v1058 = vpop.f32.mrb[0].mxu0
    %v1059 = vadd.f32 0.0, %v1058
    %v1060 = vpop.f32.mrb[0].mxu0
    %1061 = vdwg.mxu0
    %1062 = vrot.lane.b32.xlu0 %v202, 64
    %v1063 = vpop.permute.xlu0 %1062
    %v1066 = vsel %vm215, %v904, 0
    %1068 = vmatprep.subr.mxu0 0.0
    %1069 = vmatpush1.msra.mxu0 %v1063
    %1070 = vmatprep.subr.mxu0 0.0
    %1071 = vmatpush1.msra.mxu0 0.0
    %1072 = vmatprep.subr.mxu0 0.0
    %1073 = vmatpush1.msra.mxu0 0.0
    %1074 = vmatprep.subr.mxu0 0.0
    %1075 = vmatpush1.msra.mxu0 0.0
    %1076 = vmatprep.subr.mxu0 0.0
    %1077 = vmatpush1.msra.mxu0 0.0
    %1078 = vmatprep.subr.mxu0 0.0
    %1079 = vmatpush1.msra.mxu0 0.0
    %1080 = vmatprep.subr.mxu0 0.0
    %1081 = vmatpush1.msra.mxu0 0.0
    %1082 = vmatprep.subr.mxu0 0.0
    %1083 = vmatpush1.msra.mxu0 0.0
    %1084 = vmatprep.subr.mxu0 0.0
    %1085 = vmatpush1.msra.mxu0 0.0
    %1086 = vmatprep.subr.mxu0 0.0
    %1087 = vmatpush1.msra.mxu0 0.0
    %1088 = vmatprep.subr.mxu0 0.0
    %1089 = vmatpush1.msra.mxu0 0.0
    %1090 = vmatprep.subr.mxu0 0.0
    %1091 = vmatpush1.msra.mxu0 0.0
    %1092 = vmatprep.subr.mxu0 0.0
    %1093 = vmatpush1.msra.mxu0 0.0
    %1094 = vmatprep.subr.mxu0 0.0
    %1095 = vmatpush1.msra.mxu0 0.0
    %1096 = vmatprep.subr.mxu0 0.0
    %1097 = vmatpush1.msra.mxu0 0.0
    %1098 = vmatprep.subr.mxu0 0.0
    %1099 = vmatpush1.msra.mxu0 0.0
    %1100 = vmatprep.subr.mxu0 0.0
    %1101 = vmatpush1.msra.mxu0 0.0
    %1102 = vmatprep.subr.mxu0 0.0
    %1103 = vmatpush1.msra.mxu0 0.0
    %1104 = vmatprep.subr.mxu0 0.0
    %1105 = vmatpush1.msra.mxu0 0.0
    %1106 = vmatprep.subr.mxu0 0.0
    %1107 = vmatpush1.msra.mxu0 0.0
    %1108 = vmatprep.subr.mxu0 0.0
    %1109 = vmatpush1.msra.mxu0 0.0
    %1110 = vmatprep.subr.mxu0 0.0
    %1111 = vmatpush1.msra.mxu0 0.0
    %1112 = vmatprep.subr.mxu0 0.0
    %1113 = vmatpush1.msra.mxu0 0.0
    %1114 = vmatprep.subr.mxu0 0.0
    %1115 = vmatpush1.msra.mxu0 0.0
    %1116 = vmatprep.subr.mxu0 0.0
    %1117 = vmatpush1.msra.mxu0 0.0
    %1118 = vmatprep.subr.mxu0 0.0
    %1119 = vmatpush1.msra.mxu0 0.0
    %1120 = vmatprep.subr.mxu0 0.0
    %1121 = vmatpush1.msra.mxu0 0.0
    %1122 = vmatprep.subr.mxu0 0.0
    %1123 = vmatpush1.msra.mxu0 0.0
    %1124 = vmatprep.subr.mxu0 0.0
    %1125 = vmatpush1.msra.mxu0 0.0
    %1126 = vmatprep.subr.mxu0 0.0
    %1127 = vmatpush1.msra.mxu0 0.0
    %1128 = vmatprep.subr.mxu0 0.0
    %1129 = vmatpush1.msra.mxu0 0.0
    %1130 = vmatprep.subr.mxu0 0.0
    %1131 = vmatpush1.msra.mxu0 0.0
    %1132 = vmatprep.mubr.f32.mxu0 0.0
    %1133 = vmatmul.mubr.f32.gmra.mrb[0].mxu0 %v1066
    %v1134 = vpop.f32.mrb[0].mxu0
    %v1135 = vadd.f32 0.0, %v1134
    %v1136 = vpop.f32.mrb[0].mxu0
    %1137 = vdwg.mxu0
    %1138 = vrot.lane.b32.xlu0 %v204, 64
    %v1139 = vpop.permute.xlu0 %1138
    %v1142 = vsel %vm215, %v905, 0
    %1144 = vmatprep.subr.mxu0 0.0
    %1145 = vmatpush1.msra.mxu0 %v1139
    %1146 = vmatprep.subr.mxu0 0.0
    %1147 = vmatpush1.msra.mxu0 0.0
    %1148 = vmatprep.subr.mxu0 0.0
    %1149 = vmatpush1.msra.mxu0 0.0
    %1150 = vmatprep.subr.mxu0 0.0
    %1151 = vmatpush1.msra.mxu0 0.0
    %1152 = vmatprep.subr.mxu0 0.0
    %1153 = vmatpush1.msra.mxu0 0.0
    %1154 = vmatprep.subr.mxu0 0.0
    %1155 = vmatpush1.msra.mxu0 0.0
    %1156 = vmatprep.subr.mxu0 0.0
    %1157 = vmatpush1.msra.mxu0 0.0
    %1158 = vmatprep.subr.mxu0 0.0
    %1159 = vmatpush1.msra.mxu0 0.0
    %1160 = vmatprep.subr.mxu0 0.0
    %1161 = vmatpush1.msra.mxu0 0.0
    %1162 = vmatprep.subr.mxu0 0.0
    %1163 = vmatpush1.msra.mxu0 0.0
    %1164 = vmatprep.subr.mxu0 0.0
    %1165 = vmatpush1.msra.mxu0 0.0
    %1166 = vmatprep.subr.mxu0 0.0
    %1167 = vmatpush1.msra.mxu0 0.0
    %1168 = vmatprep.subr.mxu0 0.0
    %1169 = vmatpush1.msra.mxu0 0.0
    %1170 = vmatprep.subr.mxu0 0.0
    %1171 = vmatpush1.msra.mxu0 0.0
    %1172 = vmatprep.subr.mxu0 0.0
    %1173 = vmatpush1.msra.mxu0 0.0
    %1174 = vmatprep.subr.mxu0 0.0
    %1175 = vmatpush1.msra.mxu0 0.0
    %1176 = vmatprep.subr.mxu0 0.0
    %1177 = vmatpush1.msra.mxu0 0.0
    %1178 = vmatprep.subr.mxu0 0.0
    %1179 = vmatpush1.msra.mxu0 0.0
    %1180 = vmatprep.subr.mxu0 0.0
    %1181 = vmatpush1.msra.mxu0 0.0
    %1182 = vmatprep.subr.mxu0 0.0
    %1183 = vmatpush1.msra.mxu0 0.0
    %1184 = vmatprep.subr.mxu0 0.0
    %1185 = vmatpush1.msra.mxu0 0.0
    %1186 = vmatprep.subr.mxu0 0.0
    %1187 = vmatpush1.msra.mxu0 0.0
    %1188 = vmatprep.subr.mxu0 0.0
    %1189 = vmatpush1.msra.mxu0 0.0
    %1190 = vmatprep.subr.mxu0 0.0
    %1191 = vmatpush1.msra.mxu0 0.0
    %1192 = vmatprep.subr.mxu0 0.0
    %1193 = vmatpush1.msra.mxu0 0.0
    %1194 = vmatprep.subr.mxu0 0.0
    %1195 = vmatpush1.msra.mxu0 0.0
    %1196 = vmatprep.subr.mxu0 0.0
    %1197 = vmatpush1.msra.mxu0 0.0
    %1198 = vmatprep.subr.mxu0 0.0
    %1199 = vmatpush1.msra.mxu0 0.0
    %1200 = vmatprep.subr.mxu0 0.0
    %1201 = vmatpush1.msra.mxu0 0.0
    %1202 = vmatprep.subr.mxu0 0.0
    %1203 = vmatpush1.msra.mxu0 0.0
    %1204 = vmatprep.subr.mxu0 0.0
    %1205 = vmatpush1.msra.mxu0 0.0
    %1206 = vmatprep.subr.mxu0 0.0
    %1207 = vmatpush1.msra.mxu0 0.0
    %1208 = vmatprep.mubr.f32.mxu0 0.0
    %1209 = vmatmul.mubr.f32.gmra.mrb[0].mxu0 %v1142
    %v1210 = vpop.f32.mrb[0].mxu0
    %v1211 = vadd.f32 0.0, %v1210
    %v1212 = vpop.f32.mrb[0].mxu0
    %1213 = vdwg.mxu0
    %1214 = vrot.lane.b32.xlu0 %v206, 64
    %v1215 = vpop.permute.xlu0 %1214
    %v1218 = vsel %vm215, %v906, 0
    %1220 = vmatprep.subr.mxu0 0.0
    %1221 = vmatpush1.msra.mxu0 %v1215
    %1222 = vmatprep.subr.mxu0 0.0
    %1223 = vmatpush1.msra.mxu0 0.0
    %1224 = vmatprep.subr.mxu0 0.0
    %1225 = vmatpush1.msra.mxu0 0.0
    %1226 = vmatprep.subr.mxu0 0.0
    %1227 = vmatpush1.msra.mxu0 0.0
    %1228 = vmatprep.subr.mxu0 0.0
    %1229 = vmatpush1.msra.mxu0 0.0
    %1230 = vmatprep.subr.mxu0 0.0
    %1231 = vmatpush1.msra.mxu0 0.0
    %1232 = vmatprep.subr.mxu0 0.0
    %1233 = vmatpush1.msra.mxu0 0.0
    %1234 = vmatprep.subr.mxu0 0.0
    %1235 = vmatpush1.msra.mxu0 0.0
    %1236 = vmatprep.subr.mxu0 0.0
    %1237 = vmatpush1.msra.mxu0 0.0
    %1238 = vmatprep.subr.mxu0 0.0
    %1239 = vmatpush1.msra.mxu0 0.0
    %1240 = vmatprep.subr.mxu0 0.0
    %1241 = vmatpush1.msra.mxu0 0.0
    %1242 = vmatprep.subr.mxu0 0.0
    %1243 = vmatpush1.msra.mxu0 0.0
    %1244 = vmatprep.subr.mxu0 0.0
    %1245 = vmatpush1.msra.mxu0 0.0
    %1246 = vmatprep.subr.mxu0 0.0
    %1247 = vmatpush1.msra.mxu0 0.0
    %1248 = vmatprep.subr.mxu0 0.0
    %1249 = vmatpush1.msra.mxu0 0.0
    %1250 = vmatprep.subr.mxu0 0.0
    %1251 = vmatpush1.msra.mxu0 0.0
    %1252 = vmatprep.subr.mxu0 0.0
    %1253 = vmatpush1.msra.mxu0 0.0
    %1254 = vmatprep.subr.mxu0 0.0
    %1255 = vmatpush1.msra.mxu0 0.0
    %1256 = vmatprep.subr.mxu0 0.0
    %1257 = vmatpush1.msra.mxu0 0.0
    %1258 = vmatprep.subr.mxu0 0.0
    %1259 = vmatpush1.msra.mxu0 0.0
    %1260 = vmatprep.subr.mxu0 0.0
    %1261 = vmatpush1.msra.mxu0 0.0
    %1262 = vmatprep.subr.mxu0 0.0
    %1263 = vmatpush1.msra.mxu0 0.0
    %1264 = vmatprep.subr.mxu0 0.0
    %1265 = vmatpush1.msra.mxu0 0.0
    %1266 = vmatprep.subr.mxu0 0.0
    %1267 = vmatpush1.msra.mxu0 0.0
    %1268 = vmatprep.subr.mxu0 0.0
    %1269 = vmatpush1.msra.mxu0 0.0
    %1270 = vmatprep.subr.mxu0 0.0
    %1271 = vmatpush1.msra.mxu0 0.0
    %1272 = vmatprep.subr.mxu0 0.0
    %1273 = vmatpush1.msra.mxu0 0.0
    %1274 = vmatprep.subr.mxu0 0.0
    %1275 = vmatpush1.msra.mxu0 0.0
    %1276 = vmatprep.subr.mxu0 0.0
    %1277 = vmatpush1.msra.mxu0 0.0
    %1278 = vmatprep.subr.mxu0 0.0
    %1279 = vmatpush1.msra.mxu0 0.0
    %1280 = vmatprep.subr.mxu0 0.0
    %1281 = vmatpush1.msra.mxu0 0.0
    %1282 = vmatprep.subr.mxu0 0.0
    %1283 = vmatpush1.msra.mxu0 0.0
    %1284 = vmatprep.mubr.f32.mxu0 0.0
    %1285 = vmatmul.mubr.f32.gmra.mrb[0].mxu0 %v1218
    %v1286 = vpop.f32.mrb[0].mxu0
    %v1287 = vadd.f32 0.0, %v1286
    %v1288 = vpop.f32.mrb[0].mxu0
    %1289 = vdwg.mxu0
    %1290 = vrot.lane.b32.xlu0 %v208, 64
    %v1291 = vpop.permute.xlu0 %1290
    %v1294 = vsel %vm215, %v907, 0
    %1296 = vmatprep.subr.mxu0 0.0
    %1297 = vmatpush1.msra.mxu0 %v1291
    %1298 = vmatprep.subr.mxu0 0.0
    %1299 = vmatpush1.msra.mxu0 0.0
    %1300 = vmatprep.subr.mxu0 0.0
    %1301 = vmatpush1.msra.mxu0 0.0
    %1302 = vmatprep.subr.mxu0 0.0
    %1303 = vmatpush1.msra.mxu0 0.0
    %1304 = vmatprep.subr.mxu0 0.0
    %1305 = vmatpush1.msra.mxu0 0.0
    %1306 = vmatprep.subr.mxu0 0.0
    %1307 = vmatpush1.msra.mxu0 0.0
    %1308 = vmatprep.subr.mxu0 0.0
    %1309 = vmatpush1.msra.mxu0 0.0
    %1310 = vmatprep.subr.mxu0 0.0
    %1311 = vmatpush1.msra.mxu0 0.0
    %1312 = vmatprep.subr.mxu0 0.0
    %1313 = vmatpush1.msra.mxu0 0.0
    %1314 = vmatprep.subr.mxu0 0.0
    %1315 = vmatpush1.msra.mxu0 0.0
    %1316 = vmatprep.subr.mxu0 0.0
    %1317 = vmatpush1.msra.mxu0 0.0
    %1318 = vmatprep.subr.mxu0 0.0
    %1319 = vmatpush1.msra.mxu0 0.0
    %1320 = vmatprep.subr.mxu0 0.0
    %1321 = vmatpush1.msra.mxu0 0.0
    %1322 = vmatprep.subr.mxu0 0.0
    %1323 = vmatpush1.msra.mxu0 0.0
    %1324 = vmatprep.subr.mxu0 0.0
    %1325 = vmatpush1.msra.mxu0 0.0
    %1326 = vmatprep.subr.mxu0 0.0
    %1327 = vmatpush1.msra.mxu0 0.0
    %1328 = vmatprep.subr.mxu0 0.0
    %1329 = vmatpush1.msra.mxu0 0.0
    %1330 = vmatprep.subr.mxu0 0.0
    %1331 = vmatpush1.msra.mxu0 0.0
    %1332 = vmatprep.subr.mxu0 0.0
    %1333 = vmatpush1.msra.mxu0 0.0
    %1334 = vmatprep.subr.mxu0 0.0
    %1335 = vmatpush1.msra.mxu0 0.0
    %1336 = vmatprep.subr.mxu0 0.0
    %1337 = vmatpush1.msra.mxu0 0.0
    %1338 = vmatprep.subr.mxu0 0.0
    %1339 = vmatpush1.msra.mxu0 0.0
    %1340 = vmatprep.subr.mxu0 0.0
    %1341 = vmatpush1.msra.mxu0 0.0
    %1342 = vmatprep.subr.mxu0 0.0
    %1343 = vmatpush1.msra.mxu0 0.0
    %1344 = vmatprep.subr.mxu0 0.0
    %1345 = vmatpush1.msra.mxu0 0.0
    %1346 = vmatprep.subr.mxu0 0.0
    %1347 = vmatpush1.msra.mxu0 0.0
    %1348 = vmatprep.subr.mxu0 0.0
    %1349 = vmatpush1.msra.mxu0 0.0
    %1350 = vmatprep.subr.mxu0 0.0
    %1351 = vmatpush1.msra.mxu0 0.0
    %1352 = vmatprep.subr.mxu0 0.0
    %1353 = vmatpush1.msra.mxu0 0.0
    %1354 = vmatprep.subr.mxu0 0.0
    %1355 = vmatpush1.msra.mxu0 0.0
    %1356 = vmatprep.subr.mxu0 0.0
    %1357 = vmatpush1.msra.mxu0 0.0
    %1358 = vmatprep.subr.mxu0 0.0
    %1359 = vmatpush1.msra.mxu0 0.0
    %1360 = vmatprep.mubr.f32.mxu0 0.0
    %1361 = vmatmul.mubr.f32.gmra.mrb[0].mxu0 %v1294
    %v1362 = vpop.f32.mrb[0].mxu0
    %v1363 = vadd.f32 0.0, %v1362
    %v1364 = vpop.f32.mrb[0].mxu0
    %1365 = vdwg.mxu0
    %1366 = vrot.lane.b32.xlu0 %v210, 64
    %v1367 = vpop.permute.xlu0 %1366
    %v1370 = vsel %vm215, %v908, 0
    %1372 = vmatprep.subr.mxu0 0.0
    %1373 = vmatpush1.msra.mxu0 %v1367
    %1374 = vmatprep.subr.mxu0 0.0
    %1375 = vmatpush1.msra.mxu0 0.0
    %1376 = vmatprep.subr.mxu0 0.0
    %1377 = vmatpush1.msra.mxu0 0.0
    %1378 = vmatprep.subr.mxu0 0.0
    %1379 = vmatpush1.msra.mxu0 0.0
    %1380 = vmatprep.subr.mxu0 0.0
    %1381 = vmatpush1.msra.mxu0 0.0
    %1382 = vmatprep.subr.mxu0 0.0
    %1383 = vmatpush1.msra.mxu0 0.0
    %1384 = vmatprep.subr.mxu0 0.0
    %1385 = vmatpush1.msra.mxu0 0.0
    %1386 = vmatprep.subr.mxu0 0.0
    %1387 = vmatpush1.msra.mxu0 0.0
    %1388 = vmatprep.subr.mxu0 0.0
    %1389 = vmatpush1.msra.mxu0 0.0
    %1390 = vmatprep.subr.mxu0 0.0
    %1391 = vmatpush1.msra.mxu0 0.0
    %1392 = vmatprep.subr.mxu0 0.0
    %1393 = vmatpush1.msra.mxu0 0.0
    %1394 = vmatprep.subr.mxu0 0.0
    %1395 = vmatpush1.msra.mxu0 0.0
    %1396 = vmatprep.subr.mxu0 0.0
    %1397 = vmatpush1.msra.mxu0 0.0
    %1398 = vmatprep.subr.mxu0 0.0
    %1399 = vmatpush1.msra.mxu0 0.0
    %1400 = vmatprep.subr.mxu0 0.0
    %1401 = vmatpush1.msra.mxu0 0.0
    %1402 = vmatprep.subr.mxu0 0.0
    %1403 = vmatpush1.msra.mxu0 0.0
    %1404 = vmatprep.subr.mxu0 0.0
    %1405 = vmatpush1.msra.mxu0 0.0
    %1406 = vmatprep.subr.mxu0 0.0
    %1407 = vmatpush1.msra.mxu0 0.0
    %1408 = vmatprep.subr.mxu0 0.0
    %1409 = vmatpush1.msra.mxu0 0.0
    %1410 = vmatprep.subr.mxu0 0.0
    %1411 = vmatpush1.msra.mxu0 0.0
    %1412 = vmatprep.subr.mxu0 0.0
    %1413 = vmatpush1.msra.mxu0 0.0
    %1414 = vmatprep.subr.mxu0 0.0
    %1415 = vmatpush1.msra.mxu0 0.0
    %1416 = vmatprep.subr.mxu0 0.0
    %1417 = vmatpush1.msra.mxu0 0.0
    %1418 = vmatprep.subr.mxu0 0.0
    %1419 = vmatpush1.msra.mxu0 0.0
    %1420 = vmatprep.subr.mxu0 0.0
    %1421 = vmatpush1.msra.mxu0 0.0
    %1422 = vmatprep.subr.mxu0 0.0
    %1423 = vmatpush1.msra.mxu0 0.0
    %1424 = vmatprep.subr.mxu0 0.0
    %1425 = vmatpush1.msra.mxu0 0.0
    %1426 = vmatprep.subr.mxu0 0.0
    %1427 = vmatpush1.msra.mxu0 0.0
    %1428 = vmatprep.subr.mxu0 0.0
    %1429 = vmatpush1.msra.mxu0 0.0
    %1430 = vmatprep.subr.mxu0 0.0
    %1431 = vmatpush1.msra.mxu0 0.0
    %1432 = vmatprep.subr.mxu0 0.0
    %1433 = vmatpush1.msra.mxu0 0.0
    %1434 = vmatprep.subr.mxu0 0.0
    %1435 = vmatpush1.msra.mxu0 0.0
    %1436 = vmatprep.mubr.f32.mxu0 0.0
    %1437 = vmatmul.mubr.f32.gmra.mrb[0].mxu0 %v1370
    %v1438 = vpop.f32.mrb[0].mxu0
    %v1439 = vadd.f32 0.0, %v1438
    %v1440 = vpop.f32.mrb[0].mxu0
    %1441 = vdwg.mxu0
    %1442 = vrot.lane.b32.xlu0 %v212, 64
    %v1443 = vpop.permute.xlu0 %1442
    %v1446 = vsel %vm215, %v909, 0
    %1448 = vmatprep.subr.mxu0 0.0
    %1449 = vmatpush1.msra.mxu0 %v1443
    %1450 = vmatprep.subr.mxu0 0.0
    %1451 = vmatpush1.msra.mxu0 0.0
    %1452 = vmatprep.subr.mxu0 0.0
    %1453 = vmatpush1.msra.mxu0 0.0
    %1454 = vmatprep.subr.mxu0 0.0
    %1455 = vmatpush1.msra.mxu0 0.0
    %1456 = vmatprep.subr.mxu0 0.0
    %1457 = vmatpush1.msra.mxu0 0.0
    %1458 = vmatprep.subr.mxu0 0.0
    %1459 = vmatpush1.msra.mxu0 0.0
    %1460 = vmatprep.subr.mxu0 0.0
    %1461 = vmatpush1.msra.mxu0 0.0
    %1462 = vmatprep.subr.mxu0 0.0
    %1463 = vmatpush1.msra.mxu0 0.0
    %1464 = vmatprep.subr.mxu0 0.0
    %1465 = vmatpush1.msra.mxu0 0.0
    %1466 = vmatprep.subr.mxu0 0.0
    %1467 = vmatpush1.msra.mxu0 0.0
    %1468 = vmatprep.subr.mxu0 0.0
    %1469 = vmatpush1.msra.mxu0 0.0
    %1470 = vmatprep.subr.mxu0 0.0
    %1471 = vmatpush1.msra.mxu0 0.0
    %1472 = vmatprep.subr.mxu0 0.0
    %1473 = vmatpush1.msra.mxu0 0.0
    %1474 = vmatprep.subr.mxu0 0.0
    %1475 = vmatpush1.msra.mxu0 0.0
    %1476 = vmatprep.subr.mxu0 0.0
    %1477 = vmatpush1.msra.mxu0 0.0
    %1478 = vmatprep.subr.mxu0 0.0
    %1479 = vmatpush1.msra.mxu0 0.0
    %1480 = vmatprep.subr.mxu0 0.0
    %1481 = vmatpush1.msra.mxu0 0.0
    %1482 = vmatprep.subr.mxu0 0.0
    %1483 = vmatpush1.msra.mxu0 0.0
    %1484 = vmatprep.subr.mxu0 0.0
    %1485 = vmatpush1.msra.mxu0 0.0
    %1486 = vmatprep.subr.mxu0 0.0
    %1487 = vmatpush1.msra.mxu0 0.0
    %1488 = vmatprep.subr.mxu0 0.0
    %1489 = vmatpush1.msra.mxu0 0.0
    %1490 = vmatprep.subr.mxu0 0.0
    %1491 = vmatpush1.msra.mxu0 0.0
    %1492 = vmatprep.subr.mxu0 0.0
    %1493 = vmatpush1.msra.mxu0 0.0
    %1494 = vmatprep.subr.mxu0 0.0
    %1495 = vmatpush1.msra.mxu0 0.0
    %1496 = vmatprep.subr.mxu0 0.0
    %1497 = vmatpush1.msra.mxu0 0.0
    %1498 = vmatprep.subr.mxu0 0.0
    %1499 = vmatpush1.msra.mxu0 0.0
    %1500 = vmatprep.subr.mxu0 0.0
    %1501 = vmatpush1.msra.mxu0 0.0
    %1502 = vmatprep.subr.mxu0 0.0
    %1503 = vmatpush1.msra.mxu0 0.0
    %1504 = vmatprep.subr.mxu0 0.0
    %1505 = vmatpush1.msra.mxu0 0.0
    %1506 = vmatprep.subr.mxu0 0.0
    %1507 = vmatpush1.msra.mxu0 0.0
    %1508 = vmatprep.subr.mxu0 0.0
    %1509 = vmatpush1.msra.mxu0 0.0
    %1510 = vmatprep.subr.mxu0 0.0
    %1511 = vmatpush1.msra.mxu0 0.0
    %1512 = vmatprep.mubr.f32.mxu0 0.0
    %1513 = vmatmul.mubr.f32.gmra.mrb[0].mxu0 %v1446
    %v1514 = vpop.f32.mrb[0].mxu0
    %v1515 = vadd.f32 0.0, %v1514
    %v1516 = vpop.f32.mrb[0].mxu0
    %1517 = vdwg.mxu0
    %1520 = vrot.lane.b32.xlu0 %v1135, 8
    %v1521 = vpop.permute.xlu0 %1520
    %1522 = vrot.lane.b32.xlu0 %v1211, 8
    %v1523 = vpop.permute.xlu0 %1522
    %1528 = vrot.lane.b32.xlu0 %v1287, 16
    %v1529 = vpop.permute.xlu0 %1528
    %1530 = vrot.lane.b32.xlu0 %v1363, 16
    %v1531 = vpop.permute.xlu0 %1530
    %1536 = vrot.lane.b32.xlu0 %v1439, 24
    %v1537 = vpop.permute.xlu0 %1536
    %1538 = vrot.lane.b32.xlu0 %v1515, 24
    %v1539 = vpop.permute.xlu0 %1538
    %v1542 = vsel %vm215, %v983, %v1521
    %v1543 = vsel %vm215, %v1059, %v1523
    %vm1544 = vcmask 130048
    %v1545 = vsel %vm1544, %v1542, %v1529
    %v1546 = vsel %vm1544, %v1543, %v1531
    %vm1547 = vcmask 195584
    %v1548 = vsel %vm1547, %v1545, %v1537
    %v1549 = vsel %vm1547, %v1546, %v1539
    %v1550 = vld [vmem:[%s5] sm:$0xff]
    %v1551 = vld [vmem:[%s5 + $0x8] sm:$0xff]
    %v1552 = vld [vmem:[%s5 + $0x10] sm:$0xff]
    %v1553 = vld [vmem:[%s5 + $0x18] sm:$0xff]
    %v1555 = vsel %vm70, %v1548, 0
    %v1558 = vsel %vm70, %v1549, 0
    %1560 = vmatprep.subr.mxu0 0.0
    %1561 = vmatpush1.msra.mxu0 %v1550
    %1562 = vmatprep.subr.mxu0 0.0
    %1563 = vmatpush1.msra.mxu0 %v1551
    %1564 = vmatprep.subr.mxu0 0.0
    %1565 = vmatpush1.msra.mxu0 %v1552
    %1566 = vmatprep.subr.mxu0 0.0
    %1567 = vmatpush1.msra.mxu0 %v1553
    %1568 = vmatprep.subr.mxu0 0.0
    %1569 = vmatpush1.msra.mxu0 0.0
    %1570 = vmatprep.subr.mxu0 0.0
    %1571 = vmatpush1.msra.mxu0 0.0
    %1572 = vmatprep.subr.mxu0 0.0
    %1573 = vmatpush1.msra.mxu0 0.0
    %1574 = vmatprep.subr.mxu0 0.0
    %1575 = vmatpush1.msra.mxu0 0.0
    %1576 = vmatprep.subr.mxu0 0.0
    %1577 = vmatpush1.msra.mxu0 0.0
    %1578 = vmatprep.subr.mxu0 0.0
    %1579 = vmatpush1.msra.mxu0 0.0
    %1580 = vmatprep.subr.mxu0 0.0
    %1581 = vmatpush1.msra.mxu0 0.0
    %1582 = vmatprep.subr.mxu0 0.0
    %1583 = vmatpush1.msra.mxu0 0.0
    %1584 = vmatprep.subr.mxu0 0.0
    %1585 = vmatpush1.msra.mxu0 0.0
    %1586 = vmatprep.subr.mxu0 0.0
    %1587 = vmatpush1.msra.mxu0 0.0
    %1588 = vmatprep.subr.mxu0 0.0
    %1589 = vmatpush1.msra.mxu0 0.0
    %1590 = vmatprep.subr.mxu0 0.0
    %1591 = vmatpush1.msra.mxu0 0.0
    %1592 = vmatprep.subr.mxu0 0.0
    %1593 = vmatpush1.msra.mxu0 0.0
    %1594 = vmatprep.subr.mxu0 0.0
    %1595 = vmatpush1.msra.mxu0 0.0
    %1596 = vmatprep.subr.mxu0 0.0
    %1597 = vmatpush1.msra.mxu0 0.0
    %1598 = vmatprep.subr.mxu0 0.0
    %1599 = vmatpush1.msra.mxu0 0.0
    %1600 = vmatprep.subr.mxu0 0.0
    %1601 = vmatpush1.msra.mxu0 0.0
    %1602 = vmatprep.subr.mxu0 0.0
    %1603 = vmatpush1.msra.mxu0 0.0
    %1604 = vmatprep.subr.mxu0 0.0
    %1605 = vmatpush1.msra.mxu0 0.0
    %1606 = vmatprep.subr.mxu0 0.0
    %1607 = vmatpush1.msra.mxu0 0.0
    %1608 = vmatprep.subr.mxu0 0.0
    %1609 = vmatpush1.msra.mxu0 0.0
    %1610 = vmatprep.subr.mxu0 0.0
    %1611 = vmatpush1.msra.mxu0 0.0
    %1612 = vmatprep.subr.mxu0 0.0
    %1613 = vmatpush1.msra.mxu0 0.0
    %1614 = vmatprep.subr.mxu0 0.0
    %1615 = vmatpush1.msra.mxu0 0.0
    %1616 = vmatprep.subr.mxu0 0.0
    %1617 = vmatpush1.msra.mxu0 0.0
    %1618 = vmatprep.subr.mxu0 0.0
    %1619 = vmatpush1.msra.mxu0 0.0
    %1620 = vmatprep.subr.mxu0 0.0
    %1621 = vmatpush1.msra.mxu0 0.0
    %1622 = vmatprep.subr.mxu0 0.0
    %1623 = vmatpush1.msra.mxu0 0.0
    %1624 = vmatprep.mubr.f32.mxu0 0.0
    %1625 = vmatmul.mubr.f32.gmra.mrb[0].mxu0 %v1555
    %v1626 = vpop.f32.mrb[0].mxu0
    %v1627 = vadd.f32 0.0, %v1626
    %v1628 = vpop.f32.mrb[0].mxu0
    %1629 = vmatprep.mubr.f32.mxu0 0.0
    %1630 = vmatmul.mubr.f32.gmra.mrb[0].mxu0 %v1558
    %v1631 = vpop.f32.mrb[0].mxu0
    %v1632 = vadd.f32 0.0, %v1631
    %v1633 = vpop.f32.mrb[0].mxu0
    %1634 = vdwg.mxu0
    %v1635 = vadd.f32 %v60, %v1627
    %v1636 = vadd.f32 %v61, %v1632
    %v1637 = vld [vmem:[%s6] sm:$0x1]
    %v1639 = vlaneseq
    %v1640 = vshrl.u32 %v1639, 7
    %v1641 = vsub.s32 0, %v1640
    %v1642 = vrot.slane %v1637, %v1641
    %v1644 = vadd.f32 %v1635, %v1642
    %v1645 = vadd.f32 %v1636, %v1642
    %v1646 = vld [vmem:[%s7] sm:$0x1]
    %v1647 = vld [vmem:[%s8] sm:$0x1]
    %v1648 = vsel %vm70, %v1644, 0.0
    %1649 = vadd.xlane.f32.xlu0 %v1648
    %v1650 = vpop.xlane.xlu0 %1649
    %v1651 = vsel %vm70, %v1645, 0.0
    %1652 = vadd.xlane.f32.xlu0 %v1651
    %v1653 = vpop.xlane.xlu0 %1652
    %v1654 = vmul.f32 %v1650, %v77
    %v1655 = vmul.f32 %v1653, %v77
    %v1656 = vsub.f32 %v1644, %v1654
    %v1657 = vsub.f32 %v1645, %v1655
    %v1658 = vmul.f32 %v1656, %v1656
    %v1659 = vmul.f32 %v1657, %v1657
    %v1660 = vsel %vm70, %v1658, 0.0
    %1661 = vadd.xlane.f32.xlu0 %v1660
    %v1662 = vpop.xlane.xlu0 %1661
    %v1663 = vsel %vm70, %v1659, 0.0
    %1664 = vadd.xlane.f32.xlu0 %v1663
    %v1665 = vpop.xlane.xlu0 %1664
    %v1666 = vmul.f32 %v1662, %v77
    %v1667 = vmul.f32 %v1665, %v77
    %v1668 = vadd.f32 %v1666, 1e-05
    %v1669 = vadd.f32 %v1667, 1e-05
    %v1670 = vrsqrt.pop %v1668
    %v1671 = vrsqrt.pop %v1669
    %v1672 = vmul.f32 %v1656, %v1670
    %v1673 = vmul.f32 %v1657, %v1671
    %v1675 = vlaneseq
    %v1676 = vshrl.u32 %v1675, 7
    %v1677 = vsub.s32 0, %v1676
    %v1678 = vrot.slane %v1646, %v1677
    %v1680 = vmul.f32 %v1672, %v1678
    %v1681 = vmul.f32 %v1673, %v1678
    %v1683 = vlaneseq
    %v1684 = vshrl.u32 %v1683, 7
    %v1685 = vsub.s32 0, %v1684
    %v1686 = vrot.slane %v1647, %v1685
    %v1688 = vadd.f32 %v1680, %v1686
    %v1689 = vadd.f32 %v1681, %v1686
    %v1690 = vld [vmem:[%s9] sm:$0xff]
    %v1691 = vld [vmem:[%s9 + $0x8] sm:$0xff]
    %v1692 = vld [vmem:[%s9 + $0x10] sm:$0xff]
    %v1693 = vld [vmem:[%s9 + $0x18] sm:$0xff]
    %v1694 = vld [vmem:[%s10] sm:$0x1]
    %v1696 = vlaneseq
    %v1697 = vshrl.u32 %v1696, 7
    %v1698 = vsub.s32 0, %v1697
    %v1699 = vrot.slane %v1694, %v1698
    %v1702 = vsel %vm70, %v1688, 0
    %v1705 = vsel %vm70, %v1689, 0
    %1707 = vmatprep.subr.mxu0 0.0
    %1708 = vmatpush1.msra.mxu0 %v1690
    %1709 = vmatprep.subr.mxu0 0.0
    %1710 = vmatpush1.msra.mxu0 %v1691
    %1711 = vmatprep.subr.mxu0 0.0
    %1712 = vmatpush1.msra.mxu0 %v1692
    %1713 = vmatprep.subr.mxu0 0.0
    %1714 = vmatpush1.msra.mxu0 %v1693
    %1715 = vmatprep.subr.mxu0 0.0
    %1716 = vmatpush1.msra.mxu0 0.0
    %1717 = vmatprep.subr.mxu0 0.0
    %1718 = vmatpush1.msra.mxu0 0.0
    %1719 = vmatprep.subr.mxu0 0.0
    %1720 = vmatpush1.msra.mxu0 0.0
    %1721 = vmatprep.subr.mxu0 0.0
    %1722 = vmatpush1.msra.mxu0 0.0
    %1723 = vmatprep.subr.mxu0 0.0
    %1724 = vmatpush1.msra.mxu0 0.0
    %1725 = vmatprep.subr.mxu0 0.0
    %1726 = vmatpush1.msra.mxu0 0.0
    %1727 = vmatprep.subr.mxu0 0.0
    %1728 = vmatpush1.msra.mxu0 0.0
    %1729 = vmatprep.subr.mxu0 0.0
    %1730 = vmatpush1.msra.mxu0 0.0
    %1731 = vmatprep.subr.mxu0 0.0
    %1732 = vmatpush1.msra.mxu0 0.0
    %1733 = vmatprep.subr.mxu0 0.0
    %1734 = vmatpush1.msra.mxu0 0.0
    %1735 = vmatprep.subr.mxu0 0.0
    %1736 = vmatpush1.msra.mxu0 0.0
    %1737 = vmatprep.subr.mxu0 0.0
    %1738 = vmatpush1.msra.mxu0 0.0
    %1739 = vmatprep.subr.mxu0 0.0
    %1740 = vmatpush1.msra.mxu0 0.0
    %1741 = vmatprep.subr.mxu0 0.0
    %1742 = vmatpush1.msra.mxu0 0.0
    %1743 = vmatprep.subr.mxu0 0.0
    %1744 = vmatpush1.msra.mxu0 0.0
    %1745 = vmatprep.subr.mxu0 0.0
    %1746 = vmatpush1.msra.mxu0 0.0
    %1747 = vmatprep.subr.mxu0 0.0
    %1748 = vmatpush1.msra.mxu0 0.0
    %1749 = vmatprep.subr.mxu0 0.0
    %1750 = vmatpush1.msra.mxu0 0.0
    %1751 = vmatprep.subr.mxu0 0.0
    %1752 = vmatpush1.msra.mxu0 0.0
    %1753 = vmatprep.subr.mxu0 0.0
    %1754 = vmatpush1.msra.mxu0 0.0
    %1755 = vmatprep.subr.mxu0 0.0
    %1756 = vmatpush1.msra.mxu0 0.0
    %1757 = vmatprep.subr.mxu0 0.0
    %1758 = vmatpush1.msra.mxu0 0.0
    %1759 = vmatprep.subr.mxu0 0.0
    %1760 = vmatpush1.msra.mxu0 0.0
    %1761 = vmatprep.subr.mxu0 0.0
    %1762 = vmatpush1.msra.mxu0 0.0
    %1763 = vmatprep.subr.mxu0 0.0
    %1764 = vmatpush1.msra.mxu0 0.0
    %1765 = vmatprep.subr.mxu0 0.0
    %1766 = vmatpush1.msra.mxu0 0.0
    %1767 = vmatprep.subr.mxu0 0.0
    %1768 = vmatpush1.msra.mxu0 0.0
    %1769 = vmatprep.subr.mxu0 0.0
    %1770 = vmatpush1.msra.mxu0 0.0
    %1771 = vmatprep.mubr.f32.mxu0 0.0
    %1772 = vmatmul.mubr.f32.gmra.mrb[0].mxu0 %v1702
    %v1773 = vpop.f32.mrb[0].mxu0
    %v1774 = vadd.f32 %v1699, %v1773
    %v1775 = vpop.f32.mrb[0].mxu0
    %1776 = vmatprep.mubr.f32.mxu0 0.0
    %1777 = vmatmul.mubr.f32.gmra.mrb[0].mxu0 %v1705
    %v1778 = vpop.f32.mrb[0].mxu0
    %v1779 = vadd.f32 %v1699, %v1778
    %v1780 = vpop.f32.mrb[0].mxu0
    %1781 = vdwg.mxu0
    %v1782 = vmax.f32 %v1774, 0.0
    %v1783 = vmax.f32 %v1779, 0.0
    %v1784 = vld [vmem:[%s11] sm:$0xff]
    %v1785 = vld [vmem:[%s11 + $0x8] sm:$0xff]
    %v1786 = vld [vmem:[%s11 + $0x10] sm:$0xff]
    %v1787 = vld [vmem:[%s11 + $0x18] sm:$0xff]
    %v1788 = vld [vmem:[%s11 + $0x20] sm:$0xff]
    %v1789 = vld [vmem:[%s11 + $0x28] sm:$0xff]
    %v1790 = vld [vmem:[%s11 + $0x30] sm:$0xff]
    %v1791 = vld [vmem:[%s11 + $0x38] sm:$0xff]
    %v1792 = vld [vmem:[%s11 + $0x40] sm:$0xff]
    %v1793 = vld [vmem:[%s11 + $0x48] sm:$0xff]
    %v1794 = vld [vmem:[%s11 + $0x50] sm:$0xff]
    %v1795 = vld [vmem:[%s11 + $0x58] sm:$0xff]
    %v1796 = vld [vmem:[%s11 + $0x60] sm:$0xff]
    %v1797 = vld [vmem:[%s11 + $0x68] sm:$0xff]
    %v1798 = vld [vmem:[%s11 + $0x70] sm:$0xff]
    %v1799 = vld [vmem:[%s11 + $0x78] sm:$0xff]
    %1800 = vmatprep.subr.mxu0 0.0
    %1801 = vmatpush1.msra.mxu0 %v1784
    %1802 = vmatprep.subr.mxu0 0.0
    %1803 = vmatpush1.msra.mxu0 %v1785
    %1804 = vmatprep.subr.mxu0 0.0
    %1805 = vmatpush1.msra.mxu0 %v1786
    %1806 = vmatprep.subr.mxu0 0.0
    %1807 = vmatpush1.msra.mxu0 %v1787
    %1808 = vmatprep.subr.mxu0 0.0
    %1809 = vmatpush1.msra.mxu0 %v1788
    %1810 = vmatprep.subr.mxu0 0.0
    %1811 = vmatpush1.msra.mxu0 %v1789
    %1812 = vmatprep.subr.mxu0 0.0
    %1813 = vmatpush1.msra.mxu0 %v1790
    %1814 = vmatprep.subr.mxu0 0.0
    %1815 = vmatpush1.msra.mxu0 %v1791
    %1816 = vmatprep.subr.mxu0 0.0
    %1817 = vmatpush1.msra.mxu0 %v1792
    %1818 = vmatprep.subr.mxu0 0.0
    %1819 = vmatpush1.msra.mxu0 %v1793
    %1820 = vmatprep.subr.mxu0 0.0
    %1821 = vmatpush1.msra.mxu0 %v1794
    %1822 = vmatprep.subr.mxu0 0.0
    %1823 = vmatpush1.msra.mxu0 %v1795
    %1824 = vmatprep.subr.mxu0 0.0
    %1825 = vmatpush1.msra.mxu0 %v1796
    %1826 = vmatprep.subr.mxu0 0.0
    %1827 = vmatpush1.msra.mxu0 %v1797
    %1828 = vmatprep.subr.mxu0 0.0
    %1829 = vmatpush1.msra.mxu0 %v1798
    %1830 = vmatprep.subr.mxu0 0.0
    %1831 = vmatpush1.msra.mxu0 %v1799
    %1832 = vmatprep.subr.mxu0 0.0
    %1833 = vmatpush1.msra.mxu0 0.0
    %1834 = vmatprep.subr.mxu0 0.0
    %1835 = vmatpush1.msra.mxu0 0.0
    %1836 = vmatprep.subr.mxu0 0.0
    %1837 = vmatpush1.msra.mxu0 0.0
    %1838 = vmatprep.subr.mxu0 0.0
    %1839 = vmatpush1.msra.mxu0 0.0
    %1840 = vmatprep.subr.mxu0 0.0
    %1841 = vmatpush1.msra.mxu0 0.0
    %1842 = vmatprep.subr.mxu0 0.0
    %1843 = vmatpush1.msra.mxu0 0.0
    %1844 = vmatprep.subr.mxu0 0.0
    %1845 = vmatpush1.msra.mxu0 0.0
    %1846 = vmatprep.subr.mxu0 0.0
    %1847 = vmatpush1.msra.mxu0 0.0
    %1848 = vmatprep.subr.mxu0 0.0
    %1849 = vmatpush1.msra.mxu0 0.0
    %1850 = vmatprep.subr.mxu0 0.0
    %1851 = vmatpush1.msra.mxu0 0.0
    %1852 = vmatprep.subr.mxu0 0.0
    %1853 = vmatpush1.msra.mxu0 0.0
    %1854 = vmatprep.subr.mxu0 0.0
    %1855 = vmatpush1.msra.mxu0 0.0
    %1856 = vmatprep.subr.mxu0 0.0
    %1857 = vmatpush1.msra.mxu0 0.0
    %1858 = vmatprep.subr.mxu0 0.0
    %1859 = vmatpush1.msra.mxu0 0.0
    %1860 = vmatprep.subr.mxu0 0.0
    %1861 = vmatpush1.msra.mxu0 0.0
    %1862 = vmatprep.subr.mxu0 0.0
    %1863 = vmatpush1.msra.mxu0 0.0
    %1864 = vmatprep.mubr.f32.mxu0 0.0
    %1865 = vmatmul.mubr.f32.gmra.mrb[0].mxu0 %v1782
    %v1866 = vpop.f32.mrb[0].mxu0
    %v1867 = vadd.f32 0.0, %v1866
    %v1868 = vpop.f32.mrb[0].mxu0
    %1869 = vmatprep.mubr.f32.mxu0 0.0
    %1870 = vmatmul.mubr.f32.gmra.mrb[0].mxu0 %v1783
    %v1871 = vpop.f32.mrb[0].mxu0
    %v1872 = vadd.f32 0.0, %v1871
    %v1873 = vpop.f32.mrb[0].mxu0
    %1874 = vdwg.mxu0
    %v1875 = vadd.f32 %v1644, %v1867
    %v1876 = vadd.f32 %v1645, %v1872
    %v1877 = vld [vmem:[%s12] sm:$0x1]
    %v1879 = vlaneseq
    %v1880 = vshrl.u32 %v1879, 7
    %v1881 = vsub.s32 0, %v1880
    %v1882 = vrot.slane %v1877, %v1881
    %v1884 = vadd.f32 %v1875, %v1882
    %v1885 = vadd.f32 %v1876, %v1882
    %s1886 = scalar_lea.vmem %s2, 1
    %v1887 = vld [vmem:[%s1886] sm:$0x1]
    %s1888 = scalar_lea.vmem %s3, 1
    %v1889 = vld [vmem:[%s1888] sm:$0x1]
    %v1890 = vsel %vm70, %v1884, 0.0
    %1891 = vadd.xlane.f32.xlu0 %v1890
    %v1892 = vpop.xlane.xlu0 %1891
    %v1893 = vsel %vm70, %v1885, 0.0
    %1894 = vadd.xlane.f32.xlu0 %v1893
    %v1895 = vpop.xlane.xlu0 %1894
    %v1896 = vmul.f32 %v1892, %v77
    %v1897 = vmul.f32 %v1895, %v77
    %v1898 = vsub.f32 %v1884, %v1896
    %v1899 = vsub.f32 %v1885, %v1897
    %v1900 = vmul.f32 %v1898, %v1898
    %v1901 = vmul.f32 %v1899, %v1899
    %v1902 = vsel %vm70, %v1900, 0.0
    %1903 = vadd.xlane.f32.xlu0 %v1902
    %v1904 = vpop.xlane.xlu0 %1903
    %v1905 = vsel %vm70, %v1901, 0.0
    %1906 = vadd.xlane.f32.xlu0 %v1905
    %v1907 = vpop.xlane.xlu0 %1906
    %v1908 = vmul.f32 %v1904, %v77
    %v1909 = vmul.f32 %v1907, %v77
    %v1910 = vadd.f32 %v1908, 1e-05
    %v1911 = vadd.f32 %v1909, 1e-05
    %v1912 = vrsqrt.pop %v1910
    %v1913 = vrsqrt.pop %v1911
    %v1914 = vmul.f32 %v1898, %v1912
    %v1915 = vmul.f32 %v1899, %v1913
    %v1917 = vlaneseq
    %v1918 = vshrl.u32 %v1917, 7
    %v1919 = vsub.s32 0, %v1918
    %v1920 = vrot.slane %v1887, %v1919
    %v1922 = vmul.f32 %v1914, %v1920
    %v1923 = vmul.f32 %v1915, %v1920
    %v1925 = vlaneseq
    %v1926 = vshrl.u32 %v1925, 7
    %v1927 = vsub.s32 0, %v1926
    %v1928 = vrot.slane %v1889, %v1927
    %v1930 = vadd.f32 %v1922, %v1928
    %v1931 = vadd.f32 %v1923, %v1928
    %s1932 = scalar_lea.vmem %s4, 32
    %v1933 = vld [vmem:[%s1932] sm:$0xff]
    %v1934 = vld [vmem:[%s1932 + $0x8] sm:$0xff]
    %v1935 = vld [vmem:[%s1932 + $0x10] sm:$0xff]
    %v1936 = vld [vmem:[%s1932 + $0x18] sm:$0xff]
    %v1938 = vsel %vm70, %v1930, 0
    %v1941 = vsel %vm70, %v1931, 0
    %1943 = vmatprep.subr.mxu0 0.0
    %1944 = vmatpush1.msra.mxu0 %v1933
    %1945 = vmatprep.subr.mxu0 0.0
    %1946 = vmatpush1.msra.mxu0 %v1934
    %1947 = vmatprep.subr.mxu0 0.0
    %1948 = vmatpush1.msra.mxu0 %v1935
    %1949 = vmatprep.subr.mxu0 0.0
    %1950 = vmatpush1.msra.mxu0 %v1936
    %1951 = vmatprep.subr.mxu0 0.0
    %1952 = vmatpush1.msra.mxu0 0.0
    %1953 = vmatprep.subr.mxu0 0.0
    %1954 = vmatpush1.msra.mxu0 0.0
    %1955 = vmatprep.subr.mxu0 0.0
    %1956 = vmatpush1.msra.mxu0 0.0
    %1957 = vmatprep.subr.mxu0 0.0
    %1958 = vmatpush1.msra.mxu0 0.0
    %1959 = vmatprep.subr.mxu0 0.0
    %1960 = vmatpush1.msra.mxu0 0.0
    %1961 = vmatprep.subr.mxu0 0.0
    %1962 = vmatpush1.msra.mxu0 0.0
    %1963 = vmatprep.subr.mxu0 0.0
    %1964 = vmatpush1.msra.mxu0 0.0
    %1965 = vmatprep.subr.mxu0 0.0
    %1966 = vmatpush1.msra.mxu0 0.0
    %1967 = vmatprep.subr.mxu0 0.0
    %1968 = vmatpush1.msra.mxu0 0.0
    %1969 = vmatprep.subr.mxu0 0.0
    %1970 = vmatpush1.msra.mxu0 0.0
    %1971 = vmatprep.subr.mxu0 0.0
    %1972 = vmatpush1.msra.mxu0 0.0
    %1973 = vmatprep.subr.mxu0 0.0
    %1974 = vmatpush1.msra.mxu0 0.0
    %1975 = vmatprep.subr.mxu0 0.0
    %1976 = vmatpush1.msra.mxu0 0.0
    %1977 = vmatprep.subr.mxu0 0.0
    %1978 = vmatpush1.msra.mxu0 0.0
    %1979 = vmatprep.subr.mxu0 0.0
    %1980 = vmatpush1.msra.mxu0 0.0
    %1981 = vmatprep.subr.mxu0 0.0
    %1982 = vmatpush1.msra.mxu0 0.0
    %1983 = vmatprep.subr.mxu0 0.0
    %1984 = vmatpush1.msra.mxu0 0.0
    %1985 = vmatprep.subr.mxu0 0.0
    %1986 = vmatpush1.msra.mxu0 0.0
    %1987 = vmatprep.subr.mxu0 0.0
    %1988 = vmatpush1.msra.mxu0 0.0
    %1989 = vmatprep.subr.mxu0 0.0
    %1990 = vmatpush1.msra.mxu0 0.0
    %1991 = vmatprep.subr.mxu0 0.0
    %1992 = vmatpush1.msra.mxu0 0.0
    %1993 = vmatprep.subr.mxu0 0.0
    %1994 = vmatpush1.msra.mxu0 0.0
    %1995 = vmatprep.subr.mxu0 0.0
    %1996 = vmatpush1.msra.mxu0 0.0
    %1997 = vmatprep.subr.mxu0 0.0
    %1998 = vmatpush1.msra.mxu0 0.0
    %1999 = vmatprep.subr.mxu0 0.0
    %2000 = vmatpush1.msra.mxu0 0.0
    %2001 = vmatprep.subr.mxu0 0.0
    %2002 = vmatpush1.msra.mxu0 0.0
    %2003 = vmatprep.subr.mxu0 0.0
    %2004 = vmatpush1.msra.mxu0 0.0
    %2005 = vmatprep.subr.mxu0 0.0
    %2006 = vmatpush1.msra.mxu0 0.0
    %2007 = vmatprep.mubr.f32.mxu0 0.0
    %2008 = vmatmul.mubr.f32.gmra.mrb[0].mxu0 %v1938
    %v2009 = vpop.f32.mrb[0].mxu0
    %v2010 = vadd.f32 0.0, %v2009
    %v2011 = vpop.f32.mrb[0].mxu0
    %2012 = vmatprep.mubr.f32.mxu0 0.0
    %2013 = vmatmul.mubr.f32.gmra.mrb[0].mxu0 %v1941
    %v2014 = vpop.f32.mrb[0].mxu0
    %v2015 = vadd.f32 0.0, %v2014
    %v2016 = vpop.f32.mrb[0].mxu0
    %2017 = vdwg.mxu0
    %2020 = vrot.lane.b32.xlu0 %v2010, 120
    %v2021 = vpop.permute.xlu0 %2020
    %2022 = vrot.lane.b32.xlu0 %v2015, 120
    %v2023 = vpop.permute.xlu0 %2022
    %2024 = vrot.lane.b32.xlu0 %v2010, 112
    %v2025 = vpop.permute.xlu0 %2024
    %2026 = vrot.lane.b32.xlu0 %v2015, 112
    %v2027 = vpop.permute.xlu0 %2026
    %2028 = vrot.lane.b32.xlu0 %v2010, 104
    %v2029 = vpop.permute.xlu0 %2028
    %2030 = vrot.lane.b32.xlu0 %v2015, 104
    %v2031 = vpop.permute.xlu0 %2030
    %2032 = vrot.lane.b32.xlu0 %v2010, 96
    %v2033 = vpop.permute.xlu0 %2032
    %v2034 = vsel %vm215, %v2010, 0
    %v2036 = vsel %vm215, %v2033, 0
    %2038 = vmatprep.subr.mxu0 0.0
    %2039 = vmatpush1.xpose.msra.mxu0 %v2036
    %2040 = vmatprep.subr.mxu0 0.0
    %2041 = vmatpush1.xpose.msra.mxu0 0.0
    %2042 = vmatprep.subr.mxu0 0.0
    %2043 = vmatpush1.xpose.msra.mxu0 0.0
    %2044 = vmatprep.subr.mxu0 0.0
    %2045 = vmatpush1.xpose.msra.mxu0 0.0
    %2046 = vmatprep.subr.mxu0 0.0
    %2047 = vmatpush1.xpose.msra.mxu0 0.0
    %2048 = vmatprep.subr.mxu0 0.0
    %2049 = vmatpush1.xpose.msra.mxu0 0.0
    %2050 = vmatprep.subr.mxu0 0.0
    %2051 = vmatpush1.xpose.msra.mxu0 0.0
    %2052 = vmatprep.subr.mxu0 0.0
    %2053 = vmatpush1.xpose.msra.mxu0 0.0
    %2054 = vmatprep.subr.mxu0 0.0
    %2055 = vmatpush1.xpose.msra.mxu0 0.0
    %2056 = vmatprep.subr.mxu0 0.0
    %2057 = vmatpush1.xpose.msra.mxu0 0.0
    %2058 = vmatprep.subr.mxu0 0.0
    %2059 = vmatpush1.xpose.msra.mxu0 0.0
    %2060 = vmatprep.subr.mxu0 0.0
    %2061 = vmatpush1.xpose.msra.mxu0 0.0
    %2062 = vmatprep.subr.mxu0 0.0
    %2063 = vmatpush1.xpose.msra.mxu0 0.0
    %2064 = vmatprep.subr.mxu0 0.0
    %2065 = vmatpush1.xpose.msra.mxu0 0.0
    %2066 = vmatprep.subr.mxu0 0.0
    %2067 = vmatpush1.xpose.msra.mxu0 0.0
    %2068 = vmatprep.subr.mxu0 0.0
    %2069 = vmatpush1.xpose.msra.mxu0 0.0
    %2070 = vmatprep.subr.mxu0 0.0
    %2071 = vmatpush1.xpose.msra.mxu0 0.0
    %2072 = vmatprep.subr.mxu0 0.0
    %2073 = vmatpush1.xpose.msra.mxu0 0.0
    %2074 = vmatprep.subr.mxu0 0.0
    %2075 = vmatpush1.xpose.msra.mxu0 0.0
    %2076 = vmatprep.subr.mxu0 0.0
    %2077 = vmatpush1.xpose.msra.mxu0 0.0
    %2078 = vmatprep.subr.mxu0 0.0
    %2079 = vmatpush1.xpose.msra.mxu0 0.0
    %2080 = vmatprep.subr.mxu0 0.0
    %2081 = vmatpush1.xpose.msra.mxu0 0.0
    %2082 = vmatprep.subr.mxu0 0.0
    %2083 = vmatpush1.xpose.msra.mxu0 0.0
    %2084 = vmatprep.subr.mxu0 0.0
    %2085 = vmatpush1.xpose.msra.mxu0 0.0
    %2086 = vmatprep.subr.mxu0 0.0
    %2087 = vmatpush1.xpose.msra.mxu0 0.0
    %2088 = vmatprep.subr.mxu0 0.0
    %2089 = vmatpush1.xpose.msra.mxu0 0.0
    %2090 = vmatprep.subr.mxu0 0.0
    %2091 = vmatpush1.xpose.msra.mxu0 0.0
    %2092 = vmatprep.subr.mxu0 0.0
    %2093 = vmatpush1.xpose.msra.mxu0 0.0
    %2094 = vmatprep.subr.mxu0 0.0
    %2095 = vmatpush1.xpose.msra.mxu0 0.0
    %2096 = vmatprep.subr.mxu0 0.0
    %2097 = vmatpush1.xpose.msra.mxu0 0.0
    %2098 = vmatprep.subr.mxu0 0.0
    %2099 = vmatpush1.xpose.msra.mxu0 0.0
    %2100 = vmatprep.subr.mxu0 0.0
    %2101 = vmatpush1.xpose.msra.mxu0 0.0
    %2102 = vmatprep.mubr.f32.mxu0 0.0
    %2103 = vmatmul.mubr.f32.gmra.mrb[0].mxu0 %v2034
    %v2104 = vpop.f32.mrb[0].mxu0
    %v2105 = vadd.f32 %v67, %v2104
    %v2106 = vpop.f32.mrb[0].mxu0
    %2107 = vdwg.mxu0
    %2108 = vrot.lane.b32.xlu0 %v2015, 96
    %v2109 = vpop.permute.xlu0 %2108
    %v2110 = vsel %vm215, %v2015, 0
    %v2112 = vsel %vm215, %v2109, 0
    %2114 = vmatprep.subr.mxu0 0.0
    %2115 = vmatpush1.xpose.msra.mxu0 %v2112
    %2116 = vmatprep.subr.mxu0 0.0
    %2117 = vmatpush1.xpose.msra.mxu0 0.0
    %2118 = vmatprep.subr.mxu0 0.0
    %2119 = vmatpush1.xpose.msra.mxu0 0.0
    %2120 = vmatprep.subr.mxu0 0.0
    %2121 = vmatpush1.xpose.msra.mxu0 0.0
    %2122 = vmatprep.subr.mxu0 0.0
    %2123 = vmatpush1.xpose.msra.mxu0 0.0
    %2124 = vmatprep.subr.mxu0 0.0
    %2125 = vmatpush1.xpose.msra.mxu0 0.0
    %2126 = vmatprep.subr.mxu0 0.0
    %2127 = vmatpush1.xpose.msra.mxu0 0.0
    %2128 = vmatprep.subr.mxu0 0.0
    %2129 = vmatpush1.xpose.msra.mxu0 0.0
    %2130 = vmatprep.subr.mxu0 0.0
    %2131 = vmatpush1.xpose.msra.mxu0 0.0
    %2132 = vmatprep.subr.mxu0 0.0
    %2133 = vmatpush1.xpose.msra.mxu0 0.0
    %2134 = vmatprep.subr.mxu0 0.0
    %2135 = vmatpush1.xpose.msra.mxu0 0.0
    %2136 = vmatprep.subr.mxu0 0.0
    %2137 = vmatpush1.xpose.msra.mxu0 0.0
    %2138 = vmatprep.subr.mxu0 0.0
    %2139 = vmatpush1.xpose.msra.mxu0 0.0
    %2140 = vmatprep.subr.mxu0 0.0
    %2141 = vmatpush1.xpose.msra.mxu0 0.0
    %2142 = vmatprep.subr.mxu0 0.0
    %2143 = vmatpush1.xpose.msra.mxu0 0.0
    %2144 = vmatprep.subr.mxu0 0.0
    %2145 = vmatpush1.xpose.msra.mxu0 0.0
    %2146 = vmatprep.subr.mxu0 0.0
    %2147 = vmatpush1.xpose.msra.mxu0 0.0
    %2148 = vmatprep.subr.mxu0 0.0
    %2149 = vmatpush1.xpose.msra.mxu0 0.0
    %2150 = vmatprep.subr.mxu0 0.0
    %2151 = vmatpush1.xpose.msra.mxu0 0.0
    %2152 = vmatprep.subr.mxu0 0.0
    %2153 = vmatpush1.xpose.msra.mxu0 0.0
    %2154 = vmatprep.subr.mxu0 0.0
    %2155 = vmatpush1.xpose.msra.mxu0 0.0
    %2156 = vmatprep.subr.mxu0 0.0
    %2157 = vmatpush1.xpose.msra.mxu0 0.0
    %2158 = vmatprep.subr.mxu0 0.0
    %2159 = vmatpush1.xpose.msra.mxu0 0.0
    %2160 = vmatprep.subr.mxu0 0.0
    %2161 = vmatpush1.xpose.msra.mxu0 0.0
    %2162 = vmatprep.subr.mxu0 0.0
    %2163 = vmatpush1.xpose.msra.mxu0 0.0
    %2164 = vmatprep.subr.mxu0 0.0
    %2165 = vmatpush1.xpose.msra.mxu0 0.0
    %2166 = vmatprep.subr.mxu0 0.0
    %2167 = vmatpush1.xpose.msra.mxu0 0.0
    %2168 = vmatprep.subr.mxu0 0.0
    %2169 = vmatpush1.xpose.msra.mxu0 0.0
    %2170 = vmatprep.subr.mxu0 0.0
    %2171 = vmatpush1.xpose.msra.mxu0 0.0
    %2172 = vmatprep.subr.mxu0 0.0
    %2173 = vmatpush1.xpose.msra.mxu0 0.0
    %2174 = vmatprep.subr.mxu0 0.0
    %2175 = vmatpush1.xpose.msra.mxu0 0.0
    %2176 = vmatprep.subr.mxu0 0.0
    %2177 = vmatpush1.xpose.msra.mxu0 0.0
    %2178 = vmatprep.mubr.f32.mxu0 0.0
    %2179 = vmatmul.mubr.f32.gmra.mrb[0].mxu0 %v2110
    %v2180 = vpop.f32.mrb[0].mxu0
    %v2181 = vadd.f32 %v67, %v2180
    %v2182 = vpop.f32.mrb[0].mxu0
    %2183 = vdwg.mxu0
    %2184 = vrot.lane.b32.xlu0 %v2021, 96
    %v2185 = vpop.permute.xlu0 %2184
    %v2186 = vsel %vm215, %v2021, 0
    %v2188 = vsel %vm215, %v2185, 0
    %2190 = vmatprep.subr.mxu0 0.0
    %2191 = vmatpush1.xpose.msra.mxu0 %v2188
    %2192 = vmatprep.subr.mxu0 0.0
    %2193 = vmatpush1.xpose.msra.mxu0 0.0
    %2194 = vmatprep.subr.mxu0 0.0
    %2195 = vmatpush1.xpose.msra.mxu0 0.0
    %2196 = vmatprep.subr.mxu0 0.0
    %2197 = vmatpush1.xpose.msra.mxu0 0.0
    %2198 = vmatprep.subr.mxu0 0.0
    %2199 = vmatpush1.xpose.msra.mxu0 0.0
    %2200 = vmatprep.subr.mxu0 0.0
    %2201 = vmatpush1.xpose.msra.mxu0 0.0
    %2202 = vmatprep.subr.mxu0 0.0
    %2203 = vmatpush1.xpose.msra.mxu0 0.0
    %2204 = vmatprep.subr.mxu0 0.0
    %2205 = vmatpush1.xpose.msra.mxu0 0.0
    %2206 = vmatprep.subr.mxu0 0.0
    %2207 = vmatpush1.xpose.msra.mxu0 0.0
    %2208 = vmatprep.subr.mxu0 0.0
    %2209 = vmatpush1.xpose.msra.mxu0 0.0
    %2210 = vmatprep.subr.mxu0 0.0
    %2211 = vmatpush1.xpose.msra.mxu0 0.0
    %2212 = vmatprep.subr.mxu0 0.0
    %2213 = vmatpush1.xpose.msra.mxu0 0.0
    %2214 = vmatprep.subr.mxu0 0.0
    %2215 = vmatpush1.xpose.msra.mxu0 0.0
    %2216 = vmatprep.subr.mxu0 0.0
    %2217 = vmatpush1.xpose.msra.mxu0 0.0
    %2218 = vmatprep.subr.mxu0 0.0
    %2219 = vmatpush1.xpose.msra.mxu0 0.0
    %2220 = vmatprep.subr.mxu0 0.0
    %2221 = vmatpush1.xpose.msra.mxu0 0.0
    %2222 = vmatprep.subr.mxu0 0.0
    %2223 = vmatpush1.xpose.msra.mxu0 0.0
    %2224 = vmatprep.subr.mxu0 0.0
    %2225 = vmatpush1.xpose.msra.mxu0 0.0
    %2226 = vmatprep.subr.mxu0 0.0
    %2227 = vmatpush1.xpose.msra.mxu0 0.0
    %2228 = vmatprep.subr.mxu0 0.0
    %2229 = vmatpush1.xpose.msra.mxu0 0.0
    %2230 = vmatprep.subr.mxu0 0.0
    %2231 = vmatpush1.xpose.msra.mxu0 0.0
    %2232 = vmatprep.subr.mxu0 0.0
    %2233 = vmatpush1.xpose.msra.mxu0 0.0
    %2234 = vmatprep.subr.mxu0 0.0
    %2235 = vmatpush1.xpose.msra.mxu0 0.0
    %2236 = vmatprep.subr.mxu0 0.0
    %2237 = vmatpush1.xpose.msra.mxu0 0.0
    %2238 = vmatprep.subr.mxu0 0.0
    %2239 = vmatpush1.xpose.msra.mxu0 0.0
    %2240 = vmatprep.subr.mxu0 0.0
    %2241 = vmatpush1.xpose.msra.mxu0 0.0
    %2242 = vmatprep.subr.mxu0 0.0
    %2243 = vmatpush1.xpose.msra.mxu0 0.0
    %2244 = vmatprep.subr.mxu0 0.0
    %2245 = vmatpush1.xpose.msra.mxu0 0.0
    %2246 = vmatprep.subr.mxu0 0.0
    %2247 = vmatpush1.xpose.msra.mxu0 0.0
    %2248 = vmatprep.subr.mxu0 0.0
    %2249 = vmatpush1.xpose.msra.mxu0 0.0
    %2250 = vmatprep.subr.mxu0 0.0
    %2251 = vmatpush1.xpose.msra.mxu0 0.0
    %2252 = vmatprep.subr.mxu0 0.0
    %2253 = vmatpush1.xpose.msra.mxu0 0.0
    %2254 = vmatprep.mubr.f32.mxu0 0.0
    %2255 = vmatmul.mubr.f32.gmra.mrb[0].mxu0 %v2186
    %v2256 = vpop.f32.mrb[0].mxu0
    %v2257 = vadd.f32 %v67, %v2256
    %v2258 = vpop.f32.mrb[0].mxu0
    %2259 = vdwg.mxu0
    %2260 = vrot.lane.b32.xlu0 %v2023, 96
    %v2261 = vpop.permute.xlu0 %2260
    %v2262 = vsel %vm215, %v2023, 0
    %v2264 = vsel %vm215, %v2261, 0
    %2266 = vmatprep.subr.mxu0 0.0
    %2267 = vmatpush1.xpose.msra.mxu0 %v2264
    %2268 = vmatprep.subr.mxu0 0.0
    %2269 = vmatpush1.xpose.msra.mxu0 0.0
    %2270 = vmatprep.subr.mxu0 0.0
    %2271 = vmatpush1.xpose.msra.mxu0 0.0
    %2272 = vmatprep.subr.mxu0 0.0
    %2273 = vmatpush1.xpose.msra.mxu0 0.0
    %2274 = vmatprep.subr.mxu0 0.0
    %2275 = vmatpush1.xpose.msra.mxu0 0.0
    %2276 = vmatprep.subr.mxu0 0.0
    %2277 = vmatpush1.xpose.msra.mxu0 0.0
    %2278 = vmatprep.subr.mxu0 0.0
    %2279 = vmatpush1.xpose.msra.mxu0 0.0
    %2280 = vmatprep.subr.mxu0 0.0
    %2281 = vmatpush1.xpose.msra.mxu0 0.0
    %2282 = vmatprep.subr.mxu0 0.0
    %2283 = vmatpush1.xpose.msra.mxu0 0.0
    %2284 = vmatprep.subr.mxu0 0.0
    %2285 = vmatpush1.xpose.msra.mxu0 0.0
    %2286 = vmatprep.subr.mxu0 0.0
    %2287 = vmatpush1.xpose.msra.mxu0 0.0
    %2288 = vmatprep.subr.mxu0 0.0
    %2289 = vmatpush1.xpose.msra.mxu0 0.0
    %2290 = vmatprep.subr.mxu0 0.0
    %2291 = vmatpush1.xpose.msra.mxu0 0.0
    %2292 = vmatprep.subr.mxu0 0.0
    %2293 = vmatpush1.xpose.msra.mxu0 0.0
    %2294 = vmatprep.subr.mxu0 0.0
    %2295 = vmatpush1.xpose.msra.mxu0 0.0
    %2296 = vmatprep.subr.mxu0 0.0
    %2297 = vmatpush1.xpose.msra.mxu0 0.0
    %2298 = vmatprep.subr.mxu0 0.0
    %2299 = vmatpush1.xpose.msra.mxu0 0.0
    %2300 = vmatprep.subr.mxu0 0.0
    %2301 = vmatpush1.xpose.msra.mxu0 0.0
    %2302 = vmatprep.subr.mxu0 0.0
    %2303 = vmatpush1.xpose.msra.mxu0 0.0
    %2304 = vmatprep.subr.mxu0 0.0
    %2305 = vmatpush1.xpose.msra.mxu0 0.0
    %2306 = vmatprep.subr.mxu0 0.0
    %2307 = vmatpush1.xpose.msra.mxu0 0.0
    %2308 = vmatprep.subr.mxu0 0.0
    %2309 = vmatpush1.xpose.msra.mxu0 0.0
    %2310 = vmatprep.subr.mxu0 0.0
    %2311 = vmatpush1.xpose.msra.mxu0 0.0
    %2312 = vmatprep.subr.mxu0 0.0
    %2313 = vmatpush1.xpose.msra.mxu0 0.0
    %2314 = vmatprep.subr.mxu0 0.0
    %2315 = vmatpush1.xpose.msra.mxu0 0.0
    %2316 = vmatprep.subr.mxu0 0.0
    %2317 = vmatpush1.xpose.msra.mxu0 0.0
    %2318 = vmatprep.subr.mxu0 0.0
    %2319 = vmatpush1.xpose.msra.mxu0 0.0
    %2320 = vmatprep.subr.mxu0 0.0
    %2321 = vmatpush1.xpose.msra.mxu0 0.0
    %2322 = vmatprep.subr.mxu0 0.0
    %2323 = vmatpush1.xpose.msra.mxu0 0.0
    %2324 = vmatprep.subr.mxu0 0.0
    %2325 = vmatpush1.xpose.msra.mxu0 0.0
    %2326 = vmatprep.subr.mxu0 0.0
    %2327 = vmatpush1.xpose.msra.mxu0 0.0
    %2328 = vmatprep.subr.mxu0 0.0
    %2329 = vmatpush1.xpose.msra.mxu0 0.0
    %2330 = vmatprep.mubr.f32.mxu0 0.0
    %2331 = vmatmul.mubr.f32.gmra.mrb[0].mxu0 %v2262
    %v2332 = vpop.f32.mrb[0].mxu0
    %v2333 = vadd.f32 %v67, %v2332
    %v2334 = vpop.f32.mrb[0].mxu0
    %2335 = vdwg.mxu0
    %2336 = vrot.lane.b32.xlu0 %v2025, 96
    %v2337 = vpop.permute.xlu0 %2336
    %v2338 = vsel %vm215, %v2025, 0
    %v2340 = vsel %vm215, %v2337, 0
    %2342 = vmatprep.subr.mxu0 0.0
    %2343 = vmatpush1.xpose.msra.mxu0 %v2340
    %2344 = vmatprep.subr.mxu0 0.0
    %2345 = vmatpush1.xpose.msra.mxu0 0.0
    %2346 = vmatprep.subr.mxu0 0.0
    %2347 = vmatpush1.xpose.msra.mxu0 0.0
    %2348 = vmatprep.subr.mxu0 0.0
    %2349 = vmatpush1.xpose.msra.mxu0 0.0
    %2350 = vmatprep.subr.mxu0 0.0
    %2351 = vmatpush1.xpose.msra.mxu0 0.0
    %2352 = vmatprep.subr.mxu0 0.0
    %2353 = vmatpush1.xpose.msra.mxu0 0.0
    %2354 = vmatprep.subr.mxu0 0.0
    %2355 = vmatpush1.xpose.msra.mxu0 0.0
    %2356 = vmatprep.subr.mxu0 0.0
    %2357 = vmatpush1.xpose.msra.mxu0 0.0
    %2358 = vmatprep.subr.mxu0 0.0
    %2359 = vmatpush1.xpose.msra.mxu0 0.0
    %2360 = vmatprep.subr.mxu0 0.0
    %2361 = vmatpush1.xpose.msra.mxu0 0.0
    %2362 = vmatprep.subr.mxu0 0.0
    %2363 = vmatpush1.xpose.msra.mxu0 0.0
    %2364 = vmatprep.subr.mxu0 0.0
    %2365 = vmatpush1.xpose.msra.mxu0 0.0
    %2366 = vmatprep.subr.mxu0 0.0
    %2367 = vmatpush1.xpose.msra.mxu0 0.0
    %2368 = vmatprep.subr.mxu0 0.0
    %2369 = vmatpush1.xpose.msra.mxu0 0.0
    %2370 = vmatprep.subr.mxu0 0.0
    %2371 = vmatpush1.xpose.msra.mxu0 0.0
    %2372 = vmatprep.subr.mxu0 0.0
    %2373 = vmatpush1.xpose.msra.mxu0 0.0
    %2374 = vmatprep.subr.mxu0 0.0
    %2375 = vmatpush1.xpose.msra.mxu0 0.0
    %2376 = vmatprep.subr.mxu0 0.0
    %2377 = vmatpush1.xpose.msra.mxu0 0.0
    %2378 = vmatprep.subr.mxu0 0.0
    %2379 = vmatpush1.xpose.msra.mxu0 0.0
    %2380 = vmatprep.subr.mxu0 0.0
    %2381 = vmatpush1.xpose.msra.mxu0 0.0
    %2382 = vmatprep.subr.mxu0 0.0
    %2383 = vmatpush1.xpose.msra.mxu0 0.0
    %2384 = vmatprep.subr.mxu0 0.0
    %2385 = vmatpush1.xpose.msra.mxu0 0.0
    %2386 = vmatprep.subr.mxu0 0.0
    %2387 = vmatpush1.xpose.msra.mxu0 0.0
    %2388 = vmatprep.subr.mxu0 0.0
    %2389 = vmatpush1.xpose.msra.mxu0 0.0
    %2390 = vmatprep.subr.mxu0 0.0
    %2391 = vmatpush1.xpose.msra.mxu0 0.0
    %2392 = vmatprep.subr.mxu0 0.0
    %2393 = vmatpush1.xpose.msra.mxu0 0.0
    %2394 = vmatprep.subr.mxu0 0.0
    %2395 = vmatpush1.xpose.msra.mxu0 0.0
    %2396 = vmatprep.subr.mxu0 0.0
    %2397 = vmatpush1.xpose.msra.mxu0 0.0
    %2398 = vmatprep.subr.mxu0 0.0
    %2399 = vmatpush1.xpose.msra.mxu0 0.0
    %2400 = vmatprep.subr.mxu0 0.0
    %2401 = vmatpush1.xpose.msra.mxu0 0.0
    %2402 = vmatprep.subr.mxu0 0.0
    %2403 = vmatpush1.xpose.msra.mxu0 0.0
    %2404 = vmatprep.subr.mxu0 0.0
    %2405 = vmatpush1.xpose.msra.mxu0 0.0
    %2406 = vmatprep.mubr.f32.mxu0 0.0
    %2407 = vmatmul.mubr.f32.gmra.mrb[0].mxu0 %v2338
    %v2408 = vpop.f32.mrb[0].mxu0
    %v2409 = vadd.f32 %v67, %v2408
    %v2410 = vpop.f32.mrb[0].mxu0
    %2411 = vdwg.mxu0
    %2412 = vrot.lane.b32.xlu0 %v2027, 96
    %v2413 = vpop.permute.xlu0 %2412
    %v2414 = vsel %vm215, %v2027, 0
    %v2416 = vsel %vm215, %v2413, 0
    %2418 = vmatprep.subr.mxu0 0.0
    %2419 = vmatpush1.xpose.msra.mxu0 %v2416
    %2420 = vmatprep.subr.mxu0 0.0
    %2421 = vmatpush1.xpose.msra.mxu0 0.0
    %2422 = vmatprep.subr.mxu0 0.0
    %2423 = vmatpush1.xpose.msra.mxu0 0.0
    %2424 = vmatprep.subr.mxu0 0.0
    %2425 = vmatpush1.xpose.msra.mxu0 0.0
    %2426 = vmatprep.subr.mxu0 0.0
    %2427 = vmatpush1.xpose.msra.mxu0 0.0
    %2428 = vmatprep.subr.mxu0 0.0
    %2429 = vmatpush1.xpose.msra.mxu0 0.0
    %2430 = vmatprep.subr.mxu0 0.0
    %2431 = vmatpush1.xpose.msra.mxu0 0.0
    %2432 = vmatprep.subr.mxu0 0.0
    %2433 = vmatpush1.xpose.msra.mxu0 0.0
    %2434 = vmatprep.subr.mxu0 0.0
    %2435 = vmatpush1.xpose.msra.mxu0 0.0
    %2436 = vmatprep.subr.mxu0 0.0
    %2437 = vmatpush1.xpose.msra.mxu0 0.0
    %2438 = vmatprep.subr.mxu0 0.0
    %2439 = vmatpush1.xpose.msra.mxu0 0.0
    %2440 = vmatprep.subr.mxu0 0.0
    %2441 = vmatpush1.xpose.msra.mxu0 0.0
    %2442 = vmatprep.subr.mxu0 0.0
    %2443 = vmatpush1.xpose.msra.mxu0 0.0
    %2444 = vmatprep.subr.mxu0 0.0
    %2445 = vmatpush1.xpose.msra.mxu0 0.0
    %2446 = vmatprep.subr.mxu0 0.0
    %2447 = vmatpush1.xpose.msra.mxu0 0.0
    %2448 = vmatprep.subr.mxu0 0.0
    %2449 = vmatpush1.xpose.msra.mxu0 0.0
    %2450 = vmatprep.subr.mxu0 0.0
    %2451 = vmatpush1.xpose.msra.mxu0 0.0
    %2452 = vmatprep.subr.mxu0 0.0
    %2453 = vmatpush1.xpose.msra.mxu0 0.0
    %2454 = vmatprep.subr.mxu0 0.0
    %2455 = vmatpush1.xpose.msra.mxu0 0.0
    %2456 = vmatprep.subr.mxu0 0.0
    %2457 = vmatpush1.xpose.msra.mxu0 0.0
    %2458 = vmatprep.subr.mxu0 0.0
    %2459 = vmatpush1.xpose.msra.mxu0 0.0
    %2460 = vmatprep.subr.mxu0 0.0
    %2461 = vmatpush1.xpose.msra.mxu0 0.0
    %2462 = vmatprep.subr.mxu0 0.0
    %2463 = vmatpush1.xpose.msra.mxu0 0.0
    %2464 = vmatprep.subr.mxu0 0.0
    %2465 = vmatpush1.xpose.msra.mxu0 0.0
    %2466 = vmatprep.subr.mxu0 0.0
    %2467 = vmatpush1.xpose.msra.mxu0 0.0
    %2468 = vmatprep.subr.mxu0 0.0
    %2469 = vmatpush1.xpose.msra.mxu0 0.0
    %2470 = vmatprep.subr.mxu0 0.0
    %2471 = vmatpush1.xpose.msra.mxu0 0.0
    %2472 = vmatprep.subr.mxu0 0.0
    %2473 = vmatpush1.xpose.msra.mxu0 0.0
    %2474 = vmatprep.subr.mxu0 0.0
    %2475 = vmatpush1.xpose.msra.mxu0 0.0
    %2476 = vmatprep.subr.mxu0 0.0
    %2477 = vmatpush1.xpose.msra.mxu0 0.0
    %2478 = vmatprep.subr.mxu0 0.0
    %2479 = vmatpush1.xpose.msra.mxu0 0.0
    %2480 = vmatprep.subr.mxu0 0.0
    %2481 = vmatpush1.xpose.msra.mxu0 0.0
    %2482 = vmatprep.mubr.f32.mxu0 0.0
    %2483 = vmatmul.mubr.f32.gmra.mrb[0].mxu0 %v2414
    %v2484 = vpop.f32.mrb[0].mxu0
    %v2485 = vadd.f32 %v67, %v2484
    %v2486 = vpop.f32.mrb[0].mxu0
    %2487 = vdwg.mxu0
    %2488 = vrot.lane.b32.xlu0 %v2029, 96
    %v2489 = vpop.permute.xlu0 %2488
    %v2490 = vsel %vm215, %v2029, 0
    %v2492 = vsel %vm215, %v2489, 0
    %2494 = vmatprep.subr.mxu0 0.0
    %2495 = vmatpush1.xpose.msra.mxu0 %v2492
    %2496 = vmatprep.subr.mxu0 0.0
    %2497 = vmatpush1.xpose.msra.mxu0 0.0
    %2498 = vmatprep.subr.mxu0 0.0
    %2499 = vmatpush1.xpose.msra.mxu0 0.0
    %2500 = vmatprep.subr.mxu0 0.0
    %2501 = vmatpush1.xpose.msra.mxu0 0.0
    %2502 = vmatprep.subr.mxu0 0.0
    %2503 = vmatpush1.xpose.msra.mxu0 0.0
    %2504 = vmatprep.subr.mxu0 0.0
    %2505 = vmatpush1.xpose.msra.mxu0 0.0
    %2506 = vmatprep.subr.mxu0 0.0
    %2507 = vmatpush1.xpose.msra.mxu0 0.0
    %2508 = vmatprep.subr.mxu0 0.0
    %2509 = vmatpush1.xpose.msra.mxu0 0.0
    %2510 = vmatprep.subr.mxu0 0.0
    %2511 = vmatpush1.xpose.msra.mxu0 0.0
    %2512 = vmatprep.subr.mxu0 0.0
    %2513 = vmatpush1.xpose.msra.mxu0 0.0
    %2514 = vmatprep.subr.mxu0 0.0
    %2515 = vmatpush1.xpose.msra.mxu0 0.0
    %2516 = vmatprep.subr.mxu0 0.0
    %2517 = vmatpush1.xpose.msra.mxu0 0.0
    %2518 = vmatprep.subr.mxu0 0.0
    %2519 = vmatpush1.xpose.msra.mxu0 0.0
    %2520 = vmatprep.subr.mxu0 0.0
    %2521 = vmatpush1.xpose.msra.mxu0 0.0
    %2522 = vmatprep.subr.mxu0 0.0
    %2523 = vmatpush1.xpose.msra.mxu0 0.0
    %2524 = vmatprep.subr.mxu0 0.0
    %2525 = vmatpush1.xpose.msra.mxu0 0.0
    %2526 = vmatprep.subr.mxu0 0.0
    %2527 = vmatpush1.xpose.msra.mxu0 0.0
    %2528 = vmatprep.subr.mxu0 0.0
    %2529 = vmatpush1.xpose.msra.mxu0 0.0
    %2530 = vmatprep.subr.mxu0 0.0
    %2531 = vmatpush1.xpose.msra.mxu0 0.0
    %2532 = vmatprep.subr.mxu0 0.0
    %2533 = vmatpush1.xpose.msra.mxu0 0.0
    %2534 = vmatprep.subr.mxu0 0.0
    %2535 = vmatpush1.xpose.msra.mxu0 0.0
    %2536 = vmatprep.subr.mxu0 0.0
    %2537 = vmatpush1.xpose.msra.mxu0 0.0
    %2538 = vmatprep.subr.mxu0 0.0
    %2539 = vmatpush1.xpose.msra.mxu0 0.0
    %2540 = vmatprep.subr.mxu0 0.0
    %2541 = vmatpush1.xpose.msra.mxu0 0.0
    %2542 = vmatprep.subr.mxu0 0.0
    %2543 = vmatpush1.xpose.msra.mxu0 0.0
    %2544 = vmatprep.subr.mxu0 0.0
    %2545 = vmatpush1.xpose.msra.mxu0 0.0
    %2546 = vmatprep.subr.mxu0 0.0
    %2547 = vmatpush1.xpose.msra.mxu0 0.0
    %2548 = vmatprep.subr.mxu0 0.0
    %2549 = vmatpush1.xpose.msra.mxu0 0.0
    %2550 = vmatprep.subr.mxu0 0.0
    %2551 = vmatpush1.xpose.msra.mxu0 0.0
    %2552 = vmatprep.subr.mxu0 0.0
    %2553 = vmatpush1.xpose.msra.mxu0 0.0
    %2554 = vmatprep.subr.mxu0 0.0
    %2555 = vmatpush1.xpose.msra.mxu0 0.0
    %2556 = vmatprep.subr.mxu0 0.0
    %2557 = vmatpush1.xpose.msra.mxu0 0.0
    %2558 = vmatprep.mubr.f32.mxu0 0.0
    %2559 = vmatmul.mubr.f32.gmra.mrb[0].mxu0 %v2490
    %v2560 = vpop.f32.mrb[0].mxu0
    %v2561 = vadd.f32 %v67, %v2560
    %v2562 = vpop.f32.mrb[0].mxu0
    %2563 = vdwg.mxu0
    %2564 = vrot.lane.b32.xlu0 %v2031, 96
    %v2565 = vpop.permute.xlu0 %2564
    %v2566 = vsel %vm215, %v2031, 0
    %v2568 = vsel %vm215, %v2565, 0
    %2570 = vmatprep.subr.mxu0 0.0
    %2571 = vmatpush1.xpose.msra.mxu0 %v2568
    %2572 = vmatprep.subr.mxu0 0.0
    %2573 = vmatpush1.xpose.msra.mxu0 0.0
    %2574 = vmatprep.subr.mxu0 0.0
    %2575 = vmatpush1.xpose.msra.mxu0 0.0
    %2576 = vmatprep.subr.mxu0 0.0
    %2577 = vmatpush1.xpose.msra.mxu0 0.0
    %2578 = vmatprep.subr.mxu0 0.0
    %2579 = vmatpush1.xpose.msra.mxu0 0.0
    %2580 = vmatprep.subr.mxu0 0.0
    %2581 = vmatpush1.xpose.msra.mxu0 0.0
    %2582 = vmatprep.subr.mxu0 0.0
    %2583 = vmatpush1.xpose.msra.mxu0 0.0
    %2584 = vmatprep.subr.mxu0 0.0
    %2585 = vmatpush1.xpose.msra.mxu0 0.0
    %2586 = vmatprep.subr.mxu0 0.0
    %2587 = vmatpush1.xpose.msra.mxu0 0.0
    %2588 = vmatprep.subr.mxu0 0.0
    %2589 = vmatpush1.xpose.msra.mxu0 0.0
    %2590 = vmatprep.subr.mxu0 0.0
    %2591 = vmatpush1.xpose.msra.mxu0 0.0
    %2592 = vmatprep.subr.mxu0 0.0
    %2593 = vmatpush1.xpose.msra.mxu0 0.0
    %2594 = vmatprep.subr.mxu0 0.0
    %2595 = vmatpush1.xpose.msra.mxu0 0.0
    %2596 = vmatprep.subr.mxu0 0.0
    %2597 = vmatpush1.xpose.msra.mxu0 0.0
    %2598 = vmatprep.subr.mxu0 0.0
    %2599 = vmatpush1.xpose.msra.mxu0 0.0
    %2600 = vmatprep.subr.mxu0 0.0
    %2601 = vmatpush1.xpose.msra.mxu0 0.0
    %2602 = vmatprep.subr.mxu0 0.0
    %2603 = vmatpush1.xpose.msra.mxu0 0.0
    %2604 = vmatprep.subr.mxu0 0.0
    %2605 = vmatpush1.xpose.msra.mxu0 0.0
    %2606 = vmatprep.subr.mxu0 0.0
    %2607 = vmatpush1.xpose.msra.mxu0 0.0
    %2608 = vmatprep.subr.mxu0 0.0
    %2609 = vmatpush1.xpose.msra.mxu0 0.0
    %2610 = vmatprep.subr.mxu0 0.0
    %2611 = vmatpush1.xpose.msra.mxu0 0.0
    %2612 = vmatprep.subr.mxu0 0.0
    %2613 = vmatpush1.xpose.msra.mxu0 0.0
    %2614 = vmatprep.subr.mxu0 0.0
    %2615 = vmatpush1.xpose.msra.mxu0 0.0
    %2616 = vmatprep.subr.mxu0 0.0
    %2617 = vmatpush1.xpose.msra.mxu0 0.0
    %2618 = vmatprep.subr.mxu0 0.0
    %2619 = vmatpush1.xpose.msra.mxu0 0.0
    %2620 = vmatprep.subr.mxu0 0.0
    %2621 = vmatpush1.xpose.msra.mxu0 0.0
    %2622 = vmatprep.subr.mxu0 0.0
    %2623 = vmatpush1.xpose.msra.mxu0 0.0
    %2624 = vmatprep.subr.mxu0 0.0
    %2625 = vmatpush1.xpose.msra.mxu0 0.0
    %2626 = vmatprep.subr.mxu0 0.0
    %2627 = vmatpush1.xpose.msra.mxu0 0.0
    %2628 = vmatprep.subr.mxu0 0.0
    %2629 = vmatpush1.xpose.msra.mxu0 0.0
    %2630 = vmatprep.subr.mxu0 0.0
    %2631 = vmatpush1.xpose.msra.mxu0 0.0
    %2632 = vmatprep.subr.mxu0 0.0
    %2633 = vmatpush1.xpose.msra.mxu0 0.0
    %2634 = vmatprep.mubr.f32.mxu0 0.0
    %2635 = vmatmul.mubr.f32.gmra.mrb[0].mxu0 %v2566
    %v2636 = vpop.f32.mrb[0].mxu0
    %v2637 = vadd.f32 %v67, %v2636
    %v2638 = vpop.f32.mrb[0].mxu0
    %2639 = vdwg.mxu0
    %v2640 = vsel %vm215, %v2105, -inf
    %2641 = vmax.xlane.f32.xlu0 %v2640
    %v2642 = vpop.xlane.xlu0 %2641
    %v2643 = vsel %vm215, %v2181, -inf
    %2644 = vmax.xlane.f32.xlu0 %v2643
    %v2645 = vpop.xlane.xlu0 %2644
    %v2646 = vsel %vm215, %v2257, -inf
    %2647 = vmax.xlane.f32.xlu0 %v2646
    %v2648 = vpop.xlane.xlu0 %2647
    %v2649 = vsel %vm215, %v2333, -inf
    %2650 = vmax.xlane.f32.xlu0 %v2649
    %v2651 = vpop.xlane.xlu0 %2650
    %v2652 = vsel %vm215, %v2409, -inf
    %2653 = vmax.xlane.f32.xlu0 %v2652
    %v2654 = vpop.xlane.xlu0 %2653
    %v2655 = vsel %vm215, %v2485, -inf
    %2656 = vmax.xlane.f32.xlu0 %v2655
    %v2657 = vpop.xlane.xlu0 %2656
    %v2658 = vsel %vm215, %v2561, -inf
    %2659 = vmax.xlane.f32.xlu0 %v2658
    %v2660 = vpop.xlane.xlu0 %2659
    %v2661 = vsel %vm215, %v2637, -inf
    %2662 = vmax.xlane.f32.xlu0 %v2661
    %v2663 = vpop.xlane.xlu0 %2662
    %v2664 = vsub.f32 %v2105, %v2642
    %v2665 = vsub.f32 %v2181, %v2645
    %v2666 = vsub.f32 %v2257, %v2648
    %v2667 = vsub.f32 %v2333, %v2651
    %v2668 = vsub.f32 %v2409, %v2654
    %v2669 = vsub.f32 %v2485, %v2657
    %v2670 = vsub.f32 %v2561, %v2660
    %v2671 = vsub.f32 %v2637, %v2663
    %v2672 = vmul.f32 %v2664, 1.442695
    %v2673 = vpow.pop %v2672
    %v2674 = vmul.f32 %v2665, 1.442695
    %v2675 = vpow.pop %v2674
    %v2676 = vmul.f32 %v2666, 1.442695
    %v2677 = vpow.pop %v2676
    %v2678 = vmul.f32 %v2667, 1.442695
    %v2679 = vpow.pop %v2678
    %v2680 = vmul.f32 %v2668, 1.442695
    %v2681 = vpow.pop %v2680
    %v2682 = vmul.f32 %v2669, 1.442695
    %v2683 = vpow.pop %v2682
    %v2684 = vmul.f32 %v2670, 1.442695
    %v2685 = vpow.pop %v2684
    %v2686 = vmul.f32 %v2671, 1.442695
    %v2687 = vpow.pop %v2686
    %v2688 = vsel %vm215, %v2673, 0.0
    %2689 = vadd.xlane.f32.xlu0 %v2688
    %v2690 = vpop.xlane.xlu0 %2689
    %v2691 = vsel %vm215, %v2675, 0.0
    %2692 = vadd.xlane.f32.xlu0 %v2691
    %v2693 = vpop.xlane.xlu0 %2692
    %v2694 = vsel %vm215, %v2677, 0.0
    %2695 = vadd.xlane.f32.xlu0 %v2694
    %v2696 = vpop.xlane.xlu0 %2695
    %v2697 = vsel %vm215, %v2679, 0.0
    %2698 = vadd.xlane.f32.xlu0 %v2697
    %v2699 = vpop.xlane.xlu0 %2698
    %v2700 = vsel %vm215, %v2681, 0.0
    %2701 = vadd.xlane.f32.xlu0 %v2700
    %v2702 = vpop.xlane.xlu0 %2701
    %v2703 = vsel %vm215, %v2683, 0.0
    %2704 = vadd.xlane.f32.xlu0 %v2703
    %v2705 = vpop.xlane.xlu0 %2704
    %v2706 = vsel %vm215, %v2685, 0.0
    %2707 = vadd.xlane.f32.xlu0 %v2706
    %v2708 = vpop.xlane.xlu0 %2707
    %v2709 = vsel %vm215, %v2687, 0.0
    %2710 = vadd.xlane.f32.xlu0 %v2709
    %v2711 = vpop.xlane.xlu0 %2710
    %v2712 = vrcp.pop %v2690
    %v2713 = vrcp.pop %v2693
    %v2714 = vrcp.pop %v2696
    %v2715 = vrcp.pop %v2699
    %v2716 = vrcp.pop %v2702
    %v2717 = vrcp.pop %v2705
    %v2718 = vrcp.pop %v2708
    %v2719 = vrcp.pop %v2711
    %v2720 = vmul.f32 %v2673, %v2712
    %v2721 = vmul.f32 %v2675, %v2713
    %v2722 = vmul.f32 %v2677, %v2714
    %v2723 = vmul.f32 %v2679, %v2715
    %v2724 = vmul.f32 %v2681, %v2716
    %v2725 = vmul.f32 %v2683, %v2717
    %v2726 = vmul.f32 %v2685, %v2718
    %v2727 = vmul.f32 %v2687, %v2719
    %2728 = vrot.lane.b32.xlu0 %v2010, 64
    %v2729 = vpop.permute.xlu0 %2728
    %v2732 = vsel %vm215, %v2720, 0
    %2734 = vmatprep.subr.mxu0 0.0
    %2735 = vmatpush1.msra.mxu0 %v2729
    %2736 = vmatprep.subr.mxu0 0.0
    %2737 = vmatpush1.msra.mxu0 0.0
    %2738 = vmatprep.subr.mxu0 0.0
    %2739 = vmatpush1.msra.mxu0 0.0
    %2740 = vmatprep.subr.mxu0 0.0
    %2741 = vmatpush1.msra.mxu0 0.0
    %2742 = vmatprep.subr.mxu0 0.0
    %2743 = vmatpush1.msra.mxu0 0.0
    %2744 = vmatprep.subr.mxu0 0.0
    %2745 = vmatpush1.msra.mxu0 0.0
    %2746 = vmatprep.subr.mxu0 0.0
    %2747 = vmatpush1.msra.mxu0 0.0
    %2748 = vmatprep.subr.mxu0 0.0
    %2749 = vmatpush1.msra.mxu0 0.0
    %2750 = vmatprep.subr.mxu0 0.0
    %2751 = vmatpush1.msra.mxu0 0.0
    %2752 = vmatprep.subr.mxu0 0.0
    %2753 = vmatpush1.msra.mxu0 0.0
    %2754 = vmatprep.subr.mxu0 0.0
    %2755 = vmatpush1.msra.mxu0 0.0
    %2756 = vmatprep.subr.mxu0 0.0
    %2757 = vmatpush1.msra.mxu0 0.0
    %2758 = vmatprep.subr.mxu0 0.0
    %2759 = vmatpush1.msra.mxu0 0.0
    %2760 = vmatprep.subr.mxu0 0.0
    %2761 = vmatpush1.msra.mxu0 0.0
    %2762 = vmatprep.subr.mxu0 0.0
    %2763 = vmatpush1.msra.mxu0 0.0
    %2764 = vmatprep.subr.mxu0 0.0
    %2765 = vmatpush1.msra.mxu0 0.0
    %2766 = vmatprep.subr.mxu0 0.0
    %2767 = vmatpush1.msra.mxu0 0.0
    %2768 = vmatprep.subr.mxu0 0.0
    %2769 = vmatpush1.msra.mxu0 0.0
    %2770 = vmatprep.subr.mxu0 0.0
    %2771 = vmatpush1.msra.mxu0 0.0
    %2772 = vmatprep.subr.mxu0 0.0
    %2773 = vmatpush1.msra.mxu0 0.0
    %2774 = vmatprep.subr.mxu0 0.0
    %2775 = vmatpush1.msra.mxu0 0.0
    %2776 = vmatprep.subr.mxu0 0.0
    %2777 = vmatpush1.msra.mxu0 0.0
    %2778 = vmatprep.subr.mxu0 0.0
    %2779 = vmatpush1.msra.mxu0 0.0
    %2780 = vmatprep.subr.mxu0 0.0
    %2781 = vmatpush1.msra.mxu0 0.0
    %2782 = vmatprep.subr.mxu0 0.0
    %2783 = vmatpush1.msra.mxu0 0.0
    %2784 = vmatprep.subr.mxu0 0.0
    %2785 = vmatpush1.msra.mxu0 0.0
    %2786 = vmatprep.subr.mxu0 0.0
    %2787 = vmatpush1.msra.mxu0 0.0
    %2788 = vmatprep.subr.mxu0 0.0
    %2789 = vmatpush1.msra.mxu0 0.0
    %2790 = vmatprep.subr.mxu0 0.0
    %2791 = vmatpush1.msra.mxu0 0.0
    %2792 = vmatprep.subr.mxu0 0.0
    %2793 = vmatpush1.msra.mxu0 0.0
    %2794 = vmatprep.subr.mxu0 0.0
    %2795 = vmatpush1.msra.mxu0 0.0
    %2796 = vmatprep.subr.mxu0 0.0
    %2797 = vmatpush1.msra.mxu0 0.0
    %2798 = vmatprep.mubr.f32.mxu0 0.0
    %2799 = vmatmul.mubr.f32.gmra.mrb[0].mxu0 %v2732
    %v2800 = vpop.f32.mrb[0].mxu0
    %v2801 = vadd.f32 0.0, %v2800
    %v2802 = vpop.f32.mrb[0].mxu0
    %2803 = vdwg.mxu0
    %2804 = vrot.lane.b32.xlu0 %v2015, 64
    %v2805 = vpop.permute.xlu0 %2804
    %v2808 = vsel %vm215, %v2721, 0
    %2810 = vmatprep.subr.mxu0 0.0
    %2811 = vmatpush1.msra.mxu0 %v2805
    %2812 = vmatprep.subr.mxu0 0.0
    %2813 = vmatpush1.msra.mxu0 0.0
    %2814 = vmatprep.subr.mxu0 0.0
    %2815 = vmatpush1.msra.mxu0 0.0
    %2816 = vmatprep.subr.mxu0 0.0
    %2817 = vmatpush1.msra.mxu0 0.0
    %2818 = vmatprep.subr.mxu0 0.0
    %2819 = vmatpush1.msra.mxu0 0.0
    %2820 = vmatprep.subr.mxu0 0.0
    %2821 = vmatpush1.msra.mxu0 0.0
    %2822 = vmatprep.subr.mxu0 0.0
    %2823 = vmatpush1.msra.mxu0 0.0
    %2824 = vmatprep.subr.mxu0 0.0
    %2825 = vmatpush1.msra.mxu0 0.0
    %2826 = vmatprep.subr.mxu0 0.0
    %2827 = vmatpush1.msra.mxu0 0.0
    %2828 = vmatprep.subr.mxu0 0.0
    %2829 = vmatpush1.msra.mxu0 0.0
    %2830 = vmatprep.subr.mxu0 0.0
    %2831 = vmatpush1.msra.mxu0 0.0
    %2832 = vmatprep.subr.mxu0 0.0
    %2833 = vmatpush1.msra.mxu0 0.0
    %2834 = vmatprep.subr.mxu0 0.0
    %2835 = vmatpush1.msra.mxu0 0.0
    %2836 = vmatprep.subr.mxu0 0.0
    %2837 = vmatpush1.msra.mxu0 0.0
    %2838 = vmatprep.subr.mxu0 0.0
    %2839 = vmatpush1.msra.mxu0 0.0
    %2840 = vmatprep.subr.mxu0 0.0
    %2841 = vmatpush1.msra.mxu0 0.0
    %2842 = vmatprep.subr.mxu0 0.0
    %2843 = vmatpush1.msra.mxu0 0.0
    %2844 = vmatprep.subr.mxu0 0.0
    %2845 = vmatpush1.msra.mxu0 0.0
    %2846 = vmatprep.subr.mxu0 0.0
    %2847 = vmatpush1.msra.mxu0 0.0
    %2848 = vmatprep.subr.mxu0 0.0
    %2849 = vmatpush1.msra.mxu0 0.0
    %2850 = vmatprep.subr.mxu0 0.0
    %2851 = vmatpush1.msra.mxu0 0.0
    %2852 = vmatprep.subr.mxu0 0.0
    %2853 = vmatpush1.msra.mxu0 0.0
    %2854 = vmatprep.subr.mxu0 0.0
    %2855 = vmatpush1.msra.mxu0 0.0
    %2856 = vmatprep.subr.mxu0 0.0
    %2857 = vmatpush1.msra.mxu0 0.0
    %2858 = vmatprep.subr.mxu0 0.0
    %2859 = vmatpush1.msra.mxu0 0.0
    %2860 = vmatprep.subr.mxu0 0.0
    %2861 = vmatpush1.msra.mxu0 0.0
    %2862 = vmatprep.subr.mxu0 0.0
    %2863 = vmatpush1.msra.mxu0 0.0
    %2864 = vmatprep.subr.mxu0 0.0
    %2865 = vmatpush1.msra.mxu0 0.0
    %2866 = vmatprep.subr.mxu0 0.0
    %2867 = vmatpush1.msra.mxu0 0.0
    %2868 = vmatprep.subr.mxu0 0.0
    %2869 = vmatpush1.msra.mxu0 0.0
    %2870 = vmatprep.subr.mxu0 0.0
    %2871 = vmatpush1.msra.mxu0 0.0
    %2872 = vmatprep.subr.mxu0 0.0
    %2873 = vmatpush1.msra.mxu0 0.0
    %2874 = vmatprep.mubr.f32.mxu0 0.0
    %2875 = vmatmul.mubr.f32.gmra.mrb[0].mxu0 %v2808
    %v2876 = vpop.f32.mrb[0].mxu0
    %v2877 = vadd.f32 0.0, %v2876
    %v2878 = vpop.f32.mrb[0].mxu0
    %2879 = vdwg.mxu0
    %2880 = vrot.lane.b32.xlu0 %v2021, 64
    %v2881 = vpop.permute.xlu0 %2880
    %v2884 = vsel %vm215, %v2722, 0
    %2886 = vmatprep.subr.mxu0 0.0
    %2887 = vmatpush1.msra.mxu0 %v2881
    %2888 = vmatprep.subr.mxu0 0.0
    %2889 = vmatpush1.msra.mxu0 0.0
    %2890 = vmatprep.subr.mxu0 0.0
    %2891 = vmatpush1.msra.mxu0 0.0
    %2892 = vmatprep.subr.mxu0 0.0
    %2893 = vmatpush1.msra.mxu0 0.0
    %2894 = vmatprep.subr.mxu0 0.0
    %2895 = vmatpush1.msra.mxu0 0.0
    %2896 = vmatprep.subr.mxu0 0.0
    %2897 = vmatpush1.msra.mxu0 0.0
    %2898 = vmatprep.subr.mxu0 0.0
    %2899 = vmatpush1.msra.mxu0 0.0
    %2900 = vmatprep.subr.mxu0 0.0
    %2901 = vmatpush1.msra.mxu0 0.0
    %2902 = vmatprep.subr.mxu0 0.0
    %2903 = vmatpush1.msra.mxu0 0.0
    %2904 = vmatprep.subr.mxu0 0.0
    %2905 = vmatpush1.msra.mxu0 0.0
    %2906 = vmatprep.subr.mxu0 0.0
    %2907 = vmatpush1.msra.mxu0 0.0
    %2908 = vmatprep.subr.mxu0 0.0
    %2909 = vmatpush1.msra.mxu0 0.0
    %2910 = vmatprep.subr.mxu0 0.0
    %2911 = vmatpush1.msra.mxu0 0.0
    %2912 = vmatprep.subr.mxu0 0.0
    %2913 = vmatpush1.msra.mxu0 0.0
    %2914 = vmatprep.subr.mxu0 0.0
    %2915 = vmatpush1.msra.mxu0 0.0
    %2916 = vmatprep.subr.mxu0 0.0
    %2917 = vmatpush1.msra.mxu0 0.0
    %2918 = vmatprep.subr.mxu0 0.0
    %2919 = vmatpush1.msra.mxu0 0.0
    %2920 = vmatprep.subr.mxu0 0.0
    %2921 = vmatpush1.msra.mxu0 0.0
    %2922 = vmatprep.subr.mxu0 0.0
    %2923 = vmatpush1.msra.mxu0 0.0
    %2924 = vmatprep.subr.mxu0 0.0
    %2925 = vmatpush1.msra.mxu0 0.0
    %2926 = vmatprep.subr.mxu0 0.0
    %2927 = vmatpush1.msra.mxu0 0.0
    %2928 = vmatprep.subr.mxu0 0.0
    %2929 = vmatpush1.msra.mxu0 0.0
    %2930 = vmatprep.subr.mxu0 0.0
    %2931 = vmatpush1.msra.mxu0 0.0
    %2932 = vmatprep.subr.mxu0 0.0
    %2933 = vmatpush1.msra.mxu0 0.0
    %2934 = vmatprep.subr.mxu0 0.0
    %2935 = vmatpush1.msra.mxu0 0.0
    %2936 = vmatprep.subr.mxu0 0.0
    %2937 = vmatpush1.msra.mxu0 0.0
    %2938 = vmatprep.subr.mxu0 0.0
    %2939 = vmatpush1.msra.mxu0 0.0
    %2940 = vmatprep.subr.mxu0 0.0
    %2941 = vmatpush1.msra.mxu0 0.0
    %2942 = vmatprep.subr.mxu0 0.0
    %2943 = vmatpush1.msra.mxu0 0.0
    %2944 = vmatprep.subr.mxu0 0.0
    %2945 = vmatpush1.msra.mxu0 0.0
    %2946 = vmatprep.subr.mxu0 0.0
    %2947 = vmatpush1.msra.mxu0 0.0
    %2948 = vmatprep.subr.mxu0 0.0
    %2949 = vmatpush1.msra.mxu0 0.0
    %2950 = vmatprep.mubr.f32.mxu0 0.0
    %2951 = vmatmul.mubr.f32.gmra.mrb[0].mxu0 %v2884
    %v2952 = vpop.f32.mrb[0].mxu0
    %v2953 = vadd.f32 0.0, %v2952
    %v2954 = vpop.f32.mrb[0].mxu0
    %2955 = vdwg.mxu0
    %2956 = vrot.lane.b32.xlu0 %v2023, 64
    %v2957 = vpop.permute.xlu0 %2956
    %v2960 = vsel %vm215, %v2723, 0
    %2962 = vmatprep.subr.mxu0 0.0
    %2963 = vmatpush1.msra.mxu0 %v2957
    %2964 = vmatprep.subr.mxu0 0.0
    %2965 = vmatpush1.msra.mxu0 0.0
    %2966 = vmatprep.subr.mxu0 0.0
    %2967 = vmatpush1.msra.mxu0 0.0
    %2968 = vmatprep.subr.mxu0 0.0
    %2969 = vmatpush1.msra.mxu0 0.0
    %2970 = vmatprep.subr.mxu0 0.0
    %2971 = vmatpush1.msra.mxu0 0.0
    %2972 = vmatprep.subr.mxu0 0.0
    %2973 = vmatpush1.msra.mxu0 0.0
    %2974 = vmatprep.subr.mxu0 0.0
    %2975 = vmatpush1.msra.mxu0 0.0
    %2976 = vmatprep.subr.mxu0 0.0
    %2977 = vmatpush1.msra.mxu0 0.0
    %2978 = vmatprep.subr.mxu0 0.0
    %2979 = vmatpush1.msra.mxu0 0.0
    %2980 = vmatprep.subr.mxu0 0.0
    %2981 = vmatpush1.msra.mxu0 0.0
    %2982 = vmatprep.subr.mxu0 0.0
    %2983 = vmatpush1.msra.mxu0 0.0
    %2984 = vmatprep.subr.mxu0 0.0
    %2985 = vmatpush1.msra.mxu0 0.0
    %2986 = vmatprep.subr.mxu0 0.0
    %2987 = vmatpush1.msra.mxu0 0.0
    %2988 = vmatprep.subr.mxu0 0.0
    %2989 = vmatpush1.msra.mxu0 0.0
    %2990 = vmatprep.subr.mxu0 0.0
    %2991 = vmatpush1.msra.mxu0 0.0
    %2992 = vmatprep.subr.mxu0 0.0
    %2993 = vmatpush1.msra.mxu0 0.0
    %2994 = vmatprep.subr.mxu0 0.0
    %2995 = vmatpush1.msra.mxu0 0.0
    %2996 = vmatprep.subr.mxu0 0.0
    %2997 = vmatpush1.msra.mxu0 0.0
    %2998 = vmatprep.subr.mxu0 0.0
    %2999 = vmatpush1.msra.mxu0 0.0
    %3000 = vmatprep.subr.mxu0 0.0
    %3001 = vmatpush1.msra.mxu0 0.0
    %3002 = vmatprep.subr.mxu0 0.0
    %3003 = vmatpush1.msra.mxu0 0.0
    %3004 = vmatprep.subr.mxu0 0.0
    %3005 = vmatpush1.msra.mxu0 0.0
    %3006 = vmatprep.subr.mxu0 0.0
    %3007 = vmatpush1.msra.mxu0 0.0
    %3008 = vmatprep.subr.mxu0 0.0
    %3009 = vmatpush1.msra.mxu0 0.0
    %3010 = vmatprep.subr.mxu0 0.0
    %3011 = vmatpush1.msra.mxu0 0.0
    %3012 = vmatprep.subr.mxu0 0.0
    %3013 = vmatpush1.msra.mxu0 0.0
    %3014 = vmatprep.subr.mxu0 0.0
    %3015 = vmatpush1.msra.mxu0 0.0
    %3016 = vmatprep.subr.mxu0 0.0
    %3017 = vmatpush1.msra.mxu0 0.0
    %3018 = vmatprep.subr.mxu0 0.0
    %3019 = vmatpush1.msra.mxu0 0.0
    %3020 = vmatprep.subr.mxu0 0.0
    %3021 = vmatpush1.msra.mxu0 0.0
    %3022 = vmatprep.subr.mxu0 0.0
    %3023 = vmatpush1.msra.mxu0 0.0
    %3024 = vmatprep.subr.mxu0 0.0
    %3025 = vmatpush1.msra.mxu0 0.0
    %3026 = vmatprep.mubr.f32.mxu0 0.0
    %3027 = vmatmul.mubr.f32.gmra.mrb[0].mxu0 %v2960
    %v3028 = vpop.f32.mrb[0].mxu0
    %v3029 = vadd.f32 0.0, %v3028
    %v3030 = vpop.f32.mrb[0].mxu0
    %3031 = vdwg.mxu0
    %3032 = vrot.lane.b32.xlu0 %v2025, 64
    %v3033 = vpop.permute.xlu0 %3032
    %v3036 = vsel %vm215, %v2724, 0
    %3038 = vmatprep.subr.mxu0 0.0
    %3039 = vmatpush1.msra.mxu0 %v3033
    %3040 = vmatprep.subr.mxu0 0.0
    %3041 = vmatpush1.msra.mxu0 0.0
    %3042 = vmatprep.subr.mxu0 0.0
    %3043 = vmatpush1.msra.mxu0 0.0
    %3044 = vmatprep.subr.mxu0 0.0
    %3045 = vmatpush1.msra.mxu0 0.0
    %3046 = vmatprep.subr.mxu0 0.0
    %3047 = vmatpush1.msra.mxu0 0.0
    %3048 = vmatprep.subr.mxu0 0.0
    %3049 = vmatpush1.msra.mxu0 0.0
    %3050 = vmatprep.subr.mxu0 0.0
    %3051 = vmatpush1.msra.mxu0 0.0
    %3052 = vmatprep.subr.mxu0 0.0
    %3053 = vmatpush1.msra.mxu0 0.0
    %3054 = vmatprep.subr.mxu0 0.0
    %3055 = vmatpush1.msra.mxu0 0.0
    %3056 = vmatprep.subr.mxu0 0.0
    %3057 = vmatpush1.msra.mxu0 0.0
    %3058 = vmatprep.subr.mxu0 0.0
    %3059 = vmatpush1.msra.mxu0 0.0
    %3060 = vmatprep.subr.mxu0 0.0
    %3061 = vmatpush1.msra.mxu0 0.0
    %3062 = vmatprep.subr.mxu0 0.0
    %3063 = vmatpush1.msra.mxu0 0.0
    %3064 = vmatprep.subr.mxu0 0.0
    %3065 = vmatpush1.msra.mxu0 0.0
    %3066 = vmatprep.subr.mxu0 0.0
    %3067 = vmatpush1.msra.mxu0 0.0
    %3068 = vmatprep.subr.mxu0 0.0
    %3069 = vmatpush1.msra.mxu0 0.0
    %3070 = vmatprep.subr.mxu0 0.0
    %3071 = vmatpush1.msra.mxu0 0.0
    %3072 = vmatprep.subr.mxu0 0.0
    %3073 = vmatpush1.msra.mxu0 0.0
    %3074 = vmatprep.subr.mxu0 0.0
    %3075 = vmatpush1.msra.mxu0 0.0
    %3076 = vmatprep.subr.mxu0 0.0
    %3077 = vmatpush1.msra.mxu0 0.0
    %3078 = vmatprep.subr.mxu0 0.0
    %3079 = vmatpush1.msra.mxu0 0.0
    %3080 = vmatprep.subr.mxu0 0.0
    %3081 = vmatpush1.msra.mxu0 0.0
    %3082 = vmatprep.subr.mxu0 0.0
    %3083 = vmatpush1.msra.mxu0 0.0
    %3084 = vmatprep.subr.mxu0 0.0
    %3085 = vmatpush1.msra.mxu0 0.0
    %3086 = vmatprep.subr.mxu0 0.0
    %3087 = vmatpush1.msra.mxu0 0.0
    %3088 = vmatprep.subr.mxu0 0.0
    %3089 = vmatpush1.msra.mxu0 0.0
    %3090 = vmatprep.subr.mxu0 0.0
    %3091 = vmatpush1.msra.mxu0 0.0
    %3092 = vmatprep.subr.mxu0 0.0
    %3093 = vmatpush1.msra.mxu0 0.0
    %3094 = vmatprep.subr.mxu0 0.0
    %3095 = vmatpush1.msra.mxu0 0.0
    %3096 = vmatprep.subr.mxu0 0.0
    %3097 = vmatpush1.msra.mxu0 0.0
    %3098 = vmatprep.subr.mxu0 0.0
    %3099 = vmatpush1.msra.mxu0 0.0
    %3100 = vmatprep.subr.mxu0 0.0
    %3101 = vmatpush1.msra.mxu0 0.0
    %3102 = vmatprep.mubr.f32.mxu0 0.0
    %3103 = vmatmul.mubr.f32.gmra.mrb[0].mxu0 %v3036
    %v3104 = vpop.f32.mrb[0].mxu0
    %v3105 = vadd.f32 0.0, %v3104
    %v3106 = vpop.f32.mrb[0].mxu0
    %3107 = vdwg.mxu0
    %3108 = vrot.lane.b32.xlu0 %v2027, 64
    %v3109 = vpop.permute.xlu0 %3108
    %v3112 = vsel %vm215, %v2725, 0
    %3114 = vmatprep.subr.mxu0 0.0
    %3115 = vmatpush1.msra.mxu0 %v3109
    %3116 = vmatprep.subr.mxu0 0.0
    %3117 = vmatpush1.msra.mxu0 0.0
    %3118 = vmatprep.subr.mxu0 0.0
    %3119 = vmatpush1.msra.mxu0 0.0
    %3120 = vmatprep.subr.mxu0 0.0
    %3121 = vmatpush1.msra.mxu0 0.0
    %3122 = vmatprep.subr.mxu0 0.0
    %3123 = vmatpush1.msra.mxu0 0.0
    %3124 = vmatprep.subr.mxu0 0.0
    %3125 = vmatpush1.msra.mxu0 0.0
    %3126 = vmatprep.subr.mxu0 0.0
    %3127 = vmatpush1.msra.mxu0 0.0
    %3128 = vmatprep.subr.mxu0 0.0
    %3129 = vmatpush1.msra.mxu0 0.0
    %3130 = vmatprep.subr.mxu0 0.0
    %3131 = vmatpush1.msra.mxu0 0.0
    %3132 = vmatprep.subr.mxu0 0.0
    %3133 = vmatpush1.msra.mxu0 0.0
    %3134 = vmatprep.subr.mxu0 0.0
    %3135 = vmatpush1.msra.mxu0 0.0
    %3136 = vmatprep.subr.mxu0 0.0
    %3137 = vmatpush1.msra.mxu0 0.0
    %3138 = vmatprep.subr.mxu0 0.0
    %3139 = vmatpush1.msra.mxu0 0.0
    %3140 = vmatprep.subr.mxu0 0.0
    %3141 = vmatpush1.msra.mxu0 0.0
    %3142 = vmatprep.subr.mxu0 0.0
    %3143 = vmatpush1.msra.mxu0 0.0
    %3144 = vmatprep.subr.mxu0 0.0
    %3145 = vmatpush1.msra.mxu0 0.0
    %3146 = vmatprep.subr.mxu0 0.0
    %3147 = vmatpush1.msra.mxu0 0.0
    %3148 = vmatprep.subr.mxu0 0.0
    %3149 = vmatpush1.msra.mxu0 0.0
    %3150 = vmatprep.subr.mxu0 0.0
    %3151 = vmatpush1.msra.mxu0 0.0
    %3152 = vmatprep.subr.mxu0 0.0
    %3153 = vmatpush1.msra.mxu0 0.0
    %3154 = vmatprep.subr.mxu0 0.0
    %3155 = vmatpush1.msra.mxu0 0.0
    %3156 = vmatprep.subr.mxu0 0.0
    %3157 = vmatpush1.msra.mxu0 0.0
    %3158 = vmatprep.subr.mxu0 0.0
    %3159 = vmatpush1.msra.mxu0 0.0
    %3160 = vmatprep.subr.mxu0 0.0
    %3161 = vmatpush1.msra.mxu0 0.0
    %3162 = vmatprep.subr.mxu0 0.0
    %3163 = vmatpush1.msra.mxu0 0.0
    %3164 = vmatprep.subr.mxu0 0.0
    %3165 = vmatpush1.msra.mxu0 0.0
    %3166 = vmatprep.subr.mxu0 0.0
    %3167 = vmatpush1.msra.mxu0 0.0
    %3168 = vmatprep.subr.mxu0 0.0
    %3169 = vmatpush1.msra.mxu0 0.0
    %3170 = vmatprep.subr.mxu0 0.0
    %3171 = vmatpush1.msra.mxu0 0.0
    %3172 = vmatprep.subr.mxu0 0.0
    %3173 = vmatpush1.msra.mxu0 0.0
    %3174 = vmatprep.subr.mxu0 0.0
    %3175 = vmatpush1.msra.mxu0 0.0
    %3176 = vmatprep.subr.mxu0 0.0
    %3177 = vmatpush1.msra.mxu0 0.0
    %3178 = vmatprep.mubr.f32.mxu0 0.0
    %3179 = vmatmul.mubr.f32.gmra.mrb[0].mxu0 %v3112
    %v3180 = vpop.f32.mrb[0].mxu0
    %v3181 = vadd.f32 0.0, %v3180
    %v3182 = vpop.f32.mrb[0].mxu0
    %3183 = vdwg.mxu0
    %3184 = vrot.lane.b32.xlu0 %v2029, 64
    %v3185 = vpop.permute.xlu0 %3184
    %v3188 = vsel %vm215, %v2726, 0
    %3190 = vmatprep.subr.mxu0 0.0
    %3191 = vmatpush1.msra.mxu0 %v3185
    %3192 = vmatprep.subr.mxu0 0.0
    %3193 = vmatpush1.msra.mxu0 0.0
    %3194 = vmatprep.subr.mxu0 0.0
    %3195 = vmatpush1.msra.mxu0 0.0
    %3196 = vmatprep.subr.mxu0 0.0
    %3197 = vmatpush1.msra.mxu0 0.0
    %3198 = vmatprep.subr.mxu0 0.0
    %3199 = vmatpush1.msra.mxu0 0.0
    %3200 = vmatprep.subr.mxu0 0.0
    %3201 = vmatpush1.msra.mxu0 0.0
    %3202 = vmatprep.subr.mxu0 0.0
    %3203 = vmatpush1.msra.mxu0 0.0
    %3204 = vmatprep.subr.mxu0 0.0
    %3205 = vmatpush1.msra.mxu0 0.0
    %3206 = vmatprep.subr.mxu0 0.0
    %3207 = vmatpush1.msra.mxu0 0.0
    %3208 = vmatprep.subr.mxu0 0.0
    %3209 = vmatpush1.msra.mxu0 0.0
    %3210 = vmatprep.subr.mxu0 0.0
    %3211 = vmatpush1.msra.mxu0 0.0
    %3212 = vmatprep.subr.mxu0 0.0
    %3213 = vmatpush1.msra.mxu0 0.0
    %3214 = vmatprep.subr.mxu0 0.0
    %3215 = vmatpush1.msra.mxu0 0.0
    %3216 = vmatprep.subr.mxu0 0.0
    %3217 = vmatpush1.msra.mxu0 0.0
    %3218 = vmatprep.subr.mxu0 0.0
    %3219 = vmatpush1.msra.mxu0 0.0
    %3220 = vmatprep.subr.mxu0 0.0
    %3221 = vmatpush1.msra.mxu0 0.0
    %3222 = vmatprep.subr.mxu0 0.0
    %3223 = vmatpush1.msra.mxu0 0.0
    %3224 = vmatprep.subr.mxu0 0.0
    %3225 = vmatpush1.msra.mxu0 0.0
    %3226 = vmatprep.subr.mxu0 0.0
    %3227 = vmatpush1.msra.mxu0 0.0
    %3228 = vmatprep.subr.mxu0 0.0
    %3229 = vmatpush1.msra.mxu0 0.0
    %3230 = vmatprep.subr.mxu0 0.0
    %3231 = vmatpush1.msra.mxu0 0.0
    %3232 = vmatprep.subr.mxu0 0.0
    %3233 = vmatpush1.msra.mxu0 0.0
    %3234 = vmatprep.subr.mxu0 0.0
    %3235 = vmatpush1.msra.mxu0 0.0
    %3236 = vmatprep.subr.mxu0 0.0
    %3237 = vmatpush1.msra.mxu0 0.0
    %3238 = vmatprep.subr.mxu0 0.0
    %3239 = vmatpush1.msra.mxu0 0.0
    %3240 = vmatprep.subr.mxu0 0.0
    %3241 = vmatpush1.msra.mxu0 0.0
    %3242 = vmatprep.subr.mxu0 0.0
    %3243 = vmatpush1.msra.mxu0 0.0
    %3244 = vmatprep.subr.mxu0 0.0
    %3245 = vmatpush1.msra.mxu0 0.0
    %3246 = vmatprep.subr.mxu0 0.0
    %3247 = vmatpush1.msra.mxu0 0.0
    %3248 = vmatprep.subr.mxu0 0.0
    %3249 = vmatpush1.msra.mxu0 0.0
    %3250 = vmatprep.subr.mxu0 0.0
    %3251 = vmatpush1.msra.mxu0 0.0
    %3252 = vmatprep.subr.mxu0 0.0
    %3253 = vmatpush1.msra.mxu0 0.0
    %3254 = vmatprep.mubr.f32.mxu0 0.0
    %3255 = vmatmul.mubr.f32.gmra.mrb[0].mxu0 %v3188
    %v3256 = vpop.f32.mrb[0].mxu0
    %v3257 = vadd.f32 0.0, %v3256
    %v3258 = vpop.f32.mrb[0].mxu0
    %3259 = vdwg.mxu0
    %3260 = vrot.lane.b32.xlu0 %v2031, 64
    %v3261 = vpop.permute.xlu0 %3260
    %v3264 = vsel %vm215, %v2727, 0
    %3266 = vmatprep.subr.mxu0 0.0
    %3267 = vmatpush1.msra.mxu0 %v3261
    %3268 = vmatprep.subr.mxu0 0.0
    %3269 = vmatpush1.msra.mxu0 0.0
    %3270 = vmatprep.subr.mxu0 0.0
    %3271 = vmatpush1.msra.mxu0 0.0
    %3272 = vmatprep.subr.mxu0 0.0
    %3273 = vmatpush1.msra.mxu0 0.0
    %3274 = vmatprep.subr.mxu0 0.0
    %3275 = vmatpush1.msra.mxu0 0.0
    %3276 = vmatprep.subr.mxu0 0.0
    %3277 = vmatpush1.msra.mxu0 0.0
    %3278 = vmatprep.subr.mxu0 0.0
    %3279 = vmatpush1.msra.mxu0 0.0
    %3280 = vmatprep.subr.mxu0 0.0
    %3281 = vmatpush1.msra.mxu0 0.0
    %3282 = vmatprep.subr.mxu0 0.0
    %3283 = vmatpush1.msra.mxu0 0.0
    %3284 = vmatprep.subr.mxu0 0.0
    %3285 = vmatpush1.msra.mxu0 0.0
    %3286 = vmatprep.subr.mxu0 0.0
    %3287 = vmatpush1.msra.mxu0 0.0
    %3288 = vmatprep.subr.mxu0 0.0
    %3289 = vmatpush1.msra.mxu0 0.0
    %3290 = vmatprep.subr.mxu0 0.0
    %3291 = vmatpush1.msra.mxu0 0.0
    %3292 = vmatprep.subr.mxu0 0.0
    %3293 = vmatpush1.msra.mxu0 0.0
    %3294 = vmatprep.subr.mxu0 0.0
    %3295 = vmatpush1.msra.mxu0 0.0
    %3296 = vmatprep.subr.mxu0 0.0
    %3297 = vmatpush1.msra.mxu0 0.0
    %3298 = vmatprep.subr.mxu0 0.0
    %3299 = vmatpush1.msra.mxu0 0.0
    %3300 = vmatprep.subr.mxu0 0.0
    %3301 = vmatpush1.msra.mxu0 0.0
    %3302 = vmatprep.subr.mxu0 0.0
    %3303 = vmatpush1.msra.mxu0 0.0
    %3304 = vmatprep.subr.mxu0 0.0
    %3305 = vmatpush1.msra.mxu0 0.0
    %3306 = vmatprep.subr.mxu0 0.0
    %3307 = vmatpush1.msra.mxu0 0.0
    %3308 = vmatprep.subr.mxu0 0.0
    %3309 = vmatpush1.msra.mxu0 0.0
    %3310 = vmatprep.subr.mxu0 0.0
    %3311 = vmatpush1.msra.mxu0 0.0
    %3312 = vmatprep.subr.mxu0 0.0
    %3313 = vmatpush1.msra.mxu0 0.0
    %3314 = vmatprep.subr.mxu0 0.0
    %3315 = vmatpush1.msra.mxu0 0.0
    %3316 = vmatprep.subr.mxu0 0.0
    %3317 = vmatpush1.msra.mxu0 0.0
    %3318 = vmatprep.subr.mxu0 0.0
    %3319 = vmatpush1.msra.mxu0 0.0
    %3320 = vmatprep.subr.mxu0 0.0
    %3321 = vmatpush1.msra.mxu0 0.0
    %3322 = vmatprep.subr.mxu0 0.0
    %3323 = vmatpush1.msra.mxu0 0.0
    %3324 = vmatprep.subr.mxu0 0.0
    %3325 = vmatpush1.msra.mxu0 0.0
    %3326 = vmatprep.subr.mxu0 0.0
    %3327 = vmatpush1.msra.mxu0 0.0
    %3328 = vmatprep.subr.mxu0 0.0
    %3329 = vmatpush1.msra.mxu0 0.0
    %3330 = vmatprep.mubr.f32.mxu0 0.0
    %3331 = vmatmul.mubr.f32.gmra.mrb[0].mxu0 %v3264
    %v3332 = vpop.f32.mrb[0].mxu0
    %v3333 = vadd.f32 0.0, %v3332
    %v3334 = vpop.f32.mrb[0].mxu0
    %3335 = vdwg.mxu0
    %3338 = vrot.lane.b32.xlu0 %v2953, 8
    %v3339 = vpop.permute.xlu0 %3338
    %3340 = vrot.lane.b32.xlu0 %v3029, 8
    %v3341 = vpop.permute.xlu0 %3340
    %3346 = vrot.lane.b32.xlu0 %v3105, 16
    %v3347 = vpop.permute.xlu0 %3346
    %3348 = vrot.lane.b32.xlu0 %v3181, 16
    %v3349 = vpop.permute.xlu0 %3348
    %3354 = vrot.lane.b32.xlu0 %v3257, 24
    %v3355 = vpop.permute.xlu0 %3354
    %3356 = vrot.lane.b32.xlu0 %v3333, 24
    %v3357 = vpop.permute.xlu0 %3356
    %v3360 = vsel %vm215, %v2801, %v3339
    %v3361 = vsel %vm215, %v2877, %v3341
    %v3362 = vsel %vm1544, %v3360, %v3347
    %v3363 = vsel %vm1544, %v3361, %v3349
    %v3364 = vsel %vm1547, %v3362, %v3355
    %v3365 = vsel %vm1547, %v3363, %v3357
    %s3366 = scalar_lea.vmem %s5, 32
    %v3367 = vld [vmem:[%s3366] sm:$0xff]
    %v3368 = vld [vmem:[%s3366 + $0x8] sm:$0xff]
    %v3369 = vld [vmem:[%s3366 + $0x10] sm:$0xff]
    %v3370 = vld [vmem:[%s3366 + $0x18] sm:$0xff]
    %v3372 = vsel %vm70, %v3364, 0
    %v3375 = vsel %vm70, %v3365, 0
    %3377 = vmatprep.subr.mxu0 0.0
    %3378 = vmatpush1.msra.mxu0 %v3367
    %3379 = vmatprep.subr.mxu0 0.0
    %3380 = vmatpush1.msra.mxu0 %v3368
    %3381 = vmatprep.subr.mxu0 0.0
    %3382 = vmatpush1.msra.mxu0 %v3369
    %3383 = vmatprep.subr.mxu0 0.0
    %3384 = vmatpush1.msra.mxu0 %v3370
    %3385 = vmatprep.subr.mxu0 0.0
    %3386 = vmatpush1.msra.mxu0 0.0
    %3387 = vmatprep.subr.mxu0 0.0
    %3388 = vmatpush1.msra.mxu0 0.0
    %3389 = vmatprep.subr.mxu0 0.0
    %3390 = vmatpush1.msra.mxu0 0.0
    %3391 = vmatprep.subr.mxu0 0.0
    %3392 = vmatpush1.msra.mxu0 0.0
    %3393 = vmatprep.subr.mxu0 0.0
    %3394 = vmatpush1.msra.mxu0 0.0
    %3395 = vmatprep.subr.mxu0 0.0
    %3396 = vmatpush1.msra.mxu0 0.0
    %3397 = vmatprep.subr.mxu0 0.0
    %3398 = vmatpush1.msra.mxu0 0.0
    %3399 = vmatprep.subr.mxu0 0.0
    %3400 = vmatpush1.msra.mxu0 0.0
    %3401 = vmatprep.subr.mxu0 0.0
    %3402 = vmatpush1.msra.mxu0 0.0
    %3403 = vmatprep.subr.mxu0 0.0
    %3404 = vmatpush1.msra.mxu0 0.0
    %3405 = vmatprep.subr.mxu0 0.0
    %3406 = vmatpush1.msra.mxu0 0.0
    %3407 = vmatprep.subr.mxu0 0.0
    %3408 = vmatpush1.msra.mxu0 0.0
    %3409 = vmatprep.subr.mxu0 0.0
    %3410 = vmatpush1.msra.mxu0 0.0
    %3411 = vmatprep.subr.mxu0 0.0
    %3412 = vmatpush1.msra.mxu0 0.0
    %3413 = vmatprep.subr.mxu0 0.0
    %3414 = vmatpush1.msra.mxu0 0.0
    %3415 = vmatprep.subr.mxu0 0.0
    %3416 = vmatpush1.msra.mxu0 0.0
    %3417 = vmatprep.subr.mxu0 0.0
    %3418 = vmatpush1.msra.mxu0 0.0
    %3419 = vmatprep.subr.mxu0 0.0
    %3420 = vmatpush1.msra.mxu0 0.0
    %3421 = vmatprep.subr.mxu0 0.0
    %3422 = vmatpush1.msra.mxu0 0.0
    %3423 = vmatprep.subr.mxu0 0.0
    %3424 = vmatpush1.msra.mxu0 0.0
    %3425 = vmatprep.subr.mxu0 0.0
    %3426 = vmatpush1.msra.mxu0 0.0
    %3427 = vmatprep.subr.mxu0 0.0
    %3428 = vmatpush1.msra.mxu0 0.0
    %3429 = vmatprep.subr.mxu0 0.0
    %3430 = vmatpush1.msra.mxu0 0.0
    %3431 = vmatprep.subr.mxu0 0.0
    %3432 = vmatpush1.msra.mxu0 0.0
    %3433 = vmatprep.subr.mxu0 0.0
    %3434 = vmatpush1.msra.mxu0 0.0
    %3435 = vmatprep.subr.mxu0 0.0
    %3436 = vmatpush1.msra.mxu0 0.0
    %3437 = vmatprep.subr.mxu0 0.0
    %3438 = vmatpush1.msra.mxu0 0.0
    %3439 = vmatprep.subr.mxu0 0.0
    %3440 = vmatpush1.msra.mxu0 0.0
    %3441 = vmatprep.mubr.f32.mxu0 0.0
    %3442 = vmatmul.mubr.f32.gmra.mrb[0].mxu0 %v3372
    %v3443 = vpop.f32.mrb[0].mxu0
    %v3444 = vadd.f32 0.0, %v3443
    %v3445 = vpop.f32.mrb[0].mxu0
    %3446 = vmatprep.mubr.f32.mxu0 0.0
    %3447 = vmatmul.mubr.f32.gmra.mrb[0].mxu0 %v3375
    %v3448 = vpop.f32.mrb[0].mxu0
    %v3449 = vadd.f32 0.0, %v3448
    %v3450 = vpop.f32.mrb[0].mxu0
    %3451 = vdwg.mxu0
    %v3452 = vadd.f32 %v1884, %v3444
    %v3453 = vadd.f32 %v1885, %v3449
    %s3454 = scalar_lea.vmem %s6, 1
    %v3455 = vld [vmem:[%s3454] sm:$0x1]
    %v3457 = vlaneseq
    %v3458 = vshrl.u32 %v3457, 7
    %v3459 = vsub.s32 0, %v3458
    %v3460 = vrot.slane %v3455, %v3459
    %v3462 = vadd.f32 %v3452, %v3460
    %v3463 = vadd.f32 %v3453, %v3460
    %s3464 = scalar_lea.vmem %s7, 1
    %v3465 = vld [vmem:[%s3464] sm:$0x1]
    %s3466 = scalar_lea.vmem %s8, 1
    %v3467 = vld [vmem:[%s3466] sm:$0x1]
    %v3468 = vsel %vm70, %v3462, 0.0
    %3469 = vadd.xlane.f32.xlu0 %v3468
    %v3470 = vpop.xlane.xlu0 %3469
    %v3471 = vsel %vm70, %v3463, 0.0
    %3472 = vadd.xlane.f32.xlu0 %v3471
    %v3473 = vpop.xlane.xlu0 %3472
    %v3474 = vmul.f32 %v3470, %v77
    %v3475 = vmul.f32 %v3473, %v77
    %v3476 = vsub.f32 %v3462, %v3474
    %v3477 = vsub.f32 %v3463, %v3475
    %v3478 = vmul.f32 %v3476, %v3476
    %v3479 = vmul.f32 %v3477, %v3477
    %v3480 = vsel %vm70, %v3478, 0.0
    %3481 = vadd.xlane.f32.xlu0 %v3480
    %v3482 = vpop.xlane.xlu0 %3481
    %v3483 = vsel %vm70, %v3479, 0.0
    %3484 = vadd.xlane.f32.xlu0 %v3483
    %v3485 = vpop.xlane.xlu0 %3484
    %v3486 = vmul.f32 %v3482, %v77
    %v3487 = vmul.f32 %v3485, %v77
    %v3488 = vadd.f32 %v3486, 1e-05
    %v3489 = vadd.f32 %v3487, 1e-05
    %v3490 = vrsqrt.pop %v3488
    %v3491 = vrsqrt.pop %v3489
    %v3492 = vmul.f32 %v3476, %v3490
    %v3493 = vmul.f32 %v3477, %v3491
    %v3495 = vlaneseq
    %v3496 = vshrl.u32 %v3495, 7
    %v3497 = vsub.s32 0, %v3496
    %v3498 = vrot.slane %v3465, %v3497
    %v3500 = vmul.f32 %v3492, %v3498
    %v3501 = vmul.f32 %v3493, %v3498
    %v3503 = vlaneseq
    %v3504 = vshrl.u32 %v3503, 7
    %v3505 = vsub.s32 0, %v3504
    %v3506 = vrot.slane %v3467, %v3505
    %v3508 = vadd.f32 %v3500, %v3506
    %v3509 = vadd.f32 %v3501, %v3506
    %s3510 = scalar_lea.vmem %s9, 32
    %v3511 = vld [vmem:[%s3510] sm:$0xff]
    %v3512 = vld [vmem:[%s3510 + $0x8] sm:$0xff]
    %v3513 = vld [vmem:[%s3510 + $0x10] sm:$0xff]
    %v3514 = vld [vmem:[%s3510 + $0x18] sm:$0xff]
    %s3515 = scalar_lea.vmem %s10, 1
    %v3516 = vld [vmem:[%s3515] sm:$0x1]
    %v3518 = vlaneseq
    %v3519 = vshrl.u32 %v3518, 7
    %v3520 = vsub.s32 0, %v3519
    %v3521 = vrot.slane %v3516, %v3520
    %v3524 = vsel %vm70, %v3508, 0
    %v3527 = vsel %vm70, %v3509, 0
    %3529 = vmatprep.subr.mxu0 0.0
    %3530 = vmatpush1.msra.mxu0 %v3511
    %3531 = vmatprep.subr.mxu0 0.0
    %3532 = vmatpush1.msra.mxu0 %v3512
    %3533 = vmatprep.subr.mxu0 0.0
    %3534 = vmatpush1.msra.mxu0 %v3513
    %3535 = vmatprep.subr.mxu0 0.0
    %3536 = vmatpush1.msra.mxu0 %v3514
    %3537 = vmatprep.subr.mxu0 0.0
    %3538 = vmatpush1.msra.mxu0 0.0
    %3539 = vmatprep.subr.mxu0 0.0
    %3540 = vmatpush1.msra.mxu0 0.0
    %3541 = vmatprep.subr.mxu0 0.0
    %3542 = vmatpush1.msra.mxu0 0.0
    %3543 = vmatprep.subr.mxu0 0.0
    %3544 = vmatpush1.msra.mxu0 0.0
    %3545 = vmatprep.subr.mxu0 0.0
    %3546 = vmatpush1.msra.mxu0 0.0
    %3547 = vmatprep.subr.mxu0 0.0
    %3548 = vmatpush1.msra.mxu0 0.0
    %3549 = vmatprep.subr.mxu0 0.0
    %3550 = vmatpush1.msra.mxu0 0.0
    %3551 = vmatprep.subr.mxu0 0.0
    %3552 = vmatpush1.msra.mxu0 0.0
    %3553 = vmatprep.subr.mxu0 0.0
    %3554 = vmatpush1.msra.mxu0 0.0
    %3555 = vmatprep.subr.mxu0 0.0
    %3556 = vmatpush1.msra.mxu0 0.0
    %3557 = vmatprep.subr.mxu0 0.0
    %3558 = vmatpush1.msra.mxu0 0.0
    %3559 = vmatprep.subr.mxu0 0.0
    %3560 = vmatpush1.msra.mxu0 0.0
    %3561 = vmatprep.subr.mxu0 0.0
    %3562 = vmatpush1.msra.mxu0 0.0
    %3563 = vmatprep.subr.mxu0 0.0
    %3564 = vmatpush1.msra.mxu0 0.0
    %3565 = vmatprep.subr.mxu0 0.0
    %3566 = vmatpush1.msra.mxu0 0.0
    %3567 = vmatprep.subr.mxu0 0.0
    %3568 = vmatpush1.msra.mxu0 0.0
    %3569 = vmatprep.subr.mxu0 0.0
    %3570 = vmatpush1.msra.mxu0 0.0
    %3571 = vmatprep.subr.mxu0 0.0
    %3572 = vmatpush1.msra.mxu0 0.0
    %3573 = vmatprep.subr.mxu0 0.0
    %3574 = vmatpush1.msra.mxu0 0.0
    %3575 = vmatprep.subr.mxu0 0.0
    %3576 = vmatpush1.msra.mxu0 0.0
    %3577 = vmatprep.subr.mxu0 0.0
    %3578 = vmatpush1.msra.mxu0 0.0
    %3579 = vmatprep.subr.mxu0 0.0
    %3580 = vmatpush1.msra.mxu0 0.0
    %3581 = vmatprep.subr.mxu0 0.0
    %3582 = vmatpush1.msra.mxu0 0.0
    %3583 = vmatprep.subr.mxu0 0.0
    %3584 = vmatpush1.msra.mxu0 0.0
    %3585 = vmatprep.subr.mxu0 0.0
    %3586 = vmatpush1.msra.mxu0 0.0
    %3587 = vmatprep.subr.mxu0 0.0
    %3588 = vmatpush1.msra.mxu0 0.0
    %3589 = vmatprep.subr.mxu0 0.0
    %3590 = vmatpush1.msra.mxu0 0.0
    %3591 = vmatprep.subr.mxu0 0.0
    %3592 = vmatpush1.msra.mxu0 0.0
    %3593 = vmatprep.mubr.f32.mxu0 0.0
    %3594 = vmatmul.mubr.f32.gmra.mrb[0].mxu0 %v3524
    %v3595 = vpop.f32.mrb[0].mxu0
    %v3596 = vadd.f32 %v3521, %v3595
    %v3597 = vpop.f32.mrb[0].mxu0
    %3598 = vmatprep.mubr.f32.mxu0 0.0
    %3599 = vmatmul.mubr.f32.gmra.mrb[0].mxu0 %v3527
    %v3600 = vpop.f32.mrb[0].mxu0
    %v3601 = vadd.f32 %v3521, %v3600
    %v3602 = vpop.f32.mrb[0].mxu0
    %3603 = vdwg.mxu0
    %v3604 = vmax.f32 %v3596, 0.0
    %v3605 = vmax.f32 %v3601, 0.0
    %s3606 = scalar_lea.vmem %s11, 128
    %v3607 = vld [vmem:[%s3606] sm:$0xff]
    %v3608 = vld [vmem:[%s3606 + $0x8] sm:$0xff]
    %v3609 = vld [vmem:[%s3606 + $0x10] sm:$0xff]
    %v3610 = vld [vmem:[%s3606 + $0x18] sm:$0xff]
    %v3611 = vld [vmem:[%s3606 + $0x20] sm:$0xff]
    %v3612 = vld [vmem:[%s3606 + $0x28] sm:$0xff]
    %v3613 = vld [vmem:[%s3606 + $0x30] sm:$0xff]
    %v3614 = vld [vmem:[%s3606 + $0x38] sm:$0xff]
    %v3615 = vld [vmem:[%s3606 + $0x40] sm:$0xff]
    %v3616 = vld [vmem:[%s3606 + $0x48] sm:$0xff]
    %v3617 = vld [vmem:[%s3606 + $0x50] sm:$0xff]
    %v3618 = vld [vmem:[%s3606 + $0x58] sm:$0xff]
    %v3619 = vld [vmem:[%s3606 + $0x60] sm:$0xff]
    %v3620 = vld [vmem:[%s3606 + $0x68] sm:$0xff]
    %v3621 = vld [vmem:[%s3606 + $0x70] sm:$0xff]
    %v3622 = vld [vmem:[%s3606 + $0x78] sm:$0xff]
    %3623 = vmatprep.subr.mxu0 0.0
    %3624 = vmatpush1.msra.mxu0 %v3607
    %3625 = vmatprep.subr.mxu0 0.0
    %3626 = vmatpush1.msra.mxu0 %v3608
    %3627 = vmatprep.subr.mxu0 0.0
    %3628 = vmatpush1.msra.mxu0 %v3609
    %3629 = vmatprep.subr.mxu0 0.0
    %3630 = vmatpush1.msra.mxu0 %v3610
    %3631 = vmatprep.subr.mxu0 0.0
    %3632 = vmatpush1.msra.mxu0 %v3611
    %3633 = vmatprep.subr.mxu0 0.0
    %3634 = vmatpush1.msra.mxu0 %v3612
    %3635 = vmatprep.subr.mxu0 0.0
    %3636 = vmatpush1.msra.mxu0 %v3613
    %3637 = vmatprep.subr.mxu0 0.0
    %3638 = vmatpush1.msra.mxu0 %v3614
    %3639 = vmatprep.subr.mxu0 0.0
    %3640 = vmatpush1.msra.mxu0 %v3615
    %3641 = vmatprep.subr.mxu0 0.0
    %3642 = vmatpush1.msra.mxu0 %v3616
    %3643 = vmatprep.subr.mxu0 0.0
    %3644 = vmatpush1.msra.mxu0 %v3617
    %3645 = vmatprep.subr.mxu0 0.0
    %3646 = vmatpush1.msra.mxu0 %v3618
    %3647 = vmatprep.subr.mxu0 0.0
    %3648 = vmatpush1.msra.mxu0 %v3619
    %3649 = vmatprep.subr.mxu0 0.0
    %3650 = vmatpush1.msra.mxu0 %v3620
    %3651 = vmatprep.subr.mxu0 0.0
    %3652 = vmatpush1.msra.mxu0 %v3621
    %3653 = vmatprep.subr.mxu0 0.0
    %3654 = vmatpush1.msra.mxu0 %v3622
    %3655 = vmatprep.subr.mxu0 0.0
    %3656 = vmatpush1.msra.mxu0 0.0
    %3657 = vmatprep.subr.mxu0 0.0
    %3658 = vmatpush1.msra.mxu0 0.0
    %3659 = vmatprep.subr.mxu0 0.0
    %3660 = vmatpush1.msra.mxu0 0.0
    %3661 = vmatprep.subr.mxu0 0.0
    %3662 = vmatpush1.msra.mxu0 0.0
    %3663 = vmatprep.subr.mxu0 0.0
    %3664 = vmatpush1.msra.mxu0 0.0
    %3665 = vmatprep.subr.mxu0 0.0
    %3666 = vmatpush1.msra.mxu0 0.0
    %3667 = vmatprep.subr.mxu0 0.0
    %3668 = vmatpush1.msra.mxu0 0.0
    %3669 = vmatprep.subr.mxu0 0.0
    %3670 = vmatpush1.msra.mxu0 0.0
    %3671 = vmatprep.subr.mxu0 0.0
    %3672 = vmatpush1.msra.mxu0 0.0
    %3673 = vmatprep.subr.mxu0 0.0
    %3674 = vmatpush1.msra.mxu0 0.0
    %3675 = vmatprep.subr.mxu0 0.0
    %3676 = vmatpush1.msra.mxu0 0.0
    %3677 = vmatprep.subr.mxu0 0.0
    %3678 = vmatpush1.msra.mxu0 0.0
    %3679 = vmatprep.subr.mxu0 0.0
    %3680 = vmatpush1.msra.mxu0 0.0
    %3681 = vmatprep.subr.mxu0 0.0
    %3682 = vmatpush1.msra.mxu0 0.0
    %3683 = vmatprep.subr.mxu0 0.0
    %3684 = vmatpush1.msra.mxu0 0.0
    %3685 = vmatprep.subr.mxu0 0.0
    %3686 = vmatpush1.msra.mxu0 0.0
    %3687 = vmatprep.mubr.f32.mxu0 0.0
    %3688 = vmatmul.mubr.f32.gmra.mrb[0].mxu0 %v3604
    %v3689 = vpop.f32.mrb[0].mxu0
    %v3690 = vadd.f32 0.0, %v3689
    %v3691 = vpop.f32.mrb[0].mxu0
    %3692 = vmatprep.mubr.f32.mxu0 0.0
    %3693 = vmatmul.mubr.f32.gmra.mrb[0].mxu0 %v3605
    %v3694 = vpop.f32.mrb[0].mxu0
    %v3695 = vadd.f32 0.0, %v3694
    %v3696 = vpop.f32.mrb[0].mxu0
    %3697 = vdwg.mxu0
    %v3698 = vadd.f32 %v3462, %v3690
    %v3699 = vadd.f32 %v3463, %v3695
    %s3700 = scalar_lea.vmem %s12, 1
    %v3701 = vld [vmem:[%s3700] sm:$0x1]
    %v3703 = vlaneseq
    %v3704 = vshrl.u32 %v3703, 7
    %v3705 = vsub.s32 0, %v3704
    %v3706 = vrot.slane %v3701, %v3705
    %v3708 = vadd.f32 %v3698, %v3706
    %v3709 = vadd.f32 %v3699, %v3706
    %v3710 = vld [vmem:[%s13] sm:$0x1]
    %v3711 = vld [vmem:[%s14] sm:$0x1]
    %v3712 = vsel %vm70, %v3708, 0.0
    %3713 = vadd.xlane.f32.xlu0 %v3712
    %v3714 = vpop.xlane.xlu0 %3713
    %v3715 = vsel %vm70, %v3709, 0.0
    %3716 = vadd.xlane.f32.xlu0 %v3715
    %v3717 = vpop.xlane.xlu0 %3716
    %v3718 = vmul.f32 %v3714, %v77
    %v3719 = vmul.f32 %v3717, %v77
    %v3720 = vsub.f32 %v3708, %v3718
    %v3721 = vsub.f32 %v3709, %v3719
    %v3722 = vmul.f32 %v3720, %v3720
    %v3723 = vmul.f32 %v3721, %v3721
    %v3724 = vsel %vm70, %v3722, 0.0
    %3725 = vadd.xlane.f32.xlu0 %v3724
    %v3726 = vpop.xlane.xlu0 %3725
    %v3727 = vsel %vm70, %v3723, 0.0
    %3728 = vadd.xlane.f32.xlu0 %v3727
    %v3729 = vpop.xlane.xlu0 %3728
    %v3730 = vmul.f32 %v3726, %v77
    %v3731 = vmul.f32 %v3729, %v77
    %v3732 = vadd.f32 %v3730, 1e-05
    %v3733 = vadd.f32 %v3731, 1e-05
    %v3734 = vrsqrt.pop %v3732
    %v3735 = vrsqrt.pop %v3733
    %v3736 = vmul.f32 %v3720, %v3734
    %v3737 = vmul.f32 %v3721, %v3735
    %v3739 = vlaneseq
    %v3740 = vshrl.u32 %v3739, 7
    %v3741 = vsub.s32 0, %v3740
    %v3742 = vrot.slane %v3710, %v3741
    %v3744 = vmul.f32 %v3736, %v3742
    %v3745 = vmul.f32 %v3737, %v3742
    %v3747 = vlaneseq
    %v3748 = vshrl.u32 %v3747, 7
    %v3749 = vsub.s32 0, %v3748
    %v3750 = vrot.slane %v3711, %v3749
    %v3752 = vadd.f32 %v3744, %v3750
    %v3753 = vadd.f32 %v3745, %v3750
    %v3754 = vld [vmem:[%s15] sm:$0xff]
    %v3755 = vld [vmem:[%s15 + $0x8] sm:$0xff]
    %v3756 = vld [vmem:[%s15 + $0x10] sm:$0xff]
    %v3757 = vld [vmem:[%s15 + $0x18] sm:$0xff]
    %v3758 = vld [vmem:[%s16] sm:$0x1]
    %v3760 = vlaneseq
    %v3761 = vshrl.u32 %v3760, 7
    %v3762 = vsub.s32 0, %v3761
    %v3763 = vrot.slane %v3758, %v3762
    %v3766 = vsel %vm70, %v3752, 0
    %v3769 = vsel %vm70, %v3753, 0
    %3771 = vmatprep.subr.mxu0 0.0
    %3772 = vmatpush1.msra.mxu0 %v3754
    %3773 = vmatprep.subr.mxu0 0.0
    %3774 = vmatpush1.msra.mxu0 %v3755
    %3775 = vmatprep.subr.mxu0 0.0
    %3776 = vmatpush1.msra.mxu0 %v3756
    %3777 = vmatprep.subr.mxu0 0.0
    %3778 = vmatpush1.msra.mxu0 %v3757
    %3779 = vmatprep.subr.mxu0 0.0
    %3780 = vmatpush1.msra.mxu0 0.0
    %3781 = vmatprep.subr.mxu0 0.0
    %3782 = vmatpush1.msra.mxu0 0.0
    %3783 = vmatprep.subr.mxu0 0.0
    %3784 = vmatpush1.msra.mxu0 0.0
    %3785 = vmatprep.subr.mxu0 0.0
    %3786 = vmatpush1.msra.mxu0 0.0
    %3787 = vmatprep.subr.mxu0 0.0
    %3788 = vmatpush1.msra.mxu0 0.0
    %3789 = vmatprep.subr.mxu0 0.0
    %3790 = vmatpush1.msra.mxu0 0.0
    %3791 = vmatprep.subr.mxu0 0.0
    %3792 = vmatpush1.msra.mxu0 0.0
    %3793 = vmatprep.subr.mxu0 0.0
    %3794 = vmatpush1.msra.mxu0 0.0
    %3795 = vmatprep.subr.mxu0 0.0
    %3796 = vmatpush1.msra.mxu0 0.0
    %3797 = vmatprep.subr.mxu0 0.0
    %3798 = vmatpush1.msra.mxu0 0.0
    %3799 = vmatprep.subr.mxu0 0.0
    %3800 = vmatpush1.msra.mxu0 0.0
    %3801 = vmatprep.subr.mxu0 0.0
    %3802 = vmatpush1.msra.mxu0 0.0
    %3803 = vmatprep.subr.mxu0 0.0
    %3804 = vmatpush1.msra.mxu0 0.0
    %3805 = vmatprep.subr.mxu0 0.0
    %3806 = vmatpush1.msra.mxu0 0.0
    %3807 = vmatprep.subr.mxu0 0.0
    %3808 = vmatpush1.msra.mxu0 0.0
    %3809 = vmatprep.subr.mxu0 0.0
    %3810 = vmatpush1.msra.mxu0 0.0
    %3811 = vmatprep.subr.mxu0 0.0
    %3812 = vmatpush1.msra.mxu0 0.0
    %3813 = vmatprep.subr.mxu0 0.0
    %3814 = vmatpush1.msra.mxu0 0.0
    %3815 = vmatprep.subr.mxu0 0.0
    %3816 = vmatpush1.msra.mxu0 0.0
    %3817 = vmatprep.subr.mxu0 0.0
    %3818 = vmatpush1.msra.mxu0 0.0
    %3819 = vmatprep.subr.mxu0 0.0
    %3820 = vmatpush1.msra.mxu0 0.0
    %3821 = vmatprep.subr.mxu0 0.0
    %3822 = vmatpush1.msra.mxu0 0.0
    %3823 = vmatprep.subr.mxu0 0.0
    %3824 = vmatpush1.msra.mxu0 0.0
    %3825 = vmatprep.subr.mxu0 0.0
    %3826 = vmatpush1.msra.mxu0 0.0
    %3827 = vmatprep.subr.mxu0 0.0
    %3828 = vmatpush1.msra.mxu0 0.0
    %3829 = vmatprep.subr.mxu0 0.0
    %3830 = vmatpush1.msra.mxu0 0.0
    %3831 = vmatprep.subr.mxu0 0.0
    %3832 = vmatpush1.msra.mxu0 0.0
    %3833 = vmatprep.subr.mxu0 0.0
    %3834 = vmatpush1.msra.mxu0 0.0
    %3835 = vmatprep.mubr.f32.mxu0 0.0
    %3836 = vmatmul.mubr.f32.gmra.mrb[0].mxu0 %v3766
    %v3837 = vpop.f32.mrb[0].mxu0
    %v3838 = vadd.f32 %v3763, %v3837
    %v3839 = vpop.f32.mrb[0].mxu0
    %3840 = vmatprep.mubr.f32.mxu0 0.0
    %3841 = vmatmul.mubr.f32.gmra.mrb[0].mxu0 %v3769
    %v3842 = vpop.f32.mrb[0].mxu0
    %v3843 = vadd.f32 %v3763, %v3842
    %v3844 = vpop.f32.mrb[0].mxu0
    %3845 = vdwg.mxu0
    %3846 = vst [vmem:[#allocation2] sm:$0xff] %v3838
    %3847 = vst [vmem:[#allocation2 + $0x8] sm:$0xff] %v3843
    // Predicated region
    $region70: #{gpt_forward.1} parent=1 // pred_check
      _
    $region71: #{gpt_forward.1} parent=1 // pred_check_branch
      %3849 = sbr.rel (0) target = $region73
    $region72: #{gpt_forward.1} parent=1 // pred_region
      %s3851 = ssub.s32 256, 256
      %3852 = vsyncadd [#allocation3], %s3851
      %s3853 = sshll.u32 [#allocation2], 4
      %s3854 = int_to_ptr.vmem [resolvable:$true] %s3853
      %3859 = dma.vmem_to_hbm [thread:$0]  %s3854, 256, %s17, [#allocation3], 128, 128, 8
    $region73: #{gpt_forward.1} parent=1 // pred_fallthru
      _
    // Predicated region
    $region74: #{gpt_forward.1} parent=1 // pred_check
      _
    $region75: #{gpt_forward.1} parent=1 // pred_check_branch
      %3861 = sbr.rel (0) target = $region77
    $region76: #{gpt_forward.1} parent=1 // pred_region
      %3862 = dma.done [#allocation3], 256
    $region77: #{gpt_forward.1} parent=1 // pred_fallthru
      _
    %3863 = vsyncpa [#allocation3], 1

</llo_original>
